<compile_context>
chip_gen: v5e
topology: v5e:2x2
jax: 0.10.0
libtpu: 0.0.40
codegen_flags: <defaults>
</compile_context>

<pallas_src>
import functools

import jax
import jax.numpy as jnp
from jax.experimental import pallas as pl
from jax.experimental.pallas import tpu as pltpu


def _flash_attn_kernel(q_ref, k_ref, v_ref, o_ref, m_ref, l_ref, acc_ref, *, scale):
    """One grid step = one (batch, q-tile, kv-tile); all heads handled inside.

    Block shapes:
      q_ref, o_ref : (1, Hh, D, tq)   k_ref, v_ref : (1, Hh, D, tk)
    Scratch (persists across the kv grid axis):
      m_ref, l_ref : (Hh, 1, tq) f32  running max / running sum (per query)
      acc_ref      : (Hh, D, tq) f32  un-normalized output (already transposed / lane-dense)
    """
    ki = pl.program_id(2)
    num_heads = q_ref.shape[1]

    @pl.when(ki == 0)
    def _():
        m_ref[...] = jnp.full_like(m_ref, -jnp.inf)
        l_ref[...] = jnp.zeros_like(l_ref)
        acc_ref[...] = jnp.zeros_like(acc_ref)

    # Static unroll over heads: batches several small matmuls per grid step.
    for h in range(num_heads):
        # Fold the softmax scale into the (D, tq) Q tile (D << tk multiplies).
        q = q_ref[0, h] * scale          # (D, tq), input dtype (weak-typed python float)
        k = k_ref[0, h]                  # (D, tk)
        v = v_ref[0, h]                  # (D, tk)

        # Scores in transposed orientation: s[kv, q] = sum_d k[d, kv] * q[d, q].
        # k.T is a small in-VMEM (D, tk) transpose (XLU slot, off the VALU/MXU critical
        # path); both dots are plain NN MXU matmuls with f32 accumulation.
        s = jnp.dot(k.T, q, preferred_element_type=jnp.float32)       # (tk, tq) f32

        # Online softmax over the KV axis (axis 0); stats are (1, tq) row vectors.
        m_prev = m_ref[h]                                             # (1, tq)
        m_new = jnp.maximum(m_prev, jnp.max(s, axis=0, keepdims=True))
        alpha = jnp.exp(m_prev - m_new)                               # (1, tq)
        p = jnp.exp(s - m_new)                                        # (tk, tq) f32

        l_ref[h] = alpha * l_ref[h] + jnp.sum(p, axis=0, keepdims=True)
        acc_ref[h] = alpha * acc_ref[h] + jnp.dot(
            v, p.astype(v.dtype), preferred_element_type=jnp.float32)  # (D, tq)
        m_ref[h] = m_new

    @pl.when(ki == pl.num_programs(2) - 1)
    def _():
        # Vectorized finalize: one EUP reciprocal over (Hh, 1, tq), broadcast over the
        # D sublanes, single lane-dense store of the whole (Hh, D, tq) output block.
        inv_l = pl.reciprocal(l_ref[...], approx=True)                 # (Hh, 1, tq)
        o_ref[0] = (acc_ref[...] * inv_l).astype(o_ref.dtype)


def _default_tiles():
    """Per-generation default (block_q, block_kv)."""
    kind = jax.devices()[0].device_kind.lower()
    if "v5 lite" in kind or "v5e" in kind or "v5lite" in kind:
        return 128, 256      # v5e: 4x 128x128 MXU
    return 256, 512          # v6e / v7x: 256-wide MXU


def _pick_tile(seq, target):
    """Largest multiple of 128 that divides seq and is <= target; else full seq."""
    if seq <= target or seq % 128 != 0:
        return seq
    t = (min(target, seq) // 128) * 128
    while seq % t != 0:
        t -= 128
    return t


def multi_head_attention_normal(x_shape, q, k, v, *, num_heads, dim_head,
                                block_q=None, block_kv=None):
    """Pallas equivalent of MultiHeadAttentionNormal.forward.

    q, k, v: (B, num_heads*dim_head, H, W)  (NCHW, same as PyTorch)
    returns: (B, num_heads*dim_head, H, W)
    """
    batch_size, _, height, width = x_shape
    seq = height * width
    scale = dim_head ** (-0.5)

    # Native lane-dense layout (B, Hh, D, S): a pure reshape of NCHW — no transposes,
    # and S (the large axis) stays minor so all kernel loads/stores use full 128 lanes.
    def to_bhds(t):
        return t.reshape(batch_size, num_heads, dim_head, seq)

    qb, kb, vb = to_bhds(q), to_bhds(k), to_bhds(v)

    if block_q is None or block_kv is None:
        dq, dk = _default_tiles()
        block_q = block_q if block_q is not None else dq
        block_kv = block_kv if block_kv is not None else dk
    tq = _pick_tile(seq, block_q)
    tk = _pick_tile(seq, block_kv)
    n_q, n_kv = seq // tq, seq // tk

    q_spec = pl.BlockSpec((1, num_heads, dim_head, tq), lambda b, qi, ki: (b, 0, 0, qi))
    kv_spec = pl.BlockSpec((1, num_heads, dim_head, tk), lambda b, qi, ki: (b, 0, 0, ki))
    o_spec = pl.BlockSpec((1, num_heads, dim_head, tq), lambda b, qi, ki: (b, 0, 0, qi))

    out_bhds = pl.pallas_call(
        functools.partial(_flash_attn_kernel, scale=scale),
        out_shape=jax.ShapeDtypeStruct(
            (batch_size, num_heads, dim_head, seq), q.dtype),
        grid_spec=pltpu.PrefetchScalarGridSpec(
            num_scalar_prefetch=0,
            grid=(batch_size, n_q, n_kv),          # KV-reduction axis last
            in_specs=[q_spec, kv_spec, kv_spec],
            out_specs=o_spec,
            scratch_shapes=[
                pltpu.VMEM((num_heads, 1, tq), jnp.float32),          # running max
                pltpu.VMEM((num_heads, 1, tq), jnp.float32),          # running sum
                pltpu.VMEM((num_heads, dim_head, tq), jnp.float32),   # out^T accumulator
            ]),
        compiler_params=pltpu.CompilerParams(
            dimension_semantics=("parallel", "parallel", "arbitrary")),
    )(qb, kb, vb)

    # (B, Hh, D, S) is exactly the channel-major layout the module returns:
    # reshape back to NCHW with zero data movement.
    return out_bhds.reshape(batch_size, num_heads * dim_head, height, width)


def _reference(x_shape, q, k, v, *, num_heads, dim_head):
    """Pure-JAX reference mirroring the PyTorch code path exactly."""
    batch_size, _, height, width = x_shape
    scale = dim_head ** (-0.5)

    def split(t):
        t = jnp.transpose(t, (0, 2, 3, 1))
        return t.reshape(batch_size, -1, num_heads, dim_head)

    qs, ks, vs = split(q), split(k), split(v)
    attn = jnp.einsum('bihd,bjhd->bhij', qs, ks) * scale
    attn = jax.nn.softmax(attn, axis=-1)
    out = jnp.einsum('bhij,bjhd->bihd', attn, vs)
    out = jnp.transpose(out, (0, 2, 3, 1)).reshape(batch_size, -1, height, width)
    return out


if __name__ == "__main__":
    num_heads = 2
    dim_head = 32
    B, H, W = 2, 32, 32           # S = 1024 -> multiple q-tiles and kv-tiles exercised
    C = num_heads * dim_head
    x_shape = (B, C, H, W)

    key = jax.random.PRNGKey(0)
    kq, kk, kv = jax.random.split(key, 3)
    q = jax.random.normal(kq, (B, C, H, W), dtype=jnp.float32)
    k = jax.random.normal(kk, (B, C, H, W), dtype=jnp.float32)
    v = jax.random.normal(kv, (B, C, H, W), dtype=jnp.float32)

    out = multi_head_attention_normal(x_shape, q, k, v,
                                      num_heads=num_heads, dim_head=dim_head)
    out = jax.block_until_ready(out)

    ref = _reference(x_shape, q, k, v, num_heads=num_heads, dim_head=dim_head)
    assert out.shape == (B, C, H, W)
    # Tolerance accounts for the EUP approximate reciprocal (approx=True) and the
    # flash-style re-associated accumulation order.
    assert jnp.allclose(out, ref, atol=2e-3, rtol=2e-3), "mismatch vs reference"

    print("KERNEL_OK")
</pallas_src>

<mosaic_0001>
module attributes {stable_mosaic.version = 11 : i64} {
  func.func @_flash_attn_kernel(%arg0: i32, %arg1: i32, %arg2: i32, %arg3: memref<1x2x32x256xf32, #tpu.memory_space<vmem>>, %arg4: memref<1x2x32x512xf32, #tpu.memory_space<vmem>>, %arg5: memref<1x2x32x512xf32, #tpu.memory_space<vmem>>, %arg6: memref<1x2x32x256xf32, #tpu.memory_space<vmem>>, %arg7: memref<2x1x256xf32, #tpu.memory_space<vmem>>, %arg8: memref<2x1x256xf32, #tpu.memory_space<vmem>>, %arg9: memref<2x32x256xf32, #tpu.memory_space<vmem>>) attributes {dimension_semantics = [#tpu.dimension_semantics<parallel>, #tpu.dimension_semantics<parallel>, #tpu.dimension_semantics<arbitrary>], iteration_bounds = array<i64: 2, 4, 2>, scalar_prefetch = 0 : i64, scratch_operands = 3 : i64, tpu.core_type = #tpu.core_type<tc>, window_params = [{transform_indices = @transform_0, window_bounds = array<i64: 1, 2, 32, 256>}, {transform_indices = @transform_1, window_bounds = array<i64: 1, 2, 32, 512>}, {transform_indices = @transform_2, window_bounds = array<i64: 1, 2, 32, 512>}, {transform_indices = @transform_3, window_bounds = array<i64: 1, 2, 32, 256>}]} {
    %c0_i32 = arith.constant 0 : i32
    %0 = arith.cmpi eq, %arg2, %c0_i32 : i32
    %1 = arith.extui %0 : i1 to i32
    %c0_i32_0 = arith.constant 0 : i32
    %2 = arith.cmpi ne, %1, %c0_i32_0 : i32
    scf.if %2 {
      %cst_69 = arith.constant 0xFF800000 : f32
      %88 = vector.broadcast %cst_69 : f32 to vector<2x1x256xf32>
      %c0_70 = arith.constant 0 : index
      %c0_71 = arith.constant 0 : index
      %c0_72 = arith.constant 0 : index
      %89 = vector.load %arg7[%c0_70, %c0_71, %c0_72] : memref<2x1x256xf32, #tpu.memory_space<vmem>>, vector<2x1x256xf32>
      tpu.vector_store %arg7[%c0_70, %c0_71, %c0_72], %88 {strides = array<i32>} : memref<2x1x256xf32, #tpu.memory_space<vmem>>, vector<2x1x256xf32>,
      %cst_73 = arith.constant 0.000000e+00 : f32
      %90 = vector.broadcast %cst_73 : f32 to vector<2x1x256xf32>
      %c0_74 = arith.constant 0 : index
      %c0_75 = arith.constant 0 : index
      %c0_76 = arith.constant 0 : index
      %91 = vector.load %arg8[%c0_74, %c0_75, %c0_76] : memref<2x1x256xf32, #tpu.memory_space<vmem>>, vector<2x1x256xf32>
      tpu.vector_store %arg8[%c0_74, %c0_75, %c0_76], %90 {strides = array<i32>} : memref<2x1x256xf32, #tpu.memory_space<vmem>>, vector<2x1x256xf32>,
      %cst_77 = arith.constant 0.000000e+00 : f32
      %92 = vector.broadcast %cst_77 : f32 to vector<2x32x256xf32>
      %c0_78 = arith.constant 0 : index
      %c0_79 = arith.constant 0 : index
      %c0_80 = arith.constant 0 : index
      %93 = vector.load %arg9[%c0_78, %c0_79, %c0_80] : memref<2x32x256xf32, #tpu.memory_space<vmem>>, vector<2x32x256xf32>
      tpu.vector_store %arg9[%c0_78, %c0_79, %c0_80], %92 {strides = array<i32>} : memref<2x32x256xf32, #tpu.memory_space<vmem>>, vector<2x32x256xf32>,
    } else {
    }
    %c0 = arith.constant 0 : index
    %c0_1 = arith.constant 0 : index
    %c0_2 = arith.constant 0 : index
    %c0_3 = arith.constant 0 : index
    %3 = vector.load %arg3[%c0, %c0_1, %c0_2, %c0_3] : memref<1x2x32x256xf32, #tpu.memory_space<vmem>>, vector<1x1x32x256xf32>
    %4 = vector.shape_cast %3 : vector<1x1x32x256xf32> to vector<32x256xf32>
    %cst = arith.constant 0.176776692 : f32
    %5 = vector.broadcast %cst : f32 to vector<32x256xf32>
    %6 = arith.mulf %4, %5 : vector<32x256xf32>
    %c0_4 = arith.constant 0 : index
    %c0_5 = arith.constant 0 : index
    %c0_6 = arith.constant 0 : index
    %c0_7 = arith.constant 0 : index
    %7 = vector.load %arg4[%c0_4, %c0_5, %c0_6, %c0_7] : memref<1x2x32x512xf32, #tpu.memory_space<vmem>>, vector<1x1x32x512xf32>
    %8 = vector.shape_cast %7 : vector<1x1x32x512xf32> to vector<32x512xf32>
    %c0_8 = arith.constant 0 : index
    %c0_9 = arith.constant 0 : index
    %c0_10 = arith.constant 0 : index
    %c0_11 = arith.constant 0 : index
    %9 = vector.load %arg5[%c0_8, %c0_9, %c0_10, %c0_11] : memref<1x2x32x512xf32, #tpu.memory_space<vmem>>, vector<1x1x32x512xf32>
    %10 = vector.shape_cast %9 : vector<1x1x32x512xf32> to vector<32x512xf32>
    %11 = tpu.transpose %8, [1, 0] : vector<32x512xf32> -> vector<512x32xf32>
    %cst_12 = arith.constant dense<0.000000e+00> : vector<512x256xf32>
    %12 = tpu.matmul %11, %6, %cst_12 {dimension_numbers = #tpu.dot_dimension_numbers<[1], [0], [0], [1], [0, 0, 1, 1], [], []>} : vector<512x32xf32>, vector<32x256xf32>, vector<512x256xf32> -> vector<512x256xf32>
    %c0_13 = arith.constant 0 : index
    %c0_14 = arith.constant 0 : index
    %c0_15 = arith.constant 0 : index
    %13 = vector.load %arg7[%c0_13, %c0_14, %c0_15] : memref<2x1x256xf32, #tpu.memory_space<vmem>>, vector<1x1x256xf32>
    %14 = vector.shape_cast %13 : vector<1x1x256xf32> to vector<1x256xf32>
    %cst_16 = arith.constant dense<0xFF800000> : vector<256xf32>
    %15 = vector.multi_reduction <maximumf>, %12, %cst_16 [0] : vector<512x256xf32> to vector<256xf32>
    %16 = vector.shape_cast %15 : vector<256xf32> to vector<1x256xf32>
    %17 = arith.maximumf %14, %16 : vector<1x256xf32>
    %18 = arith.subf %14, %17 : vector<1x256xf32>
    %19 = math.exp %18 : vector<1x256xf32>
    %20 = vector.broadcast %17 : vector<1x256xf32> to vector<512x256xf32>
    %21 = arith.subf %12, %20 : vector<512x256xf32>
    %22 = math.exp %21 : vector<512x256xf32>
    %c0_17 = arith.constant 0 : index
    %c0_18 = arith.constant 0 : index
    %c0_19 = arith.constant 0 : index
    %23 = vector.load %arg8[%c0_17, %c0_18, %c0_19] : memref<2x1x256xf32, #tpu.memory_space<vmem>>, vector<1x1x256xf32>
    %24 = vector.shape_cast %23 : vector<1x1x256xf32> to vector<1x256xf32>
    %25 = arith.mulf %19, %24 : vector<1x256xf32>
    %cst_20 = arith.constant dense<0.000000e+00> : vector<256xf32>
    %26 = vector.multi_reduction <add>, %22, %cst_20 [0] : vector<512x256xf32> to vector<256xf32>
    %27 = vector.shape_cast %26 : vector<256xf32> to vector<1x256xf32>
    %28 = arith.addf %25, %27 : vector<1x256xf32>
    %c0_21 = arith.constant 0 : index
    %c0_22 = arith.constant 0 : index
    %c0_23 = arith.constant 0 : index
    %29 = vector.load %arg8[%c0_21, %c0_22, %c0_23] : memref<2x1x256xf32, #tpu.memory_space<vmem>>, vector<1x1x256xf32>
    %30 = vector.shape_cast %29 : vector<1x1x256xf32> to vector<1x256xf32>
    %31 = vector.shape_cast %28 : vector<1x256xf32> to vector<1x1x256xf32>
    tpu.vector_store %arg8[%c0_21, %c0_22, %c0_23], %31 {strides = array<i32>} : memref<2x1x256xf32, #tpu.memory_space<vmem>>, vector<1x1x256xf32>,
    %c0_24 = arith.constant 0 : index
    %c0_25 = arith.constant 0 : index
    %c0_26 = arith.constant 0 : index
    %32 = vector.load %arg9[%c0_24, %c0_25, %c0_26] : memref<2x32x256xf32, #tpu.memory_space<vmem>>, vector<1x32x256xf32>
    %33 = vector.shape_cast %32 : vector<1x32x256xf32> to vector<32x256xf32>
    %34 = vector.broadcast %19 : vector<1x256xf32> to vector<32x256xf32>
    %35 = arith.mulf %34, %33 : vector<32x256xf32>
    %cst_27 = arith.constant dense<0.000000e+00> : vector<32x256xf32>
    %36 = tpu.matmul %10, %22, %cst_27 {dimension_numbers = #tpu.dot_dimension_numbers<[1], [0], [0], [1], [0, 0, 1, 1], [], []>} : vector<32x512xf32>, vector<512x256xf32>, vector<32x256xf32> -> vector<32x256xf32>
    %37 = arith.addf %35, %36 : vector<32x256xf32>
    %c0_28 = arith.constant 0 : index
    %c0_29 = arith.constant 0 : index
    %c0_30 = arith.constant 0 : index
    %38 = vector.load %arg9[%c0_28, %c0_29, %c0_30] : memref<2x32x256xf32, #tpu.memory_space<vmem>>, vector<1x32x256xf32>
    %39 = vector.shape_cast %38 : vector<1x32x256xf32> to vector<32x256xf32>
    %40 = vector.shape_cast %37 : vector<32x256xf32> to vector<1x32x256xf32>
    tpu.vector_store %arg9[%c0_28, %c0_29, %c0_30], %40 {strides = array<i32>} : memref<2x32x256xf32, #tpu.memory_space<vmem>>, vector<1x32x256xf32>,
    %c0_31 = arith.constant 0 : index
    %c0_32 = arith.constant 0 : index
    %c0_33 = arith.constant 0 : index
    %41 = vector.load %arg7[%c0_31, %c0_32, %c0_33] : memref<2x1x256xf32, #tpu.memory_space<vmem>>, vector<1x1x256xf32>
    %42 = vector.shape_cast %41 : vector<1x1x256xf32> to vector<1x256xf32>
    %43 = vector.shape_cast %17 : vector<1x256xf32> to vector<1x1x256xf32>
    tpu.vector_store %arg7[%c0_31, %c0_32, %c0_33], %43 {strides = array<i32>} : memref<2x1x256xf32, #tpu.memory_space<vmem>>, vector<1x1x256xf32>,
    %c0_34 = arith.constant 0 : index
    %c1 = arith.constant 1 : index
    %c0_35 = arith.constant 0 : index
    %c0_36 = arith.constant 0 : index
    %44 = vector.load %arg3[%c0_34, %c1, %c0_35, %c0_36] : memref<1x2x32x256xf32, #tpu.memory_space<vmem>>, vector<1x1x32x256xf32>
    %45 = vector.shape_cast %44 : vector<1x1x32x256xf32> to vector<32x256xf32>
    %cst_37 = arith.constant 0.176776692 : f32
    %46 = vector.broadcast %cst_37 : f32 to vector<32x256xf32>
    %47 = arith.mulf %45, %46 : vector<32x256xf32>
    %c0_38 = arith.constant 0 : index
    %c1_39 = arith.constant 1 : index
    %c0_40 = arith.constant 0 : index
    %c0_41 = arith.constant 0 : index
    %48 = vector.load %arg4[%c0_38, %c1_39, %c0_40, %c0_41] : memref<1x2x32x512xf32, #tpu.memory_space<vmem>>, vector<1x1x32x512xf32>
    %49 = vector.shape_cast %48 : vector<1x1x32x512xf32> to vector<32x512xf32>
    %c0_42 = arith.constant 0 : index
    %c1_43 = arith.constant 1 : index
    %c0_44 = arith.constant 0 : index
    %c0_45 = arith.constant 0 : index
    %50 = vector.load %arg5[%c0_42, %c1_43, %c0_44, %c0_45] : memref<1x2x32x512xf32, #tpu.memory_space<vmem>>, vector<1x1x32x512xf32>
    %51 = vector.shape_cast %50 : vector<1x1x32x512xf32> to vector<32x512xf32>
    %52 = tpu.transpose %49, [1, 0] : vector<32x512xf32> -> vector<512x32xf32>
    %cst_46 = arith.constant dense<0.000000e+00> : vector<512x256xf32>
    %53 = tpu.matmul %52, %47, %cst_46 {dimension_numbers = #tpu.dot_dimension_numbers<[1], [0], [0], [1], [0, 0, 1, 1], [], []>} : vector<512x32xf32>, vector<32x256xf32>, vector<512x256xf32> -> vector<512x256xf32>
    %c1_47 = arith.constant 1 : index
    %c0_48 = arith.constant 0 : index
    %c0_49 = arith.constant 0 : index
    %54 = vector.load %arg7[%c1_47, %c0_48, %c0_49] : memref<2x1x256xf32, #tpu.memory_space<vmem>>, vector<1x1x256xf32>
    %55 = vector.shape_cast %54 : vector<1x1x256xf32> to vector<1x256xf32>
    %cst_50 = arith.constant dense<0xFF800000> : vector<256xf32>
    %56 = vector.multi_reduction <maximumf>, %53, %cst_50 [0] : vector<512x256xf32> to vector<256xf32>
    %57 = vector.shape_cast %56 : vector<256xf32> to vector<1x256xf32>
    %58 = arith.maximumf %55, %57 : vector<1x256xf32>
    %59 = arith.subf %55, %58 : vector<1x256xf32>
    %60 = math.exp %59 : vector<1x256xf32>
    %61 = vector.broadcast %58 : vector<1x256xf32> to vector<512x256xf32>
    %62 = arith.subf %53, %61 : vector<512x256xf32>
    %63 = math.exp %62 : vector<512x256xf32>
    %c1_51 = arith.constant 1 : index
    %c0_52 = arith.constant 0 : index
    %c0_53 = arith.constant 0 : index
    %64 = vector.load %arg8[%c1_51, %c0_52, %c0_53] : memref<2x1x256xf32, #tpu.memory_space<vmem>>, vector<1x1x256xf32>
    %65 = vector.shape_cast %64 : vector<1x1x256xf32> to vector<1x256xf32>
    %66 = arith.mulf %60, %65 : vector<1x256xf32>
    %cst_54 = arith.constant dense<0.000000e+00> : vector<256xf32>
    %67 = vector.multi_reduction <add>, %63, %cst_54 [0] : vector<512x256xf32> to vector<256xf32>
    %68 = vector.shape_cast %67 : vector<256xf32> to vector<1x256xf32>
    %69 = arith.addf %66, %68 : vector<1x256xf32>
    %c1_55 = arith.constant 1 : index
    %c0_56 = arith.constant 0 : index
    %c0_57 = arith.constant 0 : index
    %70 = vector.load %arg8[%c1_55, %c0_56, %c0_57] : memref<2x1x256xf32, #tpu.memory_space<vmem>>, vector<1x1x256xf32>
    %71 = vector.shape_cast %70 : vector<1x1x256xf32> to vector<1x256xf32>
    %72 = vector.shape_cast %69 : vector<1x256xf32> to vector<1x1x256xf32>
    tpu.vector_store %arg8[%c1_55, %c0_56, %c0_57], %72 {strides = array<i32>} : memref<2x1x256xf32, #tpu.memory_space<vmem>>, vector<1x1x256xf32>,
    %c1_58 = arith.constant 1 : index
    %c0_59 = arith.constant 0 : index
    %c0_60 = arith.constant 0 : index
    %73 = vector.load %arg9[%c1_58, %c0_59, %c0_60] : memref<2x32x256xf32, #tpu.memory_space<vmem>>, vector<1x32x256xf32>
    %74 = vector.shape_cast %73 : vector<1x32x256xf32> to vector<32x256xf32>
    %75 = vector.broadcast %60 : vector<1x256xf32> to vector<32x256xf32>
    %76 = arith.mulf %75, %74 : vector<32x256xf32>
    %cst_61 = arith.constant dense<0.000000e+00> : vector<32x256xf32>
    %77 = tpu.matmul %51, %63, %cst_61 {dimension_numbers = #tpu.dot_dimension_numbers<[1], [0], [0], [1], [0, 0, 1, 1], [], []>} : vector<32x512xf32>, vector<512x256xf32>, vector<32x256xf32> -> vector<32x256xf32>
    %78 = arith.addf %76, %77 : vector<32x256xf32>
    %c1_62 = arith.constant 1 : index
    %c0_63 = arith.constant 0 : index
    %c0_64 = arith.constant 0 : index
    %79 = vector.load %arg9[%c1_62, %c0_63, %c0_64] : memref<2x32x256xf32, #tpu.memory_space<vmem>>, vector<1x32x256xf32>
    %80 = vector.shape_cast %79 : vector<1x32x256xf32> to vector<32x256xf32>
    %81 = vector.shape_cast %78 : vector<32x256xf32> to vector<1x32x256xf32>
    tpu.vector_store %arg9[%c1_62, %c0_63, %c0_64], %81 {strides = array<i32>} : memref<2x32x256xf32, #tpu.memory_space<vmem>>, vector<1x32x256xf32>,
    %c1_65 = arith.constant 1 : index
    %c0_66 = arith.constant 0 : index
    %c0_67 = arith.constant 0 : index
    %82 = vector.load %arg7[%c1_65, %c0_66, %c0_67] : memref<2x1x256xf32, #tpu.memory_space<vmem>>, vector<1x1x256xf32>
    %83 = vector.shape_cast %82 : vector<1x1x256xf32> to vector<1x256xf32>
    %84 = vector.shape_cast %58 : vector<1x256xf32> to vector<1x1x256xf32>
    tpu.vector_store %arg7[%c1_65, %c0_66, %c0_67], %84 {strides = array<i32>} : memref<2x1x256xf32, #tpu.memory_space<vmem>>, vector<1x1x256xf32>,
    %c1_i32 = arith.constant 1 : i32
    %85 = arith.cmpi eq, %arg2, %c1_i32 : i32
    %86 = arith.extui %85 : i1 to i32
    %c0_i32_68 = arith.constant 0 : i32
    %87 = arith.cmpi ne, %86, %c0_i32_68 : i32
    scf.if %87 {
      %c0_69 = arith.constant 0 : index
      %c0_70 = arith.constant 0 : index
      %c0_71 = arith.constant 0 : index
      %88 = vector.load %arg8[%c0_69, %c0_70, %c0_71] : memref<2x1x256xf32, #tpu.memory_space<vmem>>, vector<2x1x256xf32>
      %89 = tpu.reciprocal %88 {approx = true} : vector<2x1x256xf32> -> vector<2x1x256xf32>
      %c0_72 = arith.constant 0 : index
      %c0_73 = arith.constant 0 : index
      %c0_74 = arith.constant 0 : index
      %90 = vector.load %arg9[%c0_72, %c0_73, %c0_74] : memref<2x32x256xf32, #tpu.memory_space<vmem>>, vector<2x32x256xf32>
      %91 = vector.broadcast %89 : vector<2x1x256xf32> to vector<2x32x256xf32>
      %92 = arith.mulf %90, %91 : vector<2x32x256xf32>
      %c0_75 = arith.constant 0 : index
      %c0_76 = arith.constant 0 : index
      %c0_77 = arith.constant 0 : index
      %c0_78 = arith.constant 0 : index
      %93 = vector.load %arg6[%c0_75, %c0_76, %c0_77, %c0_78] : memref<1x2x32x256xf32, #tpu.memory_space<vmem>>, vector<1x2x32x256xf32>
      %94 = vector.shape_cast %93 : vector<1x2x32x256xf32> to vector<2x32x256xf32>
      %95 = vector.shape_cast %92 : vector<2x32x256xf32> to vector<1x2x32x256xf32>
      tpu.vector_store %arg6[%c0_75, %c0_76, %c0_77, %c0_78], %95 {strides = array<i32>} : memref<1x2x32x256xf32, #tpu.memory_space<vmem>>, vector<1x2x32x256xf32>,
    } else {
    }
    return
  }
  func.func @transform_0(%arg0: i32, %arg1: i32, %arg2: i32) -> (i32, i32, i32, i32) {
    %c0_i32 = arith.constant 0 : i32
    %c0_i32_0 = arith.constant 0 : i32
    %c0_i32_1 = arith.constant 0 : i32
    return %arg0, %c0_i32, %c0_i32_0, %arg1 : i32, i32, i32, i32
  }
  func.func @transform_1(%arg0: i32, %arg1: i32, %arg2: i32) -> (i32, i32, i32, i32) {
    %c0_i32 = arith.constant 0 : i32
    %c0_i32_0 = arith.constant 0 : i32
    %c0_i32_1 = arith.constant 0 : i32
    return %arg0, %c0_i32, %c0_i32_0, %arg2 : i32, i32, i32, i32
  }
  func.func @transform_2(%arg0: i32, %arg1: i32, %arg2: i32) -> (i32, i32, i32, i32) {
    %c0_i32 = arith.constant 0 : i32
    %c0_i32_0 = arith.constant 0 : i32
    %c0_i32_1 = arith.constant 0 : i32
    return %arg0, %c0_i32, %c0_i32_0, %arg2 : i32, i32, i32, i32
  }
  func.func @transform_3(%arg0: i32, %arg1: i32, %arg2: i32) -> (i32, i32, i32, i32) {
    %c0_i32 = arith.constant 0 : i32
    %c0_i32_0 = arith.constant 0 : i32
    %c0_i32_1 = arith.constant 0 : i32
    return %arg0, %c0_i32, %c0_i32_0, %arg1 : i32, i32, i32, i32
  }
}

</mosaic_0001>

<llo_original>
// kernel: tpu_custom_call.1
$region0: #{tpu_custom_call.1}
  #allocation0 [shape = 'u32[]', space=smem, size = 0x4, offset = 0x4, fixed_abs, tag = 'smem constant byte address 0x4 - core index']
  #allocation1 [shape = 'u32[72,128]{1,0:T(1,128)}', space=vmem, size = 0x9000, scoped, tag = 'internal scratch']
  #allocation2 [shape = 'f32[2,1,256]{2,1,0:T(1,128)}', space=vmem, size = 0x800, scoped, tag = 'scratch operand']
  #allocation3 [shape = 'f32[2,1,256]{2,1,0:T(1,128)}', space=vmem, size = 0x800, scoped, tag = 'scratch operand']
  #allocation4 [shape = 'f32[2,32,256]{2,1,0:T(8,128)}', space=vmem, size = 0x10000, scoped, tag = 'scratch operand']
  %s0 = inlined_call_operand.hbm [shape: f32[2,2,32,1024], index: 0, kind: input, shape index: {}]
  %s1 = inlined_call_operand.hbm [shape: f32[2,2,32,1024], index: 1, kind: input, shape index: {}]
  %s2 = inlined_call_operand.hbm [shape: f32[2,2,32,1024], index: 2, kind: input, shape index: {}]
  %s3 = inlined_call_operand.hbm [shape: f32[2,2,32,1024], index: 3, kind: output, shape index: {}]
  %s4 = sld [smem:[#allocation0]]
  $region65: #{tpu_custom_call.1} parent=0
    _
  %s6 = ssub.s32 1, %s4
  %s7 = scalar_select 0, %s6, %s4
  $region1: #{tpu_custom_call.1} parent=0
    #allocation5 [shape = 'u8[131072]{0}', space=vmem, size = 0x20000, scoped, tag = 'input window, operand 0']
    #allocation6 [shape = 's32[2]{0}', space=sflag, size = 0x8, scoped, tag = 'scoped memory for tpu_custom_call.1']
    #allocation7 [shape = 's32[2]{0}', space=sflag, size = 0x8, scoped, tag = 'scoped memory for tpu_custom_call.1']
    #allocation8 [shape = 'u8[262144]{0}', space=vmem, size = 0x40000, scoped, tag = 'input window, operand 1']
    #allocation9 [shape = 's32[2]{0}', space=sflag, size = 0x8, scoped, tag = 'scoped memory for tpu_custom_call.1']
    #allocation10 [shape = 'u8[262144]{0}', space=vmem, size = 0x40000, scoped, tag = 'input window, operand 2']
    #allocation11 [shape = 'u8[131072]{0}', space=vmem, size = 0x20000, scoped, tag = 'output window, operand 0']
    %8 = vsyncpa [#allocation6], 0
    %s9 = scalar_lea.sflag [#allocation6], 1
    %10 = vsyncpa %s9, 0
    %11 = vsyncpa [#allocation9], 0
    %s12 = scalar_lea.sflag [#allocation9], 1
    %13 = vsyncpa %s12, 0
    %14 = vsyncpa [#allocation7], 0
    %s15 = scalar_lea.sflag [#allocation7], 1
    %16 = vsyncpa %s15, 0
    loop: start=0, step=1, limit=18
    $region2: #{tpu_custom_call.1} parent=1 // loop_pre_header
      _
    $region3: #{tpu_custom_call.1} parent=1 // loop_header
      %s18 = sphi 0, %s22
      %p19 = scmp.ge.s32.totalorder %s18, 18
      %s25 = sphi 0, %s44
      %s26 = sphi 0, %s40
      %s27 = sphi 0, %s36
      %s28 = sphi 0, %s25
      %s29 = sphi 0, %s26
      %s30 = sphi 0, %s27
      %s31 = sphi 0, %s28
      %s32 = sphi 0, %s29
      %s33 = sphi 0, %s30
      %s49 = sphi 0, %s51
      %s52 = sphi 0, %s49
      %s53 = sphi 0, %s52
      %s69 = sphi 0, %s53
      %s77 = sphi 0, %s79
      %s80 = sphi 0, %s77
      %s81 = sphi 0, %s80
      %s97 = sphi 0, %s81
      %s105 = sphi 0, %s107
      %s108 = sphi 0, %s105
      %s109 = sphi 0, %s108
      %s125 = sphi 0, %s109
      %s133 = sphi 0, %s135
      %s136 = sphi 0, %s133
      %s137 = sphi 0, %s136
      %s153 = sphi 0, %s137
    $region4: #{tpu_custom_call.1} parent=1 // loop_header_branch
      %21 = sbr.rel (%p19) target = $region8
    $region5: #{tpu_custom_call.1} parent=1 // loop_body
      %s23 = ssub.s32 %s18, 1
      %s24 = ssub.s32 %s18, 2
      %s34 = sadd.s32 1, %s27
      %p35 = scmp.ge.s32.totalorder %s34, 2
      %s36 = scalar_select %p35, 0, %s34
      %s37 = sadd.s32 1, %s26
      %s38 = scalar_select %p35, %s37, %s26
      %p39 = scmp.ge.s32.totalorder %s38, 4
      %s40 = scalar_select %p39, 0, %s38
      %s41 = sadd.s32 1, %s25
      %s42 = scalar_select %p39, %s41, %s25
      %p43 = scmp.ge.s32.totalorder %s42, 2
      %s44 = scalar_select %p43, 0, %s42
      %s45 = ssub.s32 %s25, %s44
      %s46 = ssub.s32 %s26, %s40
      %s47 = sor.u32 %s45, %s46
      %p48 = scmp.eq.s32.totalorder %s47, 0
      %s50 = sadd.s32 %s49, 1
      %s51 = scalar_select %p48, %s49, %s50
      %p54 = pneg %p48
      %p55 = scmp.eq.s32.totalorder %s18, 15
      %p56 = por %p54, %p55
      %p57 = scmp.ne.s32.totalorder %s49, %s52
      %p58 = scmp.eq.s32.totalorder %s18, 0
      %p59 = por %p57, %p58
      %p60 = scmp.ne.s32.totalorder %s49, %s52
      %p61 = scmp.eq.s32.totalorder %s23, 15
      %p62 = por %p60, %p61
      %p63 = scmp.ne.s32.totalorder %s52, %s53
      %p64 = scmp.eq.s32.totalorder %s23, 0
      %p65 = por %p63, %p64
      %p66 = scmp.ne.s32.totalorder %s52, %s53
      %p67 = scmp.eq.s32.totalorder %s24, 15
      %p68 = por %p66, %p67
      %p70 = scmp.ne.s32.totalorder %s53, %s69
      %p71 = scmp.eq.s32.totalorder %s24, 0
      %p72 = por %p70, %p71
      %s73 = ssub.s32 %s25, %s44
      %s74 = ssub.s32 %s27, %s36
      %s75 = sor.u32 %s73, %s74
      %p76 = scmp.eq.s32.totalorder %s75, 0
      %s78 = sadd.s32 %s77, 1
      %s79 = scalar_select %p76, %s77, %s78
      %p82 = pneg %p76
      %p83 = scmp.eq.s32.totalorder %s18, 15
      %p84 = por %p82, %p83
      %p85 = scmp.ne.s32.totalorder %s77, %s80
      %p86 = scmp.eq.s32.totalorder %s18, 0
      %p87 = por %p85, %p86
      %p88 = scmp.ne.s32.totalorder %s77, %s80
      %p89 = scmp.eq.s32.totalorder %s23, 15
      %p90 = por %p88, %p89
      %p91 = scmp.ne.s32.totalorder %s80, %s81
      %p92 = scmp.eq.s32.totalorder %s23, 0
      %p93 = por %p91, %p92
      %p94 = scmp.ne.s32.totalorder %s80, %s81
      %p95 = scmp.eq.s32.totalorder %s24, 15
      %p96 = por %p94, %p95
      %p98 = scmp.ne.s32.totalorder %s81, %s97
      %p99 = scmp.eq.s32.totalorder %s24, 0
      %p100 = por %p98, %p99
      %s101 = ssub.s32 %s25, %s44
      %s102 = ssub.s32 %s27, %s36
      %s103 = sor.u32 %s101, %s102
      %p104 = scmp.eq.s32.totalorder %s103, 0
      %s106 = sadd.s32 %s105, 1
      %s107 = scalar_select %p104, %s105, %s106
      %p110 = pneg %p104
      %p111 = scmp.eq.s32.totalorder %s18, 15
      %p112 = por %p110, %p111
      %p113 = scmp.ne.s32.totalorder %s105, %s108
      %p114 = scmp.eq.s32.totalorder %s18, 0
      %p115 = por %p113, %p114
      %p116 = scmp.ne.s32.totalorder %s105, %s108
      %p117 = scmp.eq.s32.totalorder %s23, 15
      %p118 = por %p116, %p117
      %p119 = scmp.ne.s32.totalorder %s108, %s109
      %p120 = scmp.eq.s32.totalorder %s23, 0
      %p121 = por %p119, %p120
      %p122 = scmp.ne.s32.totalorder %s108, %s109
      %p123 = scmp.eq.s32.totalorder %s24, 15
      %p124 = por %p122, %p123
      %p126 = scmp.ne.s32.totalorder %s109, %s125
      %p127 = scmp.eq.s32.totalorder %s24, 0
      %p128 = por %p126, %p127
      %s129 = ssub.s32 %s25, %s44
      %s130 = ssub.s32 %s26, %s40
      %s131 = sor.u32 %s129, %s130
      %p132 = scmp.eq.s32.totalorder %s131, 0
      %s134 = sadd.s32 %s133, 1
      %s135 = scalar_select %p132, %s133, %s134
      %p138 = pneg %p132
      %p139 = scmp.eq.s32.totalorder %s18, 15
      %p140 = por %p138, %p139
      %p141 = scmp.ne.s32.totalorder %s133, %s136
      %p142 = scmp.eq.s32.totalorder %s18, 0
      %p143 = por %p141, %p142
      %p144 = scmp.ne.s32.totalorder %s133, %s136
      %p145 = scmp.eq.s32.totalorder %s23, 15
      %p146 = por %p144, %p145
      %p147 = scmp.ne.s32.totalorder %s136, %s137
      %p148 = scmp.eq.s32.totalorder %s23, 0
      %p149 = por %p147, %p148
      %p150 = scmp.ne.s32.totalorder %s136, %s137
      %p151 = scmp.eq.s32.totalorder %s24, 15
      %p152 = por %p150, %p151
      %p154 = scmp.ne.s32.totalorder %s137, %s153
      %p155 = scmp.eq.s32.totalorder %s24, 0
      %p156 = por %p154, %p155
      %p157 = scmp.le.s32.totalorder 1, %s18
      %p158 = scmp.lt.s32.totalorder %s18, 17
      %p159 = pnand %p157, %p158
      %p160 = pneg %p159
      // Predicated region
      $region9: #{tpu_custom_call.1} parent=5 // pred_check
        _
      $region10: #{tpu_custom_call.1} parent=5 // pred_check_branch
        %162 = sbr.rel (%p159) target = $region12
      $region11: #{tpu_custom_call.1} parent=5 // pred_region
        %s163 = ssub.s32 %s18, 1
      $region12: #{tpu_custom_call.1} parent=5 // pred_fallthru
        _
      %p164 = scmp.lt.s32.totalorder %s18, 16
      // Predicated region
      $region13: #{tpu_custom_call.1} parent=5 // pred_check
        %p165 = pneg %p164
      $region14: #{tpu_custom_call.1} parent=5 // pred_check_branch
        %167 = sbr.rel (%p165) target = $region16
      $region15: #{tpu_custom_call.1} parent=5 // pred_region
        // Predicated region
        $region17: #{tpu_custom_call.1} parent=15 // pred_check
          %p168 = pneg %p59
        $region18: #{tpu_custom_call.1} parent=15 // pred_check_branch
          %170 = sbr.rel (%p168) target = $region20
        $region19: #{tpu_custom_call.1} parent=15 // pred_region
          %s171 = sand.u32 %s49, 1
          %s172 = scalar_lea.sflag [#allocation6], %s171
          %s173 = sand.u32 %s49, 1
          %s174 = smul.addr %s173, 128
          %s175 = scalar_lea.vmem [#allocation5], %s174
          %s176 = smul.u32 2, %s26
          %178 = vsyncadd %s172, 0
          %s179 = smul.addr %s25, 64
          %s180 = sadd.s32 %s176, %s179
          %s181 = smul.addr %s180, 8
          %s182 = scalar_lea.hbm %s0, %s181
          %s183 = sshll.u32 %s182, 4
          %s184 = int_to_ptr.hbm [resolvable:$true] %s183
          %s185 = sshll.u32 %s175, 4
          %s186 = int_to_ptr.vmem [resolvable:$true] %s185
          %191 = dma.hbm_to_vmem [thread:$0]  %s184, 2048, %s186, %s172, 1024, 256, 16
        $region20: #{tpu_custom_call.1} parent=15 // pred_fallthru
          _
        // Predicated region
        $region21: #{tpu_custom_call.1} parent=15 // pred_check
          %p192 = pneg %p87
        $region22: #{tpu_custom_call.1} parent=15 // pred_check_branch
          %194 = sbr.rel (%p192) target = $region24
        $region23: #{tpu_custom_call.1} parent=15 // pred_region
          %s195 = sand.u32 %s18, 1
          %s196 = scalar_lea.sflag [#allocation9], %s195
          %s197 = sand.u32 %s77, 1
          %s198 = smul.addr %s197, 256
          %s199 = scalar_lea.vmem [#allocation8], %s198
          %s200 = smul.u32 4, %s27
          %202 = vsyncadd %s196, 0
          %s203 = smul.addr %s25, 64
          %s204 = sadd.s32 %s200, %s203
          %s205 = smul.addr %s204, 8
          %s206 = scalar_lea.hbm %s1, %s205
          %s207 = sshll.u32 %s206, 4
          %s208 = int_to_ptr.hbm [resolvable:$true] %s207
          %s209 = sshll.u32 %s199, 4
          %s210 = int_to_ptr.vmem [resolvable:$true] %s209
          %215 = dma.hbm_to_vmem [thread:$0]  %s208, 4096, %s210, %s196, 1024, 512, 32
        $region24: #{tpu_custom_call.1} parent=15 // pred_fallthru
          _
        // Predicated region
        $region25: #{tpu_custom_call.1} parent=15 // pred_check
          %p216 = pneg %p115
        $region26: #{tpu_custom_call.1} parent=15 // pred_check_branch
          %218 = sbr.rel (%p216) target = $region28
        $region27: #{tpu_custom_call.1} parent=15 // pred_region
          %s219 = sand.u32 %s18, 1
          %s220 = scalar_lea.sflag [#allocation9], %s219
          %s221 = sand.u32 %s105, 1
          %s222 = smul.addr %s221, 256
          %s223 = scalar_lea.vmem [#allocation10], %s222
          %s224 = smul.u32 4, %s27
          %226 = vsyncadd %s220, 0
          %s227 = smul.addr %s25, 64
          %s228 = sadd.s32 %s224, %s227
          %s229 = smul.addr %s228, 8
          %s230 = scalar_lea.hbm %s2, %s229
          %s231 = sshll.u32 %s230, 4
          %s232 = int_to_ptr.hbm [resolvable:$true] %s231
          %s233 = sshll.u32 %s223, 4
          %s234 = int_to_ptr.vmem [resolvable:$true] %s233
          %239 = dma.hbm_to_vmem [thread:$0]  %s232, 4096, %s234, %s220, 1024, 512, 32
        $region28: #{tpu_custom_call.1} parent=15 // pred_fallthru
          _
      $region16: #{tpu_custom_call.1} parent=5 // pred_fallthru
        _
      %p240 = scmp.le.s32.totalorder 1, %s18
      %p241 = scmp.lt.s32.totalorder %s18, 17
      %p242 = pnand %p240, %p241
      %p243 = pneg %p242
      // Predicated region
      $region29: #{tpu_custom_call.1} parent=5 // pred_check
        _
      $region30: #{tpu_custom_call.1} parent=5 // pred_check_branch
        %245 = sbr.rel (%p242) target = $region32
      $region31: #{tpu_custom_call.1} parent=5 // pred_region
        %s246 = ssub.s32 %s18, 1
        %s247 = sand.u32 %s52, 1
        %s248 = scalar_lea.sflag [#allocation6], %s247
        %s249 = sand.u32 %s52, 1
        %s250 = smul.addr %s249, 128
        %s251 = scalar_lea.vmem [#allocation5], %s250
        // Predicated region
        $region33: #{tpu_custom_call.1} parent=31 // pred_check
          %p252 = pneg %p65
        $region34: #{tpu_custom_call.1} parent=31 // pred_check_branch
          %254 = sbr.rel (%p252) target = $region36
        $region35: #{tpu_custom_call.1} parent=31 // pred_region
          %256 = dma.done %s248, 2048
        $region36: #{tpu_custom_call.1} parent=31 // pred_fallthru
          _
        %s257 = sand.u32 %s23, 1
        %s258 = scalar_lea.sflag [#allocation9], %s257
        %s259 = sand.u32 %s80, 1
        %s260 = smul.addr %s259, 256
        %s261 = scalar_lea.vmem [#allocation8], %s260
        // Predicated region
        $region37: #{tpu_custom_call.1} parent=31 // pred_check
          %p262 = pneg %p93
        $region38: #{tpu_custom_call.1} parent=31 // pred_check_branch
          %264 = sbr.rel (%p262) target = $region40
        $region39: #{tpu_custom_call.1} parent=31 // pred_region
          %266 = dma.done %s258, 4096
        $region40: #{tpu_custom_call.1} parent=31 // pred_fallthru
          _
        %s267 = sand.u32 %s23, 1
        %s268 = scalar_lea.sflag [#allocation9], %s267
        %s269 = sand.u32 %s108, 1
        %s270 = smul.addr %s269, 256
        %s271 = scalar_lea.vmem [#allocation10], %s270
        // Predicated region
        $region41: #{tpu_custom_call.1} parent=31 // pred_check
          %p272 = pneg %p121
        $region42: #{tpu_custom_call.1} parent=31 // pred_check_branch
          %274 = sbr.rel (%p272) target = $region44
        $region43: #{tpu_custom_call.1} parent=31 // pred_region
          %276 = dma.done %s268, 4096
        $region44: #{tpu_custom_call.1} parent=31 // pred_fallthru
          _
        %s277 = sand.u32 %s52, 1
        %s278 = scalar_lea.sflag [#allocation6], %s277
        %s279 = sand.u32 %s52, 1
        %s280 = smul.addr %s279, 128
        %s281 = scalar_lea.vmem [#allocation5], %s280
        %p282 = pneg %p65
        %p283 = pneg %p62
        %s284 = sand.u32 %s23, 1
        %s285 = scalar_lea.sflag [#allocation9], %s284
        %s286 = sand.u32 %s80, 1
        %s287 = smul.addr %s286, 256
        %s288 = scalar_lea.vmem [#allocation8], %s287
        %p289 = pneg %p93
        %p290 = pneg %p90
        %s291 = sand.u32 %s23, 1
        %s292 = scalar_lea.sflag [#allocation9], %s291
        %s293 = sand.u32 %s108, 1
        %s294 = smul.addr %s293, 256
        %s295 = scalar_lea.vmem [#allocation10], %s294
        %p296 = pneg %p121
        %p297 = pneg %p118
        %p298 = pneg %p149
        %p299 = pneg %p146
        %s300 = sand.u32 %s136, 1
        %s301 = scalar_lea.sflag [#allocation7], %s300
        %s302 = sand.u32 %s136, 1
        %s303 = smul.addr %s302, 128
        %s304 = scalar_lea.vmem [#allocation11], %s303
        %s305 = smul.u32 2, %s29
        %s306 = smul.u32 4, %s30
        %s307 = smul.u32 4, %s30
        %s308 = smul.u32 2, %s29
        %p309 = scmp.eq.s32.totalorder %s30, 0
        // Predicated region
        $region45: #{tpu_custom_call.1} parent=31 // pred_check
          %p310 = pneg %p309
        $region46: #{tpu_custom_call.1} parent=31 // pred_check_branch
          %312 = sbr.rel (%p310) target = $region48
        $region47: #{tpu_custom_call.1} parent=31 // pred_region
          %v313 = vlaneseq
          %vm314 = vcmp.ge.s32.totalorder %v313, 0
          %vm315 = vcmp.lt.s32.totalorder %v313, 256
          %vm316 = vmand %vm314, %vm315
          %317 = vst.msk [vmem:[#allocation2] sm:$0x3] %vm316, -inf
          %318 = vst.msk [vmem:[#allocation2 + $0x2] sm:$0x3] %vm316, -inf
          %319 = vst.msk [vmem:[#allocation3] sm:$0x3] %vm316, 0.0
          %320 = vst.msk [vmem:[#allocation3 + $0x2] sm:$0x3] %vm316, 0.0
          %321 = vst [vmem:[#allocation4] sm:$0xff] 0.0
          %322 = vst [vmem:[#allocation4 + $0x8] sm:$0xff] 0.0
          %323 = vst [vmem:[#allocation4 + $0x10] sm:$0xff] 0.0
          %324 = vst [vmem:[#allocation4 + $0x18] sm:$0xff] 0.0
          %325 = vst [vmem:[#allocation4 + $0x20] sm:$0xff] 0.0
          %326 = vst [vmem:[#allocation4 + $0x28] sm:$0xff] 0.0
          %327 = vst [vmem:[#allocation4 + $0x30] sm:$0xff] 0.0
          %328 = vst [vmem:[#allocation4 + $0x38] sm:$0xff] 0.0
          %329 = vst [vmem:[#allocation4 + $0x40] sm:$0xff] 0.0
          %330 = vst [vmem:[#allocation4 + $0x48] sm:$0xff] 0.0
          %331 = vst [vmem:[#allocation4 + $0x50] sm:$0xff] 0.0
          %332 = vst [vmem:[#allocation4 + $0x58] sm:$0xff] 0.0
          %333 = vst [vmem:[#allocation4 + $0x60] sm:$0xff] 0.0
          %334 = vst [vmem:[#allocation4 + $0x68] sm:$0xff] 0.0
          %335 = vst [vmem:[#allocation4 + $0x70] sm:$0xff] 0.0
          %336 = vst [vmem:[#allocation4 + $0x78] sm:$0xff] 0.0
        $region48: #{tpu_custom_call.1} parent=31 // pred_fallthru
          _
        %v337 = vld [vmem:[%s251] sm:$0xff]
        %v338 = vld [vmem:[%s251 + $0x8] sm:$0xff]
        %v339 = vld [vmem:[%s251 + $0x10] sm:$0xff]
        %v340 = vld [vmem:[%s251 + $0x18] sm:$0xff]
        %v341 = vld [vmem:[%s251 + $0x20] sm:$0xff]
        %v342 = vld [vmem:[%s251 + $0x28] sm:$0xff]
        %v343 = vld [vmem:[%s251 + $0x30] sm:$0xff]
        %v344 = vld [vmem:[%s251 + $0x38] sm:$0xff]
        %v345 = vmul.f32 %v337, 0.17677669
        %v346 = vmul.f32 %v338, 0.17677669
        %v347 = vmul.f32 %v339, 0.17677669
        %v348 = vmul.f32 %v340, 0.17677669
        %v349 = vmul.f32 %v341, 0.17677669
        %v350 = vmul.f32 %v342, 0.17677669
        %v351 = vmul.f32 %v343, 0.17677669
        %v352 = vmul.f32 %v344, 0.17677669
        %v353 = vld [vmem:[%s261] sm:$0xff]
        %v354 = vld [vmem:[%s261 + $0x8] sm:$0xff]
        %v355 = vld [vmem:[%s261 + $0x10] sm:$0xff]
        %v356 = vld [vmem:[%s261 + $0x18] sm:$0xff]
        %v357 = vld [vmem:[%s261 + $0x20] sm:$0xff]
        %v358 = vld [vmem:[%s261 + $0x28] sm:$0xff]
        %v359 = vld [vmem:[%s261 + $0x30] sm:$0xff]
        %v360 = vld [vmem:[%s261 + $0x38] sm:$0xff]
        %v361 = vld [vmem:[%s261 + $0x40] sm:$0xff]
        %v362 = vld [vmem:[%s261 + $0x48] sm:$0xff]
        %v363 = vld [vmem:[%s261 + $0x50] sm:$0xff]
        %v364 = vld [vmem:[%s261 + $0x58] sm:$0xff]
        %v365 = vld [vmem:[%s261 + $0x60] sm:$0xff]
        %v366 = vld [vmem:[%s261 + $0x68] sm:$0xff]
        %v367 = vld [vmem:[%s261 + $0x70] sm:$0xff]
        %v368 = vld [vmem:[%s261 + $0x78] sm:$0xff]
        %v369 = vld [vmem:[%s271] sm:$0xff]
        %v370 = vld [vmem:[%s271 + $0x8] sm:$0xff]
        %v371 = vld [vmem:[%s271 + $0x10] sm:$0xff]
        %v372 = vld [vmem:[%s271 + $0x18] sm:$0xff]
        %v373 = vld [vmem:[%s271 + $0x20] sm:$0xff]
        %v374 = vld [vmem:[%s271 + $0x28] sm:$0xff]
        %v375 = vld [vmem:[%s271 + $0x30] sm:$0xff]
        %v376 = vld [vmem:[%s271 + $0x38] sm:$0xff]
        %v377 = vld [vmem:[%s271 + $0x40] sm:$0xff]
        %v378 = vld [vmem:[%s271 + $0x48] sm:$0xff]
        %v379 = vld [vmem:[%s271 + $0x50] sm:$0xff]
        %v380 = vld [vmem:[%s271 + $0x58] sm:$0xff]
        %v381 = vld [vmem:[%s271 + $0x60] sm:$0xff]
        %v382 = vld [vmem:[%s271 + $0x68] sm:$0xff]
        %v383 = vld [vmem:[%s271 + $0x70] sm:$0xff]
        %v384 = vld [vmem:[%s271 + $0x78] sm:$0xff]
        %385 = vxpose.xlu0.b32.start [1/16] %v353, 128
        %386 = vxpose.xlu0.b32.cont [2/16] %v357, 128
        %387 = vxpose.xlu0.b32.cont [3/16] %v361, 128
        %388 = vxpose.xlu0.b32.cont [4/16] %v365, 128
        %389 = vxpose.xlu0.b32.cont [5/16] 0.0, 128
        %390 = vxpose.xlu0.b32.cont [6/16] 0.0, 128
        %391 = vxpose.xlu0.b32.cont [7/16] 0.0, 128
        %392 = vxpose.xlu0.b32.cont [8/16] 0.0, 128
        %393 = vxpose.xlu0.b32.cont [9/16] 0.0, 128
        %394 = vxpose.xlu0.b32.cont [10/16] 0.0, 128
        %395 = vxpose.xlu0.b32.cont [11/16] 0.0, 128
        %396 = vxpose.xlu0.b32.cont [12/16] 0.0, 128
        %397 = vxpose.xlu0.b32.cont [13/16] 0.0, 128
        %398 = vxpose.xlu0.b32.cont [14/16] 0.0, 128
        %399 = vxpose.xlu0.b32.cont [15/16] 0.0, 128
        %400 = vxpose.xlu0.b32.end [16/16] 0.0, 128
        %v401 = vpop.trf.xlu0
        %v402 = vpop.trf.xlu0
        %v403 = vpop.trf.xlu0
        %v404 = vpop.trf.xlu0
        %v405 = vpop.trf.xlu0
        %v406 = vpop.trf.xlu0
        %v407 = vpop.trf.xlu0
        %v408 = vpop.trf.xlu0
        %v409 = vpop.trf.xlu0
        %v410 = vpop.trf.xlu0
        %v411 = vpop.trf.xlu0
        %v412 = vpop.trf.xlu0
        %v413 = vpop.trf.xlu0
        %v414 = vpop.trf.xlu0
        %v415 = vpop.trf.xlu0
        %v416 = vpop.trf.xlu0
        %417 = vxpose.xlu0.b32.start [1/16] %v354, 128
        %418 = vxpose.xlu0.b32.cont [2/16] %v358, 128
        %419 = vxpose.xlu0.b32.cont [3/16] %v362, 128
        %420 = vxpose.xlu0.b32.cont [4/16] %v366, 128
        %421 = vxpose.xlu0.b32.cont [5/16] 0.0, 128
        %422 = vxpose.xlu0.b32.cont [6/16] 0.0, 128
        %423 = vxpose.xlu0.b32.cont [7/16] 0.0, 128
        %424 = vxpose.xlu0.b32.cont [8/16] 0.0, 128
        %425 = vxpose.xlu0.b32.cont [9/16] 0.0, 128
        %426 = vxpose.xlu0.b32.cont [10/16] 0.0, 128
        %427 = vxpose.xlu0.b32.cont [11/16] 0.0, 128
        %428 = vxpose.xlu0.b32.cont [12/16] 0.0, 128
        %429 = vxpose.xlu0.b32.cont [13/16] 0.0, 128
        %430 = vxpose.xlu0.b32.cont [14/16] 0.0, 128
        %431 = vxpose.xlu0.b32.cont [15/16] 0.0, 128
        %432 = vxpose.xlu0.b32.end [16/16] 0.0, 128
        %v433 = vpop.trf.xlu0
        %v434 = vpop.trf.xlu0
        %v435 = vpop.trf.xlu0
        %v436 = vpop.trf.xlu0
        %v437 = vpop.trf.xlu0
        %v438 = vpop.trf.xlu0
        %v439 = vpop.trf.xlu0
        %v440 = vpop.trf.xlu0
        %v441 = vpop.trf.xlu0
        %v442 = vpop.trf.xlu0
        %v443 = vpop.trf.xlu0
        %v444 = vpop.trf.xlu0
        %v445 = vpop.trf.xlu0
        %v446 = vpop.trf.xlu0
        %v447 = vpop.trf.xlu0
        %v448 = vpop.trf.xlu0
        %449 = vxpose.xlu0.b32.start [1/16] %v355, 128
        %450 = vxpose.xlu0.b32.cont [2/16] %v359, 128
        %451 = vxpose.xlu0.b32.cont [3/16] %v363, 128
        %452 = vxpose.xlu0.b32.cont [4/16] %v367, 128
        %453 = vxpose.xlu0.b32.cont [5/16] 0.0, 128
        %454 = vxpose.xlu0.b32.cont [6/16] 0.0, 128
        %455 = vxpose.xlu0.b32.cont [7/16] 0.0, 128
        %456 = vxpose.xlu0.b32.cont [8/16] 0.0, 128
        %457 = vxpose.xlu0.b32.cont [9/16] 0.0, 128
        %458 = vxpose.xlu0.b32.cont [10/16] 0.0, 128
        %459 = vxpose.xlu0.b32.cont [11/16] 0.0, 128
        %460 = vxpose.xlu0.b32.cont [12/16] 0.0, 128
        %461 = vxpose.xlu0.b32.cont [13/16] 0.0, 128
        %462 = vxpose.xlu0.b32.cont [14/16] 0.0, 128
        %463 = vxpose.xlu0.b32.cont [15/16] 0.0, 128
        %464 = vxpose.xlu0.b32.end [16/16] 0.0, 128
        %v465 = vpop.trf.xlu0
        %v466 = vpop.trf.xlu0
        %v467 = vpop.trf.xlu0
        %v468 = vpop.trf.xlu0
        %v469 = vpop.trf.xlu0
        %v470 = vpop.trf.xlu0
        %v471 = vpop.trf.xlu0
        %v472 = vpop.trf.xlu0
        %v473 = vpop.trf.xlu0
        %v474 = vpop.trf.xlu0
        %v475 = vpop.trf.xlu0
        %v476 = vpop.trf.xlu0
        %v477 = vpop.trf.xlu0
        %v478 = vpop.trf.xlu0
        %v479 = vpop.trf.xlu0
        %v480 = vpop.trf.xlu0
        %481 = vxpose.xlu0.b32.start [1/16] %v356, 128
        %482 = vxpose.xlu0.b32.cont [2/16] %v360, 128
        %483 = vxpose.xlu0.b32.cont [3/16] %v364, 128
        %484 = vxpose.xlu0.b32.cont [4/16] %v368, 128
        %485 = vxpose.xlu0.b32.cont [5/16] 0.0, 128
        %486 = vxpose.xlu0.b32.cont [6/16] 0.0, 128
        %487 = vxpose.xlu0.b32.cont [7/16] 0.0, 128
        %488 = vxpose.xlu0.b32.cont [8/16] 0.0, 128
        %489 = vxpose.xlu0.b32.cont [9/16] 0.0, 128
        %490 = vxpose.xlu0.b32.cont [10/16] 0.0, 128
        %491 = vxpose.xlu0.b32.cont [11/16] 0.0, 128
        %492 = vxpose.xlu0.b32.cont [12/16] 0.0, 128
        %493 = vxpose.xlu0.b32.cont [13/16] 0.0, 128
        %494 = vxpose.xlu0.b32.cont [14/16] 0.0, 128
        %495 = vxpose.xlu0.b32.cont [15/16] 0.0, 128
        %496 = vxpose.xlu0.b32.end [16/16] 0.0, 128
        %v497 = vpop.trf.xlu0
        %v498 = vpop.trf.xlu0
        %v499 = vpop.trf.xlu0
        %v500 = vpop.trf.xlu0
        %v501 = vpop.trf.xlu0
        %v502 = vpop.trf.xlu0
        %v503 = vpop.trf.xlu0
        %v504 = vpop.trf.xlu0
        %v505 = vpop.trf.xlu0
        %v506 = vpop.trf.xlu0
        %v507 = vpop.trf.xlu0
        %v508 = vpop.trf.xlu0
        %v509 = vpop.trf.xlu0
        %v510 = vpop.trf.xlu0
        %v511 = vpop.trf.xlu0
        %v512 = vpop.trf.xlu0
        %vm513 = vcmask 261120
        %v515 = vsel %vm513, %v401, 0
        %v518 = vsel %vm513, %v402, 0
        %v521 = vsel %vm513, %v403, 0
        %v524 = vsel %vm513, %v404, 0
        %v527 = vsel %vm513, %v405, 0
        %v530 = vsel %vm513, %v406, 0
        %v533 = vsel %vm513, %v407, 0
        %v536 = vsel %vm513, %v408, 0
        %v539 = vsel %vm513, %v409, 0
        %v542 = vsel %vm513, %v410, 0
        %v545 = vsel %vm513, %v411, 0
        %v548 = vsel %vm513, %v412, 0
        %v551 = vsel %vm513, %v413, 0
        %v554 = vsel %vm513, %v414, 0
        %v557 = vsel %vm513, %v415, 0
        %v560 = vsel %vm513, %v416, 0
        %v563 = vsel %vm513, %v433, 0
        %v566 = vsel %vm513, %v434, 0
        %v569 = vsel %vm513, %v435, 0
        %v572 = vsel %vm513, %v436, 0
        %v575 = vsel %vm513, %v437, 0
        %v578 = vsel %vm513, %v438, 0
        %v581 = vsel %vm513, %v439, 0
        %v584 = vsel %vm513, %v440, 0
        %v587 = vsel %vm513, %v441, 0
        %v590 = vsel %vm513, %v442, 0
        %v593 = vsel %vm513, %v443, 0
        %v596 = vsel %vm513, %v444, 0
        %v599 = vsel %vm513, %v445, 0
        %v602 = vsel %vm513, %v446, 0
        %v605 = vsel %vm513, %v447, 0
        %v608 = vsel %vm513, %v448, 0
        %v611 = vsel %vm513, %v465, 0
        %v614 = vsel %vm513, %v466, 0
        %v617 = vsel %vm513, %v467, 0
        %v620 = vsel %vm513, %v468, 0
        %v623 = vsel %vm513, %v469, 0
        %v626 = vsel %vm513, %v470, 0
        %v629 = vsel %vm513, %v471, 0
        %v632 = vsel %vm513, %v472, 0
        %v635 = vsel %vm513, %v473, 0
        %v638 = vsel %vm513, %v474, 0
        %v641 = vsel %vm513, %v475, 0
        %v644 = vsel %vm513, %v476, 0
        %v647 = vsel %vm513, %v477, 0
        %v650 = vsel %vm513, %v478, 0
        %v653 = vsel %vm513, %v479, 0
        %v656 = vsel %vm513, %v480, 0
        %v659 = vsel %vm513, %v497, 0
        %v662 = vsel %vm513, %v498, 0
        %v665 = vsel %vm513, %v499, 0
        %v668 = vsel %vm513, %v500, 0
        %v671 = vsel %vm513, %v501, 0
        %v674 = vsel %vm513, %v502, 0
        %v677 = vsel %vm513, %v503, 0
        %v680 = vsel %vm513, %v504, 0
        %v683 = vsel %vm513, %v505, 0
        %v686 = vsel %vm513, %v506, 0
        %v689 = vsel %vm513, %v507, 0
        %v692 = vsel %vm513, %v508, 0
        %v695 = vsel %vm513, %v509, 0
        %v698 = vsel %vm513, %v510, 0
        %v701 = vsel %vm513, %v511, 0
        %v704 = vsel %vm513, %v512, 0
        %706 = vmatpush.msra.mxu0 0.0
        %707 = vmatpush.msra.mxu0 0.0
        %708 = vmatpush.msra.mxu0 0.0
        %709 = vmatpush.msra.mxu0 0.0
        %710 = vmatpush.msra.mxu0 0.0
        %711 = vmatpush.msra.mxu0 0.0
        %712 = vmatpush.msra.mxu0 0.0
        %713 = vmatpush.msra.mxu0 0.0
        %714 = vmatpush.msra.mxu0 0.0
        %715 = vmatpush.msra.mxu0 0.0
        %716 = vmatpush.msra.mxu0 0.0
        %717 = vmatpush.msra.mxu0 0.0
        %718 = vmatpush.msra.mxu0 %v351
        %719 = vmatpush.msra.mxu0 %v349
        %720 = vmatpush.msra.mxu0 %v347
        %721 = vmatpush.msra.mxu0 %v345
        %722 = vmatmul.f32.gmra.mxu0 %v515
        %v723 = vpop.f32.mrf.mxu0
        %v724 = vadd.f32 0.0, %v723
        %725 = vmatmul.f32.gmra.mxu0 %v518
        %v726 = vpop.f32.mrf.mxu0
        %v727 = vadd.f32 0.0, %v726
        %728 = vmatmul.f32.gmra.mxu0 %v521
        %v729 = vpop.f32.mrf.mxu0
        %v730 = vadd.f32 0.0, %v729
        %731 = vmatmul.f32.gmra.mxu0 %v524
        %v732 = vpop.f32.mrf.mxu0
        %v733 = vadd.f32 0.0, %v732
        %734 = vmatmul.f32.gmra.mxu0 %v527
        %v735 = vpop.f32.mrf.mxu0
        %v736 = vadd.f32 0.0, %v735
        %737 = vmatmul.f32.gmra.mxu0 %v530
        %v738 = vpop.f32.mrf.mxu0
        %v739 = vadd.f32 0.0, %v738
        %740 = vmatmul.f32.gmra.mxu0 %v533
        %v741 = vpop.f32.mrf.mxu0
        %v742 = vadd.f32 0.0, %v741
        %743 = vmatmul.f32.gmra.mxu0 %v536
        %v744 = vpop.f32.mrf.mxu0
        %v745 = vadd.f32 0.0, %v744
        %746 = vmatmul.f32.gmra.mxu0 %v539
        %v747 = vpop.f32.mrf.mxu0
        %v748 = vadd.f32 0.0, %v747
        %749 = vmatmul.f32.gmra.mxu0 %v542
        %v750 = vpop.f32.mrf.mxu0
        %v751 = vadd.f32 0.0, %v750
        %752 = vmatmul.f32.gmra.mxu0 %v545
        %v753 = vpop.f32.mrf.mxu0
        %v754 = vadd.f32 0.0, %v753
        %755 = vmatmul.f32.gmra.mxu0 %v548
        %v756 = vpop.f32.mrf.mxu0
        %v757 = vadd.f32 0.0, %v756
        %758 = vmatmul.f32.gmra.mxu0 %v551
        %v759 = vpop.f32.mrf.mxu0
        %v760 = vadd.f32 0.0, %v759
        %761 = vmatmul.f32.gmra.mxu0 %v554
        %v762 = vpop.f32.mrf.mxu0
        %v763 = vadd.f32 0.0, %v762
        %764 = vmatmul.f32.gmra.mxu0 %v557
        %v765 = vpop.f32.mrf.mxu0
        %v766 = vadd.f32 0.0, %v765
        %767 = vmatmul.f32.gmra.mxu0 %v560
        %v768 = vpop.f32.mrf.mxu0
        %v769 = vadd.f32 0.0, %v768
        %770 = vmatmul.f32.gmra.mxu0 %v563
        %v771 = vpop.f32.mrf.mxu0
        %v772 = vadd.f32 0.0, %v771
        %773 = vmatmul.f32.gmra.mxu0 %v566
        %v774 = vpop.f32.mrf.mxu0
        %v775 = vadd.f32 0.0, %v774
        %776 = vmatmul.f32.gmra.mxu0 %v569
        %v777 = vpop.f32.mrf.mxu0
        %v778 = vadd.f32 0.0, %v777
        %779 = vmatmul.f32.gmra.mxu0 %v572
        %v780 = vpop.f32.mrf.mxu0
        %v781 = vadd.f32 0.0, %v780
        %782 = vmatmul.f32.gmra.mxu0 %v575
        %v783 = vpop.f32.mrf.mxu0
        %v784 = vadd.f32 0.0, %v783
        %785 = vmatmul.f32.gmra.mxu0 %v578
        %v786 = vpop.f32.mrf.mxu0
        %v787 = vadd.f32 0.0, %v786
        %788 = vmatmul.f32.gmra.mxu0 %v581
        %v789 = vpop.f32.mrf.mxu0
        %v790 = vadd.f32 0.0, %v789
        %791 = vmatmul.f32.gmra.mxu0 %v584
        %v792 = vpop.f32.mrf.mxu0
        %v793 = vadd.f32 0.0, %v792
        %794 = vmatmul.f32.gmra.mxu0 %v587
        %v795 = vpop.f32.mrf.mxu0
        %v796 = vadd.f32 0.0, %v795
        %797 = vmatmul.f32.gmra.mxu0 %v590
        %v798 = vpop.f32.mrf.mxu0
        %v799 = vadd.f32 0.0, %v798
        %800 = vmatmul.f32.gmra.mxu0 %v593
        %v801 = vpop.f32.mrf.mxu0
        %v802 = vadd.f32 0.0, %v801
        %803 = vmatmul.f32.gmra.mxu0 %v596
        %v804 = vpop.f32.mrf.mxu0
        %v805 = vadd.f32 0.0, %v804
        %806 = vmatmul.f32.gmra.mxu0 %v599
        %v807 = vpop.f32.mrf.mxu0
        %v808 = vadd.f32 0.0, %v807
        %809 = vmatmul.f32.gmra.mxu0 %v602
        %v810 = vpop.f32.mrf.mxu0
        %v811 = vadd.f32 0.0, %v810
        %812 = vmatmul.f32.gmra.mxu0 %v605
        %v813 = vpop.f32.mrf.mxu0
        %v814 = vadd.f32 0.0, %v813
        %815 = vmatmul.f32.gmra.mxu0 %v608
        %v816 = vpop.f32.mrf.mxu0
        %v817 = vadd.f32 0.0, %v816
        %818 = vmatmul.f32.gmra.mxu0 %v611
        %v819 = vpop.f32.mrf.mxu0
        %v820 = vadd.f32 0.0, %v819
        %821 = vmatmul.f32.gmra.mxu0 %v614
        %v822 = vpop.f32.mrf.mxu0
        %v823 = vadd.f32 0.0, %v822
        %824 = vmatmul.f32.gmra.mxu0 %v617
        %v825 = vpop.f32.mrf.mxu0
        %v826 = vadd.f32 0.0, %v825
        %827 = vmatmul.f32.gmra.mxu0 %v620
        %v828 = vpop.f32.mrf.mxu0
        %v829 = vadd.f32 0.0, %v828
        %830 = vmatmul.f32.gmra.mxu0 %v623
        %v831 = vpop.f32.mrf.mxu0
        %v832 = vadd.f32 0.0, %v831
        %833 = vmatmul.f32.gmra.mxu0 %v626
        %v834 = vpop.f32.mrf.mxu0
        %v835 = vadd.f32 0.0, %v834
        %836 = vmatmul.f32.gmra.mxu0 %v629
        %v837 = vpop.f32.mrf.mxu0
        %v838 = vadd.f32 0.0, %v837
        %839 = vmatmul.f32.gmra.mxu0 %v632
        %v840 = vpop.f32.mrf.mxu0
        %v841 = vadd.f32 0.0, %v840
        %842 = vmatmul.f32.gmra.mxu0 %v635
        %v843 = vpop.f32.mrf.mxu0
        %v844 = vadd.f32 0.0, %v843
        %845 = vmatmul.f32.gmra.mxu0 %v638
        %v846 = vpop.f32.mrf.mxu0
        %v847 = vadd.f32 0.0, %v846
        %848 = vmatmul.f32.gmra.mxu0 %v641
        %v849 = vpop.f32.mrf.mxu0
        %v850 = vadd.f32 0.0, %v849
        %851 = vmatmul.f32.gmra.mxu0 %v644
        %v852 = vpop.f32.mrf.mxu0
        %v853 = vadd.f32 0.0, %v852
        %854 = vmatmul.f32.gmra.mxu0 %v647
        %v855 = vpop.f32.mrf.mxu0
        %v856 = vadd.f32 0.0, %v855
        %857 = vmatmul.f32.gmra.mxu0 %v650
        %v858 = vpop.f32.mrf.mxu0
        %v859 = vadd.f32 0.0, %v858
        %860 = vmatmul.f32.gmra.mxu0 %v653
        %v861 = vpop.f32.mrf.mxu0
        %v862 = vadd.f32 0.0, %v861
        %863 = vmatmul.f32.gmra.mxu0 %v656
        %v864 = vpop.f32.mrf.mxu0
        %v865 = vadd.f32 0.0, %v864
        %866 = vmatmul.f32.gmra.mxu0 %v659
        %v867 = vpop.f32.mrf.mxu0
        %v868 = vadd.f32 0.0, %v867
        %869 = vmatmul.f32.gmra.mxu0 %v662
        %v870 = vpop.f32.mrf.mxu0
        %v871 = vadd.f32 0.0, %v870
        %872 = vmatmul.f32.gmra.mxu0 %v665
        %v873 = vpop.f32.mrf.mxu0
        %v874 = vadd.f32 0.0, %v873
        %875 = vmatmul.f32.gmra.mxu0 %v668
        %v876 = vpop.f32.mrf.mxu0
        %v877 = vadd.f32 0.0, %v876
        %878 = vmatmul.f32.gmra.mxu0 %v671
        %v879 = vpop.f32.mrf.mxu0
        %v880 = vadd.f32 0.0, %v879
        %881 = vmatmul.f32.gmra.mxu0 %v674
        %v882 = vpop.f32.mrf.mxu0
        %v883 = vadd.f32 0.0, %v882
        %884 = vmatmul.f32.gmra.mxu0 %v677
        %v885 = vpop.f32.mrf.mxu0
        %v886 = vadd.f32 0.0, %v885
        %887 = vmatmul.f32.gmra.mxu0 %v680
        %v888 = vpop.f32.mrf.mxu0
        %v889 = vadd.f32 0.0, %v888
        %890 = vmatmul.f32.gmra.mxu0 %v683
        %v891 = vpop.f32.mrf.mxu0
        %v892 = vadd.f32 0.0, %v891
        %893 = vmatmul.f32.gmra.mxu0 %v686
        %v894 = vpop.f32.mrf.mxu0
        %v895 = vadd.f32 0.0, %v894
        %896 = vmatmul.f32.gmra.mxu0 %v689
        %v897 = vpop.f32.mrf.mxu0
        %v898 = vadd.f32 0.0, %v897
        %899 = vmatmul.f32.gmra.mxu0 %v692
        %v900 = vpop.f32.mrf.mxu0
        %v901 = vadd.f32 0.0, %v900
        %902 = vmatmul.f32.gmra.mxu0 %v695
        %v903 = vpop.f32.mrf.mxu0
        %v904 = vadd.f32 0.0, %v903
        %905 = vmatmul.f32.gmra.mxu0 %v698
        %v906 = vpop.f32.mrf.mxu0
        %v907 = vadd.f32 0.0, %v906
        %908 = vmatmul.f32.gmra.mxu0 %v701
        %v909 = vpop.f32.mrf.mxu0
        %v910 = vadd.f32 0.0, %v909
        %911 = vmatmul.f32.gmra.mxu0 %v704
        %v912 = vpop.f32.mrf.mxu0
        %v913 = vadd.f32 0.0, %v912
        %914 = vdwg.mxu0
        %915 = vmatpush.msra.mxu0 0.0
        %916 = vmatpush.msra.mxu0 0.0
        %917 = vmatpush.msra.mxu0 0.0
        %918 = vmatpush.msra.mxu0 0.0
        %919 = vmatpush.msra.mxu0 0.0
        %920 = vmatpush.msra.mxu0 0.0
        %921 = vmatpush.msra.mxu0 0.0
        %922 = vmatpush.msra.mxu0 0.0
        %923 = vmatpush.msra.mxu0 0.0
        %924 = vmatpush.msra.mxu0 0.0
        %925 = vmatpush.msra.mxu0 0.0
        %926 = vmatpush.msra.mxu0 0.0
        %927 = vmatpush.msra.mxu0 %v352
        %928 = vmatpush.msra.mxu0 %v350
        %929 = vmatpush.msra.mxu0 %v348
        %930 = vmatpush.msra.mxu0 %v346
        %931 = vmatmul.f32.gmra.mxu0 %v515
        %v932 = vpop.f32.mrf.mxu0
        %v933 = vadd.f32 0.0, %v932
        %934 = vmatmul.f32.gmra.mxu0 %v518
        %v935 = vpop.f32.mrf.mxu0
        %v936 = vadd.f32 0.0, %v935
        %937 = vmatmul.f32.gmra.mxu0 %v521
        %v938 = vpop.f32.mrf.mxu0
        %v939 = vadd.f32 0.0, %v938
        %940 = vmatmul.f32.gmra.mxu0 %v524
        %v941 = vpop.f32.mrf.mxu0
        %v942 = vadd.f32 0.0, %v941
        %943 = vmatmul.f32.gmra.mxu0 %v527
        %v944 = vpop.f32.mrf.mxu0
        %v945 = vadd.f32 0.0, %v944
        %946 = vmatmul.f32.gmra.mxu0 %v530
        %v947 = vpop.f32.mrf.mxu0
        %v948 = vadd.f32 0.0, %v947
        %949 = vmatmul.f32.gmra.mxu0 %v533
        %v950 = vpop.f32.mrf.mxu0
        %v951 = vadd.f32 0.0, %v950
        %952 = vmatmul.f32.gmra.mxu0 %v536
        %v953 = vpop.f32.mrf.mxu0
        %v954 = vadd.f32 0.0, %v953
        %955 = vmatmul.f32.gmra.mxu0 %v539
        %v956 = vpop.f32.mrf.mxu0
        %v957 = vadd.f32 0.0, %v956
        %958 = vmatmul.f32.gmra.mxu0 %v542
        %v959 = vpop.f32.mrf.mxu0
        %v960 = vadd.f32 0.0, %v959
        %961 = vmatmul.f32.gmra.mxu0 %v545
        %v962 = vpop.f32.mrf.mxu0
        %v963 = vadd.f32 0.0, %v962
        %964 = vmatmul.f32.gmra.mxu0 %v548
        %v965 = vpop.f32.mrf.mxu0
        %v966 = vadd.f32 0.0, %v965
        %967 = vmatmul.f32.gmra.mxu0 %v551
        %v968 = vpop.f32.mrf.mxu0
        %v969 = vadd.f32 0.0, %v968
        %970 = vmatmul.f32.gmra.mxu0 %v554
        %v971 = vpop.f32.mrf.mxu0
        %v972 = vadd.f32 0.0, %v971
        %973 = vmatmul.f32.gmra.mxu0 %v557
        %v974 = vpop.f32.mrf.mxu0
        %v975 = vadd.f32 0.0, %v974
        %976 = vmatmul.f32.gmra.mxu0 %v560
        %v977 = vpop.f32.mrf.mxu0
        %v978 = vadd.f32 0.0, %v977
        %979 = vmatmul.f32.gmra.mxu0 %v563
        %v980 = vpop.f32.mrf.mxu0
        %v981 = vadd.f32 0.0, %v980
        %982 = vmatmul.f32.gmra.mxu0 %v566
        %v983 = vpop.f32.mrf.mxu0
        %v984 = vadd.f32 0.0, %v983
        %985 = vmatmul.f32.gmra.mxu0 %v569
        %v986 = vpop.f32.mrf.mxu0
        %v987 = vadd.f32 0.0, %v986
        %988 = vmatmul.f32.gmra.mxu0 %v572
        %v989 = vpop.f32.mrf.mxu0
        %v990 = vadd.f32 0.0, %v989
        %991 = vmatmul.f32.gmra.mxu0 %v575
        %v992 = vpop.f32.mrf.mxu0
        %v993 = vadd.f32 0.0, %v992
        %994 = vmatmul.f32.gmra.mxu0 %v578
        %v995 = vpop.f32.mrf.mxu0
        %v996 = vadd.f32 0.0, %v995
        %997 = vmatmul.f32.gmra.mxu0 %v581
        %v998 = vpop.f32.mrf.mxu0
        %v999 = vadd.f32 0.0, %v998
        %1000 = vmatmul.f32.gmra.mxu0 %v584
        %v1001 = vpop.f32.mrf.mxu0
        %v1002 = vadd.f32 0.0, %v1001
        %1003 = vmatmul.f32.gmra.mxu0 %v587
        %v1004 = vpop.f32.mrf.mxu0
        %v1005 = vadd.f32 0.0, %v1004
        %1006 = vmatmul.f32.gmra.mxu0 %v590
        %v1007 = vpop.f32.mrf.mxu0
        %v1008 = vadd.f32 0.0, %v1007
        %1009 = vmatmul.f32.gmra.mxu0 %v593
        %v1010 = vpop.f32.mrf.mxu0
        %v1011 = vadd.f32 0.0, %v1010
        %1012 = vmatmul.f32.gmra.mxu0 %v596
        %v1013 = vpop.f32.mrf.mxu0
        %v1014 = vadd.f32 0.0, %v1013
        %1015 = vmatmul.f32.gmra.mxu0 %v599
        %v1016 = vpop.f32.mrf.mxu0
        %v1017 = vadd.f32 0.0, %v1016
        %1018 = vmatmul.f32.gmra.mxu0 %v602
        %v1019 = vpop.f32.mrf.mxu0
        %v1020 = vadd.f32 0.0, %v1019
        %1021 = vmatmul.f32.gmra.mxu0 %v605
        %v1022 = vpop.f32.mrf.mxu0
        %v1023 = vadd.f32 0.0, %v1022
        %1024 = vmatmul.f32.gmra.mxu0 %v608
        %v1025 = vpop.f32.mrf.mxu0
        %v1026 = vadd.f32 0.0, %v1025
        %1027 = vmatmul.f32.gmra.mxu0 %v611
        %v1028 = vpop.f32.mrf.mxu0
        %v1029 = vadd.f32 0.0, %v1028
        %1030 = vmatmul.f32.gmra.mxu0 %v614
        %v1031 = vpop.f32.mrf.mxu0
        %v1032 = vadd.f32 0.0, %v1031
        %1033 = vmatmul.f32.gmra.mxu0 %v617
        %v1034 = vpop.f32.mrf.mxu0
        %v1035 = vadd.f32 0.0, %v1034
        %1036 = vmatmul.f32.gmra.mxu0 %v620
        %v1037 = vpop.f32.mrf.mxu0
        %v1038 = vadd.f32 0.0, %v1037
        %1039 = vmatmul.f32.gmra.mxu0 %v623
        %v1040 = vpop.f32.mrf.mxu0
        %v1041 = vadd.f32 0.0, %v1040
        %1042 = vmatmul.f32.gmra.mxu0 %v626
        %v1043 = vpop.f32.mrf.mxu0
        %v1044 = vadd.f32 0.0, %v1043
        %1045 = vmatmul.f32.gmra.mxu0 %v629
        %v1046 = vpop.f32.mrf.mxu0
        %v1047 = vadd.f32 0.0, %v1046
        %1048 = vmatmul.f32.gmra.mxu0 %v632
        %v1049 = vpop.f32.mrf.mxu0
        %v1050 = vadd.f32 0.0, %v1049
        %1051 = vmatmul.f32.gmra.mxu0 %v635
        %v1052 = vpop.f32.mrf.mxu0
        %v1053 = vadd.f32 0.0, %v1052
        %1054 = vmatmul.f32.gmra.mxu0 %v638
        %v1055 = vpop.f32.mrf.mxu0
        %v1056 = vadd.f32 0.0, %v1055
        %1057 = vmatmul.f32.gmra.mxu0 %v641
        %v1058 = vpop.f32.mrf.mxu0
        %v1059 = vadd.f32 0.0, %v1058
        %1060 = vmatmul.f32.gmra.mxu0 %v644
        %v1061 = vpop.f32.mrf.mxu0
        %v1062 = vadd.f32 0.0, %v1061
        %1063 = vmatmul.f32.gmra.mxu0 %v647
        %v1064 = vpop.f32.mrf.mxu0
        %v1065 = vadd.f32 0.0, %v1064
        %1066 = vmatmul.f32.gmra.mxu0 %v650
        %v1067 = vpop.f32.mrf.mxu0
        %v1068 = vadd.f32 0.0, %v1067
        %1069 = vmatmul.f32.gmra.mxu0 %v653
        %v1070 = vpop.f32.mrf.mxu0
        %v1071 = vadd.f32 0.0, %v1070
        %1072 = vmatmul.f32.gmra.mxu0 %v656
        %v1073 = vpop.f32.mrf.mxu0
        %v1074 = vadd.f32 0.0, %v1073
        %1075 = vmatmul.f32.gmra.mxu0 %v659
        %v1076 = vpop.f32.mrf.mxu0
        %v1077 = vadd.f32 0.0, %v1076
        %1078 = vmatmul.f32.gmra.mxu0 %v662
        %v1079 = vpop.f32.mrf.mxu0
        %v1080 = vadd.f32 0.0, %v1079
        %1081 = vmatmul.f32.gmra.mxu0 %v665
        %v1082 = vpop.f32.mrf.mxu0
        %v1083 = vadd.f32 0.0, %v1082
        %1084 = vmatmul.f32.gmra.mxu0 %v668
        %v1085 = vpop.f32.mrf.mxu0
        %v1086 = vadd.f32 0.0, %v1085
        %1087 = vmatmul.f32.gmra.mxu0 %v671
        %v1088 = vpop.f32.mrf.mxu0
        %v1089 = vadd.f32 0.0, %v1088
        %1090 = vmatmul.f32.gmra.mxu0 %v674
        %v1091 = vpop.f32.mrf.mxu0
        %v1092 = vadd.f32 0.0, %v1091
        %1093 = vmatmul.f32.gmra.mxu0 %v677
        %v1094 = vpop.f32.mrf.mxu0
        %v1095 = vadd.f32 0.0, %v1094
        %1096 = vmatmul.f32.gmra.mxu0 %v680
        %v1097 = vpop.f32.mrf.mxu0
        %v1098 = vadd.f32 0.0, %v1097
        %1099 = vmatmul.f32.gmra.mxu0 %v683
        %v1100 = vpop.f32.mrf.mxu0
        %v1101 = vadd.f32 0.0, %v1100
        %1102 = vmatmul.f32.gmra.mxu0 %v686
        %v1103 = vpop.f32.mrf.mxu0
        %v1104 = vadd.f32 0.0, %v1103
        %1105 = vmatmul.f32.gmra.mxu0 %v689
        %v1106 = vpop.f32.mrf.mxu0
        %v1107 = vadd.f32 0.0, %v1106
        %1108 = vmatmul.f32.gmra.mxu0 %v692
        %v1109 = vpop.f32.mrf.mxu0
        %v1110 = vadd.f32 0.0, %v1109
        %1111 = vmatmul.f32.gmra.mxu0 %v695
        %v1112 = vpop.f32.mrf.mxu0
        %v1113 = vadd.f32 0.0, %v1112
        %1114 = vmatmul.f32.gmra.mxu0 %v698
        %v1115 = vpop.f32.mrf.mxu0
        %v1116 = vadd.f32 0.0, %v1115
        %1117 = vmatmul.f32.gmra.mxu0 %v701
        %v1118 = vpop.f32.mrf.mxu0
        %v1119 = vadd.f32 0.0, %v1118
        %1120 = vmatmul.f32.gmra.mxu0 %v704
        %v1121 = vpop.f32.mrf.mxu0
        %v1122 = vadd.f32 0.0, %v1121
        %1123 = vdwg.mxu0
        %v1124 = vld [vmem:[#allocation2] sm:$0x3]
        %v1125 = vmax.f32 %v724, %v730
        %v1126 = vmax.f32 %v727, %v733
        %v1127 = vmax.f32 %v1125, %v736
        %v1128 = vmax.f32 %v1126, %v739
        %v1129 = vmax.f32 %v1127, %v742
        %v1130 = vmax.f32 %v1128, %v745
        %v1131 = vmax.f32 %v1129, %v748
        %v1132 = vmax.f32 %v1130, %v751
        %v1133 = vmax.f32 %v1131, %v754
        %v1134 = vmax.f32 %v1132, %v757
        %v1135 = vmax.f32 %v1133, %v760
        %v1136 = vmax.f32 %v1134, %v763
        %v1137 = vmax.f32 %v1135, %v766
        %v1138 = vmax.f32 %v1136, %v769
        %v1139 = vmax.f32 %v1137, %v772
        %v1140 = vmax.f32 %v1138, %v775
        %v1141 = vmax.f32 %v1139, %v778
        %v1142 = vmax.f32 %v1140, %v781
        %v1143 = vmax.f32 %v1141, %v784
        %v1144 = vmax.f32 %v1142, %v787
        %v1145 = vmax.f32 %v1143, %v790
        %v1146 = vmax.f32 %v1144, %v793
        %v1147 = vmax.f32 %v1145, %v796
        %v1148 = vmax.f32 %v1146, %v799
        %v1149 = vmax.f32 %v1147, %v802
        %v1150 = vmax.f32 %v1148, %v805
        %v1151 = vmax.f32 %v1149, %v808
        %v1152 = vmax.f32 %v1150, %v811
        %v1153 = vmax.f32 %v1151, %v814
        %v1154 = vmax.f32 %v1152, %v817
        %v1155 = vmax.f32 %v1153, %v820
        %v1156 = vmax.f32 %v1154, %v823
        %v1157 = vmax.f32 %v1155, %v826
        %v1158 = vmax.f32 %v1156, %v829
        %v1159 = vmax.f32 %v1157, %v832
        %v1160 = vmax.f32 %v1158, %v835
        %v1161 = vmax.f32 %v1159, %v838
        %v1162 = vmax.f32 %v1160, %v841
        %v1163 = vmax.f32 %v1161, %v844
        %v1164 = vmax.f32 %v1162, %v847
        %v1165 = vmax.f32 %v1163, %v850
        %v1166 = vmax.f32 %v1164, %v853
        %v1167 = vmax.f32 %v1165, %v856
        %v1168 = vmax.f32 %v1166, %v859
        %v1169 = vmax.f32 %v1167, %v862
        %v1170 = vmax.f32 %v1168, %v865
        %v1171 = vmax.f32 %v1169, %v868
        %v1172 = vmax.f32 %v1170, %v871
        %v1173 = vmax.f32 %v1171, %v874
        %v1174 = vmax.f32 %v1172, %v877
        %v1175 = vmax.f32 %v1173, %v880
        %v1176 = vmax.f32 %v1174, %v883
        %v1177 = vmax.f32 %v1175, %v886
        %v1178 = vmax.f32 %v1176, %v889
        %v1179 = vmax.f32 %v1177, %v892
        %v1180 = vmax.f32 %v1178, %v895
        %v1181 = vmax.f32 %v1179, %v898
        %v1182 = vmax.f32 %v1180, %v901
        %v1183 = vmax.f32 %v1181, %v904
        %v1184 = vmax.f32 %v1182, %v907
        %v1185 = vmax.f32 %v1183, %v910
        %v1186 = vmax.f32 %v1184, %v913
        %v1187 = vmax.f32 %v1185, %v1186
        %v1188 = vrot.slane %v1187, 4
        %v1189 = vmax.f32 %v1187, %v1188
        %v1190 = vrot.slane %v1189, 2
        %v1191 = vmax.f32 %v1189, %v1190
        %v1192 = vrot.slane %v1191, 1
        %v1193 = vmax.f32 %v1191, %v1192
        %v1194 = vmax.f32 %v933, %v939
        %v1195 = vmax.f32 %v936, %v942
        %v1196 = vmax.f32 %v1194, %v945
        %v1197 = vmax.f32 %v1195, %v948
        %v1198 = vmax.f32 %v1196, %v951
        %v1199 = vmax.f32 %v1197, %v954
        %v1200 = vmax.f32 %v1198, %v957
        %v1201 = vmax.f32 %v1199, %v960
        %v1202 = vmax.f32 %v1200, %v963
        %v1203 = vmax.f32 %v1201, %v966
        %v1204 = vmax.f32 %v1202, %v969
        %v1205 = vmax.f32 %v1203, %v972
        %v1206 = vmax.f32 %v1204, %v975
        %v1207 = vmax.f32 %v1205, %v978
        %v1208 = vmax.f32 %v1206, %v981
        %v1209 = vmax.f32 %v1207, %v984
        %v1210 = vmax.f32 %v1208, %v987
        %v1211 = vmax.f32 %v1209, %v990
        %v1212 = vmax.f32 %v1210, %v993
        %v1213 = vmax.f32 %v1211, %v996
        %v1214 = vmax.f32 %v1212, %v999
        %v1215 = vmax.f32 %v1213, %v1002
        %v1216 = vmax.f32 %v1214, %v1005
        %v1217 = vmax.f32 %v1215, %v1008
        %v1218 = vmax.f32 %v1216, %v1011
        %v1219 = vmax.f32 %v1217, %v1014
        %v1220 = vmax.f32 %v1218, %v1017
        %v1221 = vmax.f32 %v1219, %v1020
        %v1222 = vmax.f32 %v1220, %v1023
        %v1223 = vmax.f32 %v1221, %v1026
        %v1224 = vmax.f32 %v1222, %v1029
        %v1225 = vmax.f32 %v1223, %v1032
        %v1226 = vmax.f32 %v1224, %v1035
        %v1227 = vmax.f32 %v1225, %v1038
        %v1228 = vmax.f32 %v1226, %v1041
        %v1229 = vmax.f32 %v1227, %v1044
        %v1230 = vmax.f32 %v1228, %v1047
        %v1231 = vmax.f32 %v1229, %v1050
        %v1232 = vmax.f32 %v1230, %v1053
        %v1233 = vmax.f32 %v1231, %v1056
        %v1234 = vmax.f32 %v1232, %v1059
        %v1235 = vmax.f32 %v1233, %v1062
        %v1236 = vmax.f32 %v1234, %v1065
        %v1237 = vmax.f32 %v1235, %v1068
        %v1238 = vmax.f32 %v1236, %v1071
        %v1239 = vmax.f32 %v1237, %v1074
        %v1240 = vmax.f32 %v1238, %v1077
        %v1241 = vmax.f32 %v1239, %v1080
        %v1242 = vmax.f32 %v1240, %v1083
        %v1243 = vmax.f32 %v1241, %v1086
        %v1244 = vmax.f32 %v1242, %v1089
        %v1245 = vmax.f32 %v1243, %v1092
        %v1246 = vmax.f32 %v1244, %v1095
        %v1247 = vmax.f32 %v1245, %v1098
        %v1248 = vmax.f32 %v1246, %v1101
        %v1249 = vmax.f32 %v1247, %v1104
        %v1250 = vmax.f32 %v1248, %v1107
        %v1251 = vmax.f32 %v1249, %v1110
        %v1252 = vmax.f32 %v1250, %v1113
        %v1253 = vmax.f32 %v1251, %v1116
        %v1254 = vmax.f32 %v1252, %v1119
        %v1255 = vmax.f32 %v1253, %v1122
        %v1256 = vmax.f32 %v1254, %v1255
        %v1257 = vrot.slane %v1256, 4
        %v1258 = vmax.f32 %v1256, %v1257
        %v1259 = vrot.slane %v1258, 2
        %v1260 = vmax.f32 %v1258, %v1259
        %v1261 = vrot.slane %v1260, 1
        %v1262 = vmax.f32 %v1260, %v1261
        %v1265 = vrot.slane %v1262, 7
        %vm1266 = vcmask 1040384
        %v1267 = vsel %vm1266, %v1193, %v1265
        %v1269 = vmax.f32 %v1124, %v1267
        %v1270 = vsub.f32 %v1124, %v1269
        %v1271 = vmul.f32 %v1270, 1.442695
        %v1272 = vpow.pop %v1271
        %v1274 = vperm.slane %v1269, 0
        %v1275 = vperm.slane %v1269, 1
        %v1278 = vsub.f32 %v724, %v1274
        %v1279 = vsub.f32 %v933, %v1275
        %v1280 = vsub.f32 %v727, %v1274
        %v1281 = vsub.f32 %v936, %v1275
        %v1282 = vsub.f32 %v730, %v1274
        %v1283 = vsub.f32 %v939, %v1275
        %v1284 = vsub.f32 %v733, %v1274
        %v1285 = vsub.f32 %v942, %v1275
        %v1286 = vsub.f32 %v736, %v1274
        %v1287 = vsub.f32 %v945, %v1275
        %v1288 = vsub.f32 %v739, %v1274
        %v1289 = vsub.f32 %v948, %v1275
        %v1290 = vsub.f32 %v742, %v1274
        %v1291 = vsub.f32 %v951, %v1275
        %v1292 = vsub.f32 %v745, %v1274
        %v1293 = vsub.f32 %v954, %v1275
        %v1294 = vsub.f32 %v748, %v1274
        %v1295 = vsub.f32 %v957, %v1275
        %v1296 = vsub.f32 %v751, %v1274
        %v1297 = vsub.f32 %v960, %v1275
        %v1298 = vsub.f32 %v754, %v1274
        %v1299 = vsub.f32 %v963, %v1275
        %v1300 = vsub.f32 %v757, %v1274
        %v1301 = vsub.f32 %v966, %v1275
        %v1302 = vsub.f32 %v760, %v1274
        %v1303 = vsub.f32 %v969, %v1275
        %v1304 = vsub.f32 %v763, %v1274
        %v1305 = vsub.f32 %v972, %v1275
        %v1306 = vsub.f32 %v766, %v1274
        %v1307 = vsub.f32 %v975, %v1275
        %v1308 = vsub.f32 %v769, %v1274
        %v1309 = vsub.f32 %v978, %v1275
        %v1310 = vsub.f32 %v772, %v1274
        %v1311 = vsub.f32 %v981, %v1275
        %v1312 = vsub.f32 %v775, %v1274
        %v1313 = vsub.f32 %v984, %v1275
        %v1314 = vsub.f32 %v778, %v1274
        %v1315 = vsub.f32 %v987, %v1275
        %v1316 = vsub.f32 %v781, %v1274
        %v1317 = vsub.f32 %v990, %v1275
        %v1318 = vsub.f32 %v784, %v1274
        %v1319 = vsub.f32 %v993, %v1275
        %v1320 = vsub.f32 %v787, %v1274
        %v1321 = vsub.f32 %v996, %v1275
        %v1322 = vsub.f32 %v790, %v1274
        %v1323 = vsub.f32 %v999, %v1275
        %v1324 = vsub.f32 %v793, %v1274
        %v1325 = vsub.f32 %v1002, %v1275
        %v1326 = vsub.f32 %v796, %v1274
        %v1327 = vsub.f32 %v1005, %v1275
        %v1328 = vsub.f32 %v799, %v1274
        %v1329 = vsub.f32 %v1008, %v1275
        %v1330 = vsub.f32 %v802, %v1274
        %v1331 = vsub.f32 %v1011, %v1275
        %v1332 = vsub.f32 %v805, %v1274
        %v1333 = vsub.f32 %v1014, %v1275
        %v1334 = vsub.f32 %v808, %v1274
        %v1335 = vsub.f32 %v1017, %v1275
        %v1336 = vsub.f32 %v811, %v1274
        %v1337 = vsub.f32 %v1020, %v1275
        %v1338 = vsub.f32 %v814, %v1274
        %v1339 = vsub.f32 %v1023, %v1275
        %v1340 = vsub.f32 %v817, %v1274
        %v1341 = vsub.f32 %v1026, %v1275
        %v1342 = vsub.f32 %v820, %v1274
        %v1343 = vsub.f32 %v1029, %v1275
        %v1344 = vsub.f32 %v823, %v1274
        %v1345 = vsub.f32 %v1032, %v1275
        %v1346 = vsub.f32 %v826, %v1274
        %v1347 = vsub.f32 %v1035, %v1275
        %v1348 = vsub.f32 %v829, %v1274
        %v1349 = vsub.f32 %v1038, %v1275
        %v1350 = vsub.f32 %v832, %v1274
        %v1351 = vsub.f32 %v1041, %v1275
        %v1352 = vsub.f32 %v835, %v1274
        %v1353 = vsub.f32 %v1044, %v1275
        %v1354 = vsub.f32 %v838, %v1274
        %v1355 = vsub.f32 %v1047, %v1275
        %v1356 = vsub.f32 %v841, %v1274
        %v1357 = vsub.f32 %v1050, %v1275
        %v1358 = vsub.f32 %v844, %v1274
        %v1359 = vsub.f32 %v1053, %v1275
        %v1360 = vsub.f32 %v847, %v1274
        %v1361 = vsub.f32 %v1056, %v1275
        %v1362 = vsub.f32 %v850, %v1274
        %v1363 = vsub.f32 %v1059, %v1275
        %v1364 = vsub.f32 %v853, %v1274
        %v1365 = vsub.f32 %v1062, %v1275
        %v1366 = vsub.f32 %v856, %v1274
        %v1367 = vsub.f32 %v1065, %v1275
        %v1368 = vsub.f32 %v859, %v1274
        %v1369 = vsub.f32 %v1068, %v1275
        %v1370 = vsub.f32 %v862, %v1274
        %v1371 = vsub.f32 %v1071, %v1275
        %v1372 = vsub.f32 %v865, %v1274
        %v1373 = vsub.f32 %v1074, %v1275
        %v1374 = vsub.f32 %v868, %v1274
        %v1375 = vsub.f32 %v1077, %v1275
        %v1376 = vsub.f32 %v871, %v1274
        %v1377 = vsub.f32 %v1080, %v1275
        %v1378 = vsub.f32 %v874, %v1274
        %v1379 = vsub.f32 %v1083, %v1275
        %v1380 = vsub.f32 %v877, %v1274
        %v1381 = vsub.f32 %v1086, %v1275
        %v1382 = vsub.f32 %v880, %v1274
        %v1383 = vsub.f32 %v1089, %v1275
        %v1384 = vsub.f32 %v883, %v1274
        %v1385 = vsub.f32 %v1092, %v1275
        %v1386 = vsub.f32 %v886, %v1274
        %v1387 = vsub.f32 %v1095, %v1275
        %v1388 = vsub.f32 %v889, %v1274
        %v1389 = vsub.f32 %v1098, %v1275
        %v1390 = vsub.f32 %v892, %v1274
        %v1391 = vsub.f32 %v1101, %v1275
        %v1392 = vsub.f32 %v895, %v1274
        %v1393 = vsub.f32 %v1104, %v1275
        %v1394 = vsub.f32 %v898, %v1274
        %v1395 = vsub.f32 %v1107, %v1275
        %v1396 = vsub.f32 %v901, %v1274
        %v1397 = vsub.f32 %v1110, %v1275
        %v1398 = vsub.f32 %v904, %v1274
        %v1399 = vsub.f32 %v1113, %v1275
        %v1400 = vsub.f32 %v907, %v1274
        %v1401 = vsub.f32 %v1116, %v1275
        %v1402 = vsub.f32 %v910, %v1274
        %v1403 = vsub.f32 %v1119, %v1275
        %v1404 = vsub.f32 %v913, %v1274
        %v1405 = vsub.f32 %v1122, %v1275
        %v1406 = vmul.f32 %v1278, 1.442695
        %v1407 = vpow.pop %v1406
        %v1408 = vmul.f32 %v1279, 1.442695
        %v1409 = vpow.pop %v1408
        %v1410 = vmul.f32 %v1280, 1.442695
        %v1411 = vpow.pop %v1410
        %v1412 = vmul.f32 %v1281, 1.442695
        %v1413 = vpow.pop %v1412
        %v1414 = vmul.f32 %v1282, 1.442695
        %v1415 = vpow.pop %v1414
        %v1416 = vmul.f32 %v1283, 1.442695
        %v1417 = vpow.pop %v1416
        %v1418 = vmul.f32 %v1284, 1.442695
        %v1419 = vpow.pop %v1418
        %v1420 = vmul.f32 %v1285, 1.442695
        %v1421 = vpow.pop %v1420
        %v1422 = vmul.f32 %v1286, 1.442695
        %v1423 = vpow.pop %v1422
        %v1424 = vmul.f32 %v1287, 1.442695
        %v1425 = vpow.pop %v1424
        %v1426 = vmul.f32 %v1288, 1.442695
        %v1427 = vpow.pop %v1426
        %v1428 = vmul.f32 %v1289, 1.442695
        %v1429 = vpow.pop %v1428
        %v1430 = vmul.f32 %v1290, 1.442695
        %v1431 = vpow.pop %v1430
        %v1432 = vmul.f32 %v1291, 1.442695
        %v1433 = vpow.pop %v1432
        %v1434 = vmul.f32 %v1292, 1.442695
        %v1435 = vpow.pop %v1434
        %v1436 = vmul.f32 %v1293, 1.442695
        %v1437 = vpow.pop %v1436
        %v1438 = vmul.f32 %v1294, 1.442695
        %v1439 = vpow.pop %v1438
        %v1440 = vmul.f32 %v1295, 1.442695
        %v1441 = vpow.pop %v1440
        %v1442 = vmul.f32 %v1296, 1.442695
        %v1443 = vpow.pop %v1442
        %v1444 = vmul.f32 %v1297, 1.442695
        %v1445 = vpow.pop %v1444
        %v1446 = vmul.f32 %v1298, 1.442695
        %v1447 = vpow.pop %v1446
        %v1448 = vmul.f32 %v1299, 1.442695
        %v1449 = vpow.pop %v1448
        %v1450 = vmul.f32 %v1300, 1.442695
        %v1451 = vpow.pop %v1450
        %v1452 = vmul.f32 %v1301, 1.442695
        %v1453 = vpow.pop %v1452
        %v1454 = vmul.f32 %v1302, 1.442695
        %v1455 = vpow.pop %v1454
        %v1456 = vmul.f32 %v1303, 1.442695
        %v1457 = vpow.pop %v1456
        %v1458 = vmul.f32 %v1304, 1.442695
        %v1459 = vpow.pop %v1458
        %v1460 = vmul.f32 %v1305, 1.442695
        %v1461 = vpow.pop %v1460
        %v1462 = vmul.f32 %v1306, 1.442695
        %v1463 = vpow.pop %v1462
        %v1464 = vmul.f32 %v1307, 1.442695
        %v1465 = vpow.pop %v1464
        %v1466 = vmul.f32 %v1308, 1.442695
        %v1467 = vpow.pop %v1466
        %v1468 = vmul.f32 %v1309, 1.442695
        %v1469 = vpow.pop %v1468
        %v1470 = vmul.f32 %v1310, 1.442695
        %v1471 = vpow.pop %v1470
        %v1472 = vmul.f32 %v1311, 1.442695
        %v1473 = vpow.pop %v1472
        %v1474 = vmul.f32 %v1312, 1.442695
        %v1475 = vpow.pop %v1474
        %v1476 = vmul.f32 %v1313, 1.442695
        %v1477 = vpow.pop %v1476
        %v1478 = vmul.f32 %v1314, 1.442695
        %v1479 = vpow.pop %v1478
        %v1480 = vmul.f32 %v1315, 1.442695
        %v1481 = vpow.pop %v1480
        %v1482 = vmul.f32 %v1316, 1.442695
        %v1483 = vpow.pop %v1482
        %v1484 = vmul.f32 %v1317, 1.442695
        %v1485 = vpow.pop %v1484
        %v1486 = vmul.f32 %v1318, 1.442695
        %v1487 = vpow.pop %v1486
        %v1488 = vmul.f32 %v1319, 1.442695
        %v1489 = vpow.pop %v1488
        %v1490 = vmul.f32 %v1320, 1.442695
        %v1491 = vpow.pop %v1490
        %v1492 = vmul.f32 %v1321, 1.442695
        %v1493 = vpow.pop %v1492
        %v1494 = vmul.f32 %v1322, 1.442695
        %v1495 = vpow.pop %v1494
        %v1496 = vmul.f32 %v1323, 1.442695
        %v1497 = vpow.pop %v1496
        %v1498 = vmul.f32 %v1324, 1.442695
        %v1499 = vpow.pop %v1498
        %v1500 = vmul.f32 %v1325, 1.442695
        %v1501 = vpow.pop %v1500
        %v1502 = vmul.f32 %v1326, 1.442695
        %v1503 = vpow.pop %v1502
        %v1504 = vmul.f32 %v1327, 1.442695
        %v1505 = vpow.pop %v1504
        %v1506 = vmul.f32 %v1328, 1.442695
        %v1507 = vpow.pop %v1506
        %v1508 = vmul.f32 %v1329, 1.442695
        %v1509 = vpow.pop %v1508
        %v1510 = vmul.f32 %v1330, 1.442695
        %v1511 = vpow.pop %v1510
        %v1512 = vmul.f32 %v1331, 1.442695
        %v1513 = vpow.pop %v1512
        %v1514 = vmul.f32 %v1332, 1.442695
        %v1515 = vpow.pop %v1514
        %v1516 = vmul.f32 %v1333, 1.442695
        %v1517 = vpow.pop %v1516
        %v1518 = vmul.f32 %v1334, 1.442695
        %v1519 = vpow.pop %v1518
        %v1520 = vmul.f32 %v1335, 1.442695
        %v1521 = vpow.pop %v1520
        %v1522 = vmul.f32 %v1336, 1.442695
        %v1523 = vpow.pop %v1522
        %v1524 = vmul.f32 %v1337, 1.442695
        %v1525 = vpow.pop %v1524
        %v1526 = vmul.f32 %v1338, 1.442695
        %v1527 = vpow.pop %v1526
        %v1528 = vmul.f32 %v1339, 1.442695
        %v1529 = vpow.pop %v1528
        %v1530 = vmul.f32 %v1340, 1.442695
        %v1531 = vpow.pop %v1530
        %v1532 = vmul.f32 %v1341, 1.442695
        %v1533 = vpow.pop %v1532
        %v1534 = vmul.f32 %v1342, 1.442695
        %v1535 = vpow.pop %v1534
        %v1536 = vmul.f32 %v1343, 1.442695
        %v1537 = vpow.pop %v1536
        %v1538 = vmul.f32 %v1344, 1.442695
        %v1539 = vpow.pop %v1538
        %v1540 = vmul.f32 %v1345, 1.442695
        %v1541 = vpow.pop %v1540
        %v1542 = vmul.f32 %v1346, 1.442695
        %v1543 = vpow.pop %v1542
        %v1544 = vmul.f32 %v1347, 1.442695
        %v1545 = vpow.pop %v1544
        %v1546 = vmul.f32 %v1348, 1.442695
        %v1547 = vpow.pop %v1546
        %v1548 = vmul.f32 %v1349, 1.442695
        %v1549 = vpow.pop %v1548
        %v1550 = vmul.f32 %v1350, 1.442695
        %v1551 = vpow.pop %v1550
        %v1552 = vmul.f32 %v1351, 1.442695
        %v1553 = vpow.pop %v1552
        %v1554 = vmul.f32 %v1352, 1.442695
        %v1555 = vpow.pop %v1554
        %v1556 = vmul.f32 %v1353, 1.442695
        %v1557 = vpow.pop %v1556
        %v1558 = vmul.f32 %v1354, 1.442695
        %v1559 = vpow.pop %v1558
        %v1560 = vmul.f32 %v1355, 1.442695
        %v1561 = vpow.pop %v1560
        %v1562 = vmul.f32 %v1356, 1.442695
        %v1563 = vpow.pop %v1562
        %v1564 = vmul.f32 %v1357, 1.442695
        %v1565 = vpow.pop %v1564
        %v1566 = vmul.f32 %v1358, 1.442695
        %v1567 = vpow.pop %v1566
        %v1568 = vmul.f32 %v1359, 1.442695
        %v1569 = vpow.pop %v1568
        %v1570 = vmul.f32 %v1360, 1.442695
        %v1571 = vpow.pop %v1570
        %v1572 = vmul.f32 %v1361, 1.442695
        %v1573 = vpow.pop %v1572
        %v1574 = vmul.f32 %v1362, 1.442695
        %v1575 = vpow.pop %v1574
        %v1576 = vmul.f32 %v1363, 1.442695
        %v1577 = vpow.pop %v1576
        %v1578 = vmul.f32 %v1364, 1.442695
        %v1579 = vpow.pop %v1578
        %v1580 = vmul.f32 %v1365, 1.442695
        %v1581 = vpow.pop %v1580
        %v1582 = vmul.f32 %v1366, 1.442695
        %v1583 = vpow.pop %v1582
        %v1584 = vmul.f32 %v1367, 1.442695
        %v1585 = vpow.pop %v1584
        %v1586 = vmul.f32 %v1368, 1.442695
        %v1587 = vpow.pop %v1586
        %v1588 = vmul.f32 %v1369, 1.442695
        %v1589 = vpow.pop %v1588
        %v1590 = vmul.f32 %v1370, 1.442695
        %v1591 = vpow.pop %v1590
        %v1592 = vmul.f32 %v1371, 1.442695
        %v1593 = vpow.pop %v1592
        %v1594 = vmul.f32 %v1372, 1.442695
        %v1595 = vpow.pop %v1594
        %v1596 = vmul.f32 %v1373, 1.442695
        %v1597 = vpow.pop %v1596
        %v1598 = vmul.f32 %v1374, 1.442695
        %v1599 = vpow.pop %v1598
        %v1600 = vmul.f32 %v1375, 1.442695
        %v1601 = vpow.pop %v1600
        %v1602 = vmul.f32 %v1376, 1.442695
        %v1603 = vpow.pop %v1602
        %v1604 = vmul.f32 %v1377, 1.442695
        %v1605 = vpow.pop %v1604
        %v1606 = vmul.f32 %v1378, 1.442695
        %v1607 = vpow.pop %v1606
        %v1608 = vmul.f32 %v1379, 1.442695
        %v1609 = vpow.pop %v1608
        %v1610 = vmul.f32 %v1380, 1.442695
        %v1611 = vpow.pop %v1610
        %v1612 = vmul.f32 %v1381, 1.442695
        %v1613 = vpow.pop %v1612
        %v1614 = vmul.f32 %v1382, 1.442695
        %v1615 = vpow.pop %v1614
        %v1616 = vmul.f32 %v1383, 1.442695
        %v1617 = vpow.pop %v1616
        %v1618 = vmul.f32 %v1384, 1.442695
        %v1619 = vpow.pop %v1618
        %v1620 = vmul.f32 %v1385, 1.442695
        %v1621 = vpow.pop %v1620
        %v1622 = vmul.f32 %v1386, 1.442695
        %v1623 = vpow.pop %v1622
        %v1624 = vmul.f32 %v1387, 1.442695
        %v1625 = vpow.pop %v1624
        %v1626 = vmul.f32 %v1388, 1.442695
        %v1627 = vpow.pop %v1626
        %v1628 = vmul.f32 %v1389, 1.442695
        %v1629 = vpow.pop %v1628
        %v1630 = vmul.f32 %v1390, 1.442695
        %v1631 = vpow.pop %v1630
        %v1632 = vmul.f32 %v1391, 1.442695
        %v1633 = vpow.pop %v1632
        %v1634 = vmul.f32 %v1392, 1.442695
        %v1635 = vpow.pop %v1634
        %v1636 = vmul.f32 %v1393, 1.442695
        %v1637 = vpow.pop %v1636
        %v1638 = vmul.f32 %v1394, 1.442695
        %v1639 = vpow.pop %v1638
        %v1640 = vmul.f32 %v1395, 1.442695
        %v1641 = vpow.pop %v1640
        %v1642 = vmul.f32 %v1396, 1.442695
        %v1643 = vpow.pop %v1642
        %v1644 = vmul.f32 %v1397, 1.442695
        %v1645 = vpow.pop %v1644
        %v1646 = vmul.f32 %v1398, 1.442695
        %v1647 = vpow.pop %v1646
        %v1648 = vmul.f32 %v1399, 1.442695
        %v1649 = vpow.pop %v1648
        %v1650 = vmul.f32 %v1400, 1.442695
        %v1651 = vpow.pop %v1650
        %v1652 = vmul.f32 %v1401, 1.442695
        %v1653 = vpow.pop %v1652
        %v1654 = vmul.f32 %v1402, 1.442695
        %v1655 = vpow.pop %v1654
        %v1656 = vmul.f32 %v1403, 1.442695
        %v1657 = vpow.pop %v1656
        %v1658 = vmul.f32 %v1404, 1.442695
        %v1659 = vpow.pop %v1658
        %v1660 = vmul.f32 %v1405, 1.442695
        %v1661 = vpow.pop %v1660
        %v1662 = vld [vmem:[#allocation3] sm:$0x3]
        %v1663 = vmul.f32 %v1272, %v1662
        %v1664 = vadd.f32 %v1407, %v1411
        %v1665 = vadd.f32 %v1664, %v1415
        %v1666 = vadd.f32 %v1665, %v1419
        %v1667 = vadd.f32 %v1666, %v1423
        %v1668 = vadd.f32 %v1667, %v1427
        %v1669 = vadd.f32 %v1668, %v1431
        %v1670 = vadd.f32 %v1669, %v1435
        %v1671 = vadd.f32 %v1670, %v1439
        %v1672 = vadd.f32 %v1671, %v1443
        %v1673 = vadd.f32 %v1672, %v1447
        %v1674 = vadd.f32 %v1673, %v1451
        %v1675 = vadd.f32 %v1674, %v1455
        %v1676 = vadd.f32 %v1675, %v1459
        %v1677 = vadd.f32 %v1676, %v1463
        %v1678 = vadd.f32 %v1677, %v1467
        %v1679 = vadd.f32 %v1678, %v1471
        %v1680 = vadd.f32 %v1679, %v1475
        %v1681 = vadd.f32 %v1680, %v1479
        %v1682 = vadd.f32 %v1681, %v1483
        %v1683 = vadd.f32 %v1682, %v1487
        %v1684 = vadd.f32 %v1683, %v1491
        %v1685 = vadd.f32 %v1684, %v1495
        %v1686 = vadd.f32 %v1685, %v1499
        %v1687 = vadd.f32 %v1686, %v1503
        %v1688 = vadd.f32 %v1687, %v1507
        %v1689 = vadd.f32 %v1688, %v1511
        %v1690 = vadd.f32 %v1689, %v1515
        %v1691 = vadd.f32 %v1690, %v1519
        %v1692 = vadd.f32 %v1691, %v1523
        %v1693 = vadd.f32 %v1692, %v1527
        %v1694 = vadd.f32 %v1693, %v1531
        %v1695 = vadd.f32 %v1694, %v1535
        %v1696 = vadd.f32 %v1695, %v1539
        %v1697 = vadd.f32 %v1696, %v1543
        %v1698 = vadd.f32 %v1697, %v1547
        %v1699 = vadd.f32 %v1698, %v1551
        %v1700 = vadd.f32 %v1699, %v1555
        %v1701 = vadd.f32 %v1700, %v1559
        %v1702 = vadd.f32 %v1701, %v1563
        %v1703 = vadd.f32 %v1702, %v1567
        %v1704 = vadd.f32 %v1703, %v1571
        %v1705 = vadd.f32 %v1704, %v1575
        %v1706 = vadd.f32 %v1705, %v1579
        %v1707 = vadd.f32 %v1706, %v1583
        %v1708 = vadd.f32 %v1707, %v1587
        %v1709 = vadd.f32 %v1708, %v1591
        %v1710 = vadd.f32 %v1709, %v1595
        %v1711 = vadd.f32 %v1710, %v1599
        %v1712 = vadd.f32 %v1711, %v1603
        %v1713 = vadd.f32 %v1712, %v1607
        %v1714 = vadd.f32 %v1713, %v1611
        %v1715 = vadd.f32 %v1714, %v1615
        %v1716 = vadd.f32 %v1715, %v1619
        %v1717 = vadd.f32 %v1716, %v1623
        %v1718 = vadd.f32 %v1717, %v1627
        %v1719 = vadd.f32 %v1718, %v1631
        %v1720 = vadd.f32 %v1719, %v1635
        %v1721 = vadd.f32 %v1720, %v1639
        %v1722 = vadd.f32 %v1721, %v1643
        %v1723 = vadd.f32 %v1722, %v1647
        %v1724 = vadd.f32 %v1723, %v1651
        %v1725 = vadd.f32 %v1724, %v1655
        %v1726 = vadd.f32 %v1725, %v1659
        %v1727 = vrot.slane %v1726, 4
        %v1728 = vadd.f32 %v1726, %v1727
        %v1729 = vrot.slane %v1728, 2
        %v1730 = vadd.f32 %v1728, %v1729
        %v1731 = vrot.slane %v1730, 1
        %v1732 = vadd.f32 %v1730, %v1731
        %v1733 = vadd.f32 %v1409, %v1413
        %v1734 = vadd.f32 %v1733, %v1417
        %v1735 = vadd.f32 %v1734, %v1421
        %v1736 = vadd.f32 %v1735, %v1425
        %v1737 = vadd.f32 %v1736, %v1429
        %v1738 = vadd.f32 %v1737, %v1433
        %v1739 = vadd.f32 %v1738, %v1437
        %v1740 = vadd.f32 %v1739, %v1441
        %v1741 = vadd.f32 %v1740, %v1445
        %v1742 = vadd.f32 %v1741, %v1449
        %v1743 = vadd.f32 %v1742, %v1453
        %v1744 = vadd.f32 %v1743, %v1457
        %v1745 = vadd.f32 %v1744, %v1461
        %v1746 = vadd.f32 %v1745, %v1465
        %v1747 = vadd.f32 %v1746, %v1469
        %v1748 = vadd.f32 %v1747, %v1473
        %v1749 = vadd.f32 %v1748, %v1477
        %v1750 = vadd.f32 %v1749, %v1481
        %v1751 = vadd.f32 %v1750, %v1485
        %v1752 = vadd.f32 %v1751, %v1489
        %v1753 = vadd.f32 %v1752, %v1493
        %v1754 = vadd.f32 %v1753, %v1497
        %v1755 = vadd.f32 %v1754, %v1501
        %v1756 = vadd.f32 %v1755, %v1505
        %v1757 = vadd.f32 %v1756, %v1509
        %v1758 = vadd.f32 %v1757, %v1513
        %v1759 = vadd.f32 %v1758, %v1517
        %v1760 = vadd.f32 %v1759, %v1521
        %v1761 = vadd.f32 %v1760, %v1525
        %v1762 = vadd.f32 %v1761, %v1529
        %v1763 = vadd.f32 %v1762, %v1533
        %v1764 = vadd.f32 %v1763, %v1537
        %v1765 = vadd.f32 %v1764, %v1541
        %v1766 = vadd.f32 %v1765, %v1545
        %v1767 = vadd.f32 %v1766, %v1549
        %v1768 = vadd.f32 %v1767, %v1553
        %v1769 = vadd.f32 %v1768, %v1557
        %v1770 = vadd.f32 %v1769, %v1561
        %v1771 = vadd.f32 %v1770, %v1565
        %v1772 = vadd.f32 %v1771, %v1569
        %v1773 = vadd.f32 %v1772, %v1573
        %v1774 = vadd.f32 %v1773, %v1577
        %v1775 = vadd.f32 %v1774, %v1581
        %v1776 = vadd.f32 %v1775, %v1585
        %v1777 = vadd.f32 %v1776, %v1589
        %v1778 = vadd.f32 %v1777, %v1593
        %v1779 = vadd.f32 %v1778, %v1597
        %v1780 = vadd.f32 %v1779, %v1601
        %v1781 = vadd.f32 %v1780, %v1605
        %v1782 = vadd.f32 %v1781, %v1609
        %v1783 = vadd.f32 %v1782, %v1613
        %v1784 = vadd.f32 %v1783, %v1617
        %v1785 = vadd.f32 %v1784, %v1621
        %v1786 = vadd.f32 %v1785, %v1625
        %v1787 = vadd.f32 %v1786, %v1629
        %v1788 = vadd.f32 %v1787, %v1633
        %v1789 = vadd.f32 %v1788, %v1637
        %v1790 = vadd.f32 %v1789, %v1641
        %v1791 = vadd.f32 %v1790, %v1645
        %v1792 = vadd.f32 %v1791, %v1649
        %v1793 = vadd.f32 %v1792, %v1653
        %v1794 = vadd.f32 %v1793, %v1657
        %v1795 = vadd.f32 %v1794, %v1661
        %v1796 = vrot.slane %v1795, 4
        %v1797 = vadd.f32 %v1795, %v1796
        %v1798 = vrot.slane %v1797, 2
        %v1799 = vadd.f32 %v1797, %v1798
        %v1800 = vrot.slane %v1799, 1
        %v1801 = vadd.f32 %v1799, %v1800
        %v1804 = vrot.slane %v1801, 7
        %v1805 = vsel %vm1266, %v1732, %v1804
        %v1807 = vadd.f32 %v1663, %v1805
        %v1808 = vlaneseq
        %vm1809 = vcmp.ge.s32.totalorder %v1808, 0
        %vm1810 = vcmp.lt.s32.totalorder %v1808, 256
        %vm1811 = vmand %vm1809, %vm1810
        %1812 = vst.msk [vmem:[#allocation3] sm:$0x3] %vm1811, %v1807
        %v1813 = vld [vmem:[#allocation4] sm:$0xff]
        %v1814 = vld [vmem:[#allocation4 + $0x8] sm:$0xff]
        %v1815 = vld [vmem:[#allocation4 + $0x10] sm:$0xff]
        %v1816 = vld [vmem:[#allocation4 + $0x18] sm:$0xff]
        %v1817 = vld [vmem:[#allocation4 + $0x20] sm:$0xff]
        %v1818 = vld [vmem:[#allocation4 + $0x28] sm:$0xff]
        %v1819 = vld [vmem:[#allocation4 + $0x30] sm:$0xff]
        %v1820 = vld [vmem:[#allocation4 + $0x38] sm:$0xff]
        %v1822 = vperm.slane %v1272, 0
        %v1823 = vperm.slane %v1272, 1
        %v1826 = vmul.f32 %v1822, %v1813
        %v1827 = vmul.f32 %v1823, %v1814
        %v1828 = vmul.f32 %v1822, %v1815
        %v1829 = vmul.f32 %v1823, %v1816
        %v1830 = vmul.f32 %v1822, %v1817
        %v1831 = vmul.f32 %v1823, %v1818
        %v1832 = vmul.f32 %v1822, %v1819
        %v1833 = vmul.f32 %v1823, %v1820
        %1834 = vmatpush.msra.mxu0 %v1467
        %1835 = vmatpush.msra.mxu0 %v1463
        %1836 = vmatpush.msra.mxu0 %v1459
        %1837 = vmatpush.msra.mxu0 %v1455
        %1838 = vmatpush.msra.mxu0 %v1451
        %1839 = vmatpush.msra.mxu0 %v1447
        %1840 = vmatpush.msra.mxu0 %v1443
        %1841 = vmatpush.msra.mxu0 %v1439
        %1842 = vmatpush.msra.mxu0 %v1435
        %1843 = vmatpush.msra.mxu0 %v1431
        %1844 = vmatpush.msra.mxu0 %v1427
        %1845 = vmatpush.msra.mxu0 %v1423
        %1846 = vmatpush.msra.mxu0 %v1419
        %1847 = vmatpush.msra.mxu0 %v1415
        %1848 = vmatpush.msra.mxu0 %v1411
        %1849 = vmatpush.msra.mxu0 %v1407
        %1850 = vmatmul.f32.gmra.mxu0 %v369
        %v1851 = vpop.f32.mrf.mxu0
        %v1852 = vadd.f32 0.0, %v1851
        %1853 = vmatmul.f32.gmra.mxu0 %v373
        %v1854 = vpop.f32.mrf.mxu0
        %v1855 = vadd.f32 0.0, %v1854
        %1856 = vmatmul.f32.gmra.mxu0 %v377
        %v1857 = vpop.f32.mrf.mxu0
        %v1858 = vadd.f32 0.0, %v1857
        %1859 = vmatmul.f32.gmra.mxu0 %v381
        %v1860 = vpop.f32.mrf.mxu0
        %v1861 = vadd.f32 0.0, %v1860
        %1862 = vdwg.mxu0
        %1863 = vmatpush.msra.mxu0 %v1531
        %1864 = vmatpush.msra.mxu0 %v1527
        %1865 = vmatpush.msra.mxu0 %v1523
        %1866 = vmatpush.msra.mxu0 %v1519
        %1867 = vmatpush.msra.mxu0 %v1515
        %1868 = vmatpush.msra.mxu0 %v1511
        %1869 = vmatpush.msra.mxu0 %v1507
        %1870 = vmatpush.msra.mxu0 %v1503
        %1871 = vmatpush.msra.mxu0 %v1499
        %1872 = vmatpush.msra.mxu0 %v1495
        %1873 = vmatpush.msra.mxu0 %v1491
        %1874 = vmatpush.msra.mxu0 %v1487
        %1875 = vmatpush.msra.mxu0 %v1483
        %1876 = vmatpush.msra.mxu0 %v1479
        %1877 = vmatpush.msra.mxu0 %v1475
        %1878 = vmatpush.msra.mxu0 %v1471
        %1879 = vmatmul.f32.gmra.mxu0 %v370
        %v1880 = vpop.f32.mrf.mxu0
        %v1881 = vadd.f32 %v1852, %v1880
        %1882 = vmatmul.f32.gmra.mxu0 %v374
        %v1883 = vpop.f32.mrf.mxu0
        %v1884 = vadd.f32 %v1855, %v1883
        %1885 = vmatmul.f32.gmra.mxu0 %v378
        %v1886 = vpop.f32.mrf.mxu0
        %v1887 = vadd.f32 %v1858, %v1886
        %1888 = vmatmul.f32.gmra.mxu0 %v382
        %v1889 = vpop.f32.mrf.mxu0
        %v1890 = vadd.f32 %v1861, %v1889
        %1891 = vdwg.mxu0
        %1892 = vmatpush.msra.mxu0 %v1595
        %1893 = vmatpush.msra.mxu0 %v1591
        %1894 = vmatpush.msra.mxu0 %v1587
        %1895 = vmatpush.msra.mxu0 %v1583
        %1896 = vmatpush.msra.mxu0 %v1579
        %1897 = vmatpush.msra.mxu0 %v1575
        %1898 = vmatpush.msra.mxu0 %v1571
        %1899 = vmatpush.msra.mxu0 %v1567
        %1900 = vmatpush.msra.mxu0 %v1563
        %1901 = vmatpush.msra.mxu0 %v1559
        %1902 = vmatpush.msra.mxu0 %v1555
        %1903 = vmatpush.msra.mxu0 %v1551
        %1904 = vmatpush.msra.mxu0 %v1547
        %1905 = vmatpush.msra.mxu0 %v1543
        %1906 = vmatpush.msra.mxu0 %v1539
        %1907 = vmatpush.msra.mxu0 %v1535
        %1908 = vmatmul.f32.gmra.mxu0 %v371
        %v1909 = vpop.f32.mrf.mxu0
        %v1910 = vadd.f32 %v1881, %v1909
        %1911 = vmatmul.f32.gmra.mxu0 %v375
        %v1912 = vpop.f32.mrf.mxu0
        %v1913 = vadd.f32 %v1884, %v1912
        %1914 = vmatmul.f32.gmra.mxu0 %v379
        %v1915 = vpop.f32.mrf.mxu0
        %v1916 = vadd.f32 %v1887, %v1915
        %1917 = vmatmul.f32.gmra.mxu0 %v383
        %v1918 = vpop.f32.mrf.mxu0
        %v1919 = vadd.f32 %v1890, %v1918
        %1920 = vdwg.mxu0
        %1921 = vmatpush.msra.mxu0 %v1659
        %1922 = vmatpush.msra.mxu0 %v1655
        %1923 = vmatpush.msra.mxu0 %v1651
        %1924 = vmatpush.msra.mxu0 %v1647
        %1925 = vmatpush.msra.mxu0 %v1643
        %1926 = vmatpush.msra.mxu0 %v1639
        %1927 = vmatpush.msra.mxu0 %v1635
        %1928 = vmatpush.msra.mxu0 %v1631
        %1929 = vmatpush.msra.mxu0 %v1627
        %1930 = vmatpush.msra.mxu0 %v1623
        %1931 = vmatpush.msra.mxu0 %v1619
        %1932 = vmatpush.msra.mxu0 %v1615
        %1933 = vmatpush.msra.mxu0 %v1611
        %1934 = vmatpush.msra.mxu0 %v1607
        %1935 = vmatpush.msra.mxu0 %v1603
        %1936 = vmatpush.msra.mxu0 %v1599
        %1937 = vmatmul.f32.gmra.mxu0 %v372
        %v1938 = vpop.f32.mrf.mxu0
        %v1939 = vadd.f32 %v1910, %v1938
        %1940 = vmatmul.f32.gmra.mxu0 %v376
        %v1941 = vpop.f32.mrf.mxu0
        %v1942 = vadd.f32 %v1913, %v1941
        %1943 = vmatmul.f32.gmra.mxu0 %v380
        %v1944 = vpop.f32.mrf.mxu0
        %v1945 = vadd.f32 %v1916, %v1944
        %1946 = vmatmul.f32.gmra.mxu0 %v384
        %v1947 = vpop.f32.mrf.mxu0
        %v1948 = vadd.f32 %v1919, %v1947
        %1949 = vdwg.mxu0
        %1950 = vmatpush.msra.mxu0 %v1469
        %1951 = vmatpush.msra.mxu0 %v1465
        %1952 = vmatpush.msra.mxu0 %v1461
        %1953 = vmatpush.msra.mxu0 %v1457
        %1954 = vmatpush.msra.mxu0 %v1453
        %1955 = vmatpush.msra.mxu0 %v1449
        %1956 = vmatpush.msra.mxu0 %v1445
        %1957 = vmatpush.msra.mxu0 %v1441
        %1958 = vmatpush.msra.mxu0 %v1437
        %1959 = vmatpush.msra.mxu0 %v1433
        %1960 = vmatpush.msra.mxu0 %v1429
        %1961 = vmatpush.msra.mxu0 %v1425
        %1962 = vmatpush.msra.mxu0 %v1421
        %1963 = vmatpush.msra.mxu0 %v1417
        %1964 = vmatpush.msra.mxu0 %v1413
        %1965 = vmatpush.msra.mxu0 %v1409
        %1966 = vmatmul.f32.gmra.mxu0 %v369
        %v1967 = vpop.f32.mrf.mxu0
        %v1968 = vadd.f32 0.0, %v1967
        %1969 = vmatmul.f32.gmra.mxu0 %v373
        %v1970 = vpop.f32.mrf.mxu0
        %v1971 = vadd.f32 0.0, %v1970
        %1972 = vmatmul.f32.gmra.mxu0 %v377
        %v1973 = vpop.f32.mrf.mxu0
        %v1974 = vadd.f32 0.0, %v1973
        %1975 = vmatmul.f32.gmra.mxu0 %v381
        %v1976 = vpop.f32.mrf.mxu0
        %v1977 = vadd.f32 0.0, %v1976
        %1978 = vdwg.mxu0
        %1979 = vmatpush.msra.mxu0 %v1533
        %1980 = vmatpush.msra.mxu0 %v1529
        %1981 = vmatpush.msra.mxu0 %v1525
        %1982 = vmatpush.msra.mxu0 %v1521
        %1983 = vmatpush.msra.mxu0 %v1517
        %1984 = vmatpush.msra.mxu0 %v1513
        %1985 = vmatpush.msra.mxu0 %v1509
        %1986 = vmatpush.msra.mxu0 %v1505
        %1987 = vmatpush.msra.mxu0 %v1501
        %1988 = vmatpush.msra.mxu0 %v1497
        %1989 = vmatpush.msra.mxu0 %v1493
        %1990 = vmatpush.msra.mxu0 %v1489
        %1991 = vmatpush.msra.mxu0 %v1485
        %1992 = vmatpush.msra.mxu0 %v1481
        %1993 = vmatpush.msra.mxu0 %v1477
        %1994 = vmatpush.msra.mxu0 %v1473
        %1995 = vmatmul.f32.gmra.mxu0 %v370
        %v1996 = vpop.f32.mrf.mxu0
        %v1997 = vadd.f32 %v1968, %v1996
        %1998 = vmatmul.f32.gmra.mxu0 %v374
        %v1999 = vpop.f32.mrf.mxu0
        %v2000 = vadd.f32 %v1971, %v1999
        %2001 = vmatmul.f32.gmra.mxu0 %v378
        %v2002 = vpop.f32.mrf.mxu0
        %v2003 = vadd.f32 %v1974, %v2002
        %2004 = vmatmul.f32.gmra.mxu0 %v382
        %v2005 = vpop.f32.mrf.mxu0
        %v2006 = vadd.f32 %v1977, %v2005
        %2007 = vdwg.mxu0
        %2008 = vmatpush.msra.mxu0 %v1597
        %2009 = vmatpush.msra.mxu0 %v1593
        %2010 = vmatpush.msra.mxu0 %v1589
        %2011 = vmatpush.msra.mxu0 %v1585
        %2012 = vmatpush.msra.mxu0 %v1581
        %2013 = vmatpush.msra.mxu0 %v1577
        %2014 = vmatpush.msra.mxu0 %v1573
        %2015 = vmatpush.msra.mxu0 %v1569
        %2016 = vmatpush.msra.mxu0 %v1565
        %2017 = vmatpush.msra.mxu0 %v1561
        %2018 = vmatpush.msra.mxu0 %v1557
        %2019 = vmatpush.msra.mxu0 %v1553
        %2020 = vmatpush.msra.mxu0 %v1549
        %2021 = vmatpush.msra.mxu0 %v1545
        %2022 = vmatpush.msra.mxu0 %v1541
        %2023 = vmatpush.msra.mxu0 %v1537
        %2024 = vmatmul.f32.gmra.mxu0 %v371
        %v2025 = vpop.f32.mrf.mxu0
        %v2026 = vadd.f32 %v1997, %v2025
        %2027 = vmatmul.f32.gmra.mxu0 %v375
        %v2028 = vpop.f32.mrf.mxu0
        %v2029 = vadd.f32 %v2000, %v2028
        %2030 = vmatmul.f32.gmra.mxu0 %v379
        %v2031 = vpop.f32.mrf.mxu0
        %v2032 = vadd.f32 %v2003, %v2031
        %2033 = vmatmul.f32.gmra.mxu0 %v383
        %v2034 = vpop.f32.mrf.mxu0
        %v2035 = vadd.f32 %v2006, %v2034
        %2036 = vdwg.mxu0
        %2037 = vmatpush.msra.mxu0 %v1661
        %2038 = vmatpush.msra.mxu0 %v1657
        %2039 = vmatpush.msra.mxu0 %v1653
        %2040 = vmatpush.msra.mxu0 %v1649
        %2041 = vmatpush.msra.mxu0 %v1645
        %2042 = vmatpush.msra.mxu0 %v1641
        %2043 = vmatpush.msra.mxu0 %v1637
        %2044 = vmatpush.msra.mxu0 %v1633
        %2045 = vmatpush.msra.mxu0 %v1629
        %2046 = vmatpush.msra.mxu0 %v1625
        %2047 = vmatpush.msra.mxu0 %v1621
        %2048 = vmatpush.msra.mxu0 %v1617
        %2049 = vmatpush.msra.mxu0 %v1613
        %2050 = vmatpush.msra.mxu0 %v1609
        %2051 = vmatpush.msra.mxu0 %v1605
        %2052 = vmatpush.msra.mxu0 %v1601
        %2053 = vmatmul.f32.gmra.mxu0 %v372
        %v2054 = vpop.f32.mrf.mxu0
        %v2055 = vadd.f32 %v2026, %v2054
        %2056 = vmatmul.f32.gmra.mxu0 %v376
        %v2057 = vpop.f32.mrf.mxu0
        %v2058 = vadd.f32 %v2029, %v2057
        %2059 = vmatmul.f32.gmra.mxu0 %v380
        %v2060 = vpop.f32.mrf.mxu0
        %v2061 = vadd.f32 %v2032, %v2060
        %2062 = vmatmul.f32.gmra.mxu0 %v384
        %v2063 = vpop.f32.mrf.mxu0
        %v2064 = vadd.f32 %v2035, %v2063
        %2065 = vdwg.mxu0
        %v2066 = vadd.f32 %v1826, %v1939
        %v2067 = vadd.f32 %v1827, %v2055
        %v2068 = vadd.f32 %v1828, %v1942
        %v2069 = vadd.f32 %v1829, %v2058
        %v2070 = vadd.f32 %v1830, %v1945
        %v2071 = vadd.f32 %v1831, %v2061
        %v2072 = vadd.f32 %v1832, %v1948
        %v2073 = vadd.f32 %v1833, %v2064
        %2074 = vst [vmem:[#allocation4] sm:$0xff] %v2066
        %2075 = vst [vmem:[#allocation4 + $0x8] sm:$0xff] %v2067
        %2076 = vst [vmem:[#allocation4 + $0x10] sm:$0xff] %v2068
        %2077 = vst [vmem:[#allocation4 + $0x18] sm:$0xff] %v2069
        %2078 = vst [vmem:[#allocation4 + $0x20] sm:$0xff] %v2070
        %2079 = vst [vmem:[#allocation4 + $0x28] sm:$0xff] %v2071
        %2080 = vst [vmem:[#allocation4 + $0x30] sm:$0xff] %v2072
        %2081 = vst [vmem:[#allocation4 + $0x38] sm:$0xff] %v2073
        %2082 = vst.msk [vmem:[#allocation2] sm:$0x3] %vm1811, %v1269
        %s2083 = scalar_lea.vmem %s251, 64 [#allocation5]
        %v2084 = vld [vmem:[%s2083] sm:$0xff]
        %v2085 = vld [vmem:[%s2083 + $0x8] sm:$0xff]
        %v2086 = vld [vmem:[%s2083 + $0x10] sm:$0xff]
        %v2087 = vld [vmem:[%s2083 + $0x18] sm:$0xff]
        %v2088 = vld [vmem:[%s2083 + $0x20] sm:$0xff]
        %v2089 = vld [vmem:[%s2083 + $0x28] sm:$0xff]
        %v2090 = vld [vmem:[%s2083 + $0x30] sm:$0xff]
        %v2091 = vld [vmem:[%s2083 + $0x38] sm:$0xff]
        %v2092 = vmul.f32 %v2084, 0.17677669
        %v2093 = vmul.f32 %v2085, 0.17677669
        %v2094 = vmul.f32 %v2086, 0.17677669
        %v2095 = vmul.f32 %v2087, 0.17677669
        %v2096 = vmul.f32 %v2088, 0.17677669
        %v2097 = vmul.f32 %v2089, 0.17677669
        %v2098 = vmul.f32 %v2090, 0.17677669
        %v2099 = vmul.f32 %v2091, 0.17677669
        %s2100 = scalar_lea.vmem %s261, 128 [#allocation8]
        %v2101 = vld [vmem:[%s2100] sm:$0xff]
        %v2102 = vld [vmem:[%s2100 + $0x8] sm:$0xff]
        %v2103 = vld [vmem:[%s2100 + $0x10] sm:$0xff]
        %v2104 = vld [vmem:[%s2100 + $0x18] sm:$0xff]
        %v2105 = vld [vmem:[%s2100 + $0x20] sm:$0xff]
        %v2106 = vld [vmem:[%s2100 + $0x28] sm:$0xff]
        %v2107 = vld [vmem:[%s2100 + $0x30] sm:$0xff]
        %v2108 = vld [vmem:[%s2100 + $0x38] sm:$0xff]
        %v2109 = vld [vmem:[%s2100 + $0x40] sm:$0xff]
        %v2110 = vld [vmem:[%s2100 + $0x48] sm:$0xff]
        %v2111 = vld [vmem:[%s2100 + $0x50] sm:$0xff]
        %v2112 = vld [vmem:[%s2100 + $0x58] sm:$0xff]
        %v2113 = vld [vmem:[%s2100 + $0x60] sm:$0xff]
        %v2114 = vld [vmem:[%s2100 + $0x68] sm:$0xff]
        %v2115 = vld [vmem:[%s2100 + $0x70] sm:$0xff]
        %v2116 = vld [vmem:[%s2100 + $0x78] sm:$0xff]
        %s2117 = scalar_lea.vmem %s271, 128 [#allocation10]
        %v2118 = vld [vmem:[%s2117] sm:$0xff]
        %v2119 = vld [vmem:[%s2117 + $0x8] sm:$0xff]
        %v2120 = vld [vmem:[%s2117 + $0x10] sm:$0xff]
        %v2121 = vld [vmem:[%s2117 + $0x18] sm:$0xff]
        %v2122 = vld [vmem:[%s2117 + $0x20] sm:$0xff]
        %v2123 = vld [vmem:[%s2117 + $0x28] sm:$0xff]
        %v2124 = vld [vmem:[%s2117 + $0x30] sm:$0xff]
        %v2125 = vld [vmem:[%s2117 + $0x38] sm:$0xff]
        %v2126 = vld [vmem:[%s2117 + $0x40] sm:$0xff]
        %v2127 = vld [vmem:[%s2117 + $0x48] sm:$0xff]
        %v2128 = vld [vmem:[%s2117 + $0x50] sm:$0xff]
        %v2129 = vld [vmem:[%s2117 + $0x58] sm:$0xff]
        %v2130 = vld [vmem:[%s2117 + $0x60] sm:$0xff]
        %v2131 = vld [vmem:[%s2117 + $0x68] sm:$0xff]
        %v2132 = vld [vmem:[%s2117 + $0x70] sm:$0xff]
        %v2133 = vld [vmem:[%s2117 + $0x78] sm:$0xff]
        %2134 = vxpose.xlu0.b32.start [1/16] %v2101, 128
        %2135 = vxpose.xlu0.b32.cont [2/16] %v2105, 128
        %2136 = vxpose.xlu0.b32.cont [3/16] %v2109, 128
        %2137 = vxpose.xlu0.b32.cont [4/16] %v2113, 128
        %2138 = vxpose.xlu0.b32.cont [5/16] 0.0, 128
        %2139 = vxpose.xlu0.b32.cont [6/16] 0.0, 128
        %2140 = vxpose.xlu0.b32.cont [7/16] 0.0, 128
        %2141 = vxpose.xlu0.b32.cont [8/16] 0.0, 128
        %2142 = vxpose.xlu0.b32.cont [9/16] 0.0, 128
        %2143 = vxpose.xlu0.b32.cont [10/16] 0.0, 128
        %2144 = vxpose.xlu0.b32.cont [11/16] 0.0, 128
        %2145 = vxpose.xlu0.b32.cont [12/16] 0.0, 128
        %2146 = vxpose.xlu0.b32.cont [13/16] 0.0, 128
        %2147 = vxpose.xlu0.b32.cont [14/16] 0.0, 128
        %2148 = vxpose.xlu0.b32.cont [15/16] 0.0, 128
        %2149 = vxpose.xlu0.b32.end [16/16] 0.0, 128
        %v2150 = vpop.trf.xlu0
        %v2151 = vpop.trf.xlu0
        %v2152 = vpop.trf.xlu0
        %v2153 = vpop.trf.xlu0
        %v2154 = vpop.trf.xlu0
        %v2155 = vpop.trf.xlu0
        %v2156 = vpop.trf.xlu0
        %v2157 = vpop.trf.xlu0
        %v2158 = vpop.trf.xlu0
        %v2159 = vpop.trf.xlu0
        %v2160 = vpop.trf.xlu0
        %v2161 = vpop.trf.xlu0
        %v2162 = vpop.trf.xlu0
        %v2163 = vpop.trf.xlu0
        %v2164 = vpop.trf.xlu0
        %v2165 = vpop.trf.xlu0
        %2166 = vxpose.xlu0.b32.start [1/16] %v2102, 128
        %2167 = vxpose.xlu0.b32.cont [2/16] %v2106, 128
        %2168 = vxpose.xlu0.b32.cont [3/16] %v2110, 128
        %2169 = vxpose.xlu0.b32.cont [4/16] %v2114, 128
        %2170 = vxpose.xlu0.b32.cont [5/16] 0.0, 128
        %2171 = vxpose.xlu0.b32.cont [6/16] 0.0, 128
        %2172 = vxpose.xlu0.b32.cont [7/16] 0.0, 128
        %2173 = vxpose.xlu0.b32.cont [8/16] 0.0, 128
        %2174 = vxpose.xlu0.b32.cont [9/16] 0.0, 128
        %2175 = vxpose.xlu0.b32.cont [10/16] 0.0, 128
        %2176 = vxpose.xlu0.b32.cont [11/16] 0.0, 128
        %2177 = vxpose.xlu0.b32.cont [12/16] 0.0, 128
        %2178 = vxpose.xlu0.b32.cont [13/16] 0.0, 128
        %2179 = vxpose.xlu0.b32.cont [14/16] 0.0, 128
        %2180 = vxpose.xlu0.b32.cont [15/16] 0.0, 128
        %2181 = vxpose.xlu0.b32.end [16/16] 0.0, 128
        %v2182 = vpop.trf.xlu0
        %v2183 = vpop.trf.xlu0
        %v2184 = vpop.trf.xlu0
        %v2185 = vpop.trf.xlu0
        %v2186 = vpop.trf.xlu0
        %v2187 = vpop.trf.xlu0
        %v2188 = vpop.trf.xlu0
        %v2189 = vpop.trf.xlu0
        %v2190 = vpop.trf.xlu0
        %v2191 = vpop.trf.xlu0
        %v2192 = vpop.trf.xlu0
        %v2193 = vpop.trf.xlu0
        %v2194 = vpop.trf.xlu0
        %v2195 = vpop.trf.xlu0
        %v2196 = vpop.trf.xlu0
        %v2197 = vpop.trf.xlu0
        %2198 = vxpose.xlu0.b32.start [1/16] %v2103, 128
        %2199 = vxpose.xlu0.b32.cont [2/16] %v2107, 128
        %2200 = vxpose.xlu0.b32.cont [3/16] %v2111, 128
        %2201 = vxpose.xlu0.b32.cont [4/16] %v2115, 128
        %2202 = vxpose.xlu0.b32.cont [5/16] 0.0, 128
        %2203 = vxpose.xlu0.b32.cont [6/16] 0.0, 128
        %2204 = vxpose.xlu0.b32.cont [7/16] 0.0, 128
        %2205 = vxpose.xlu0.b32.cont [8/16] 0.0, 128
        %2206 = vxpose.xlu0.b32.cont [9/16] 0.0, 128
        %2207 = vxpose.xlu0.b32.cont [10/16] 0.0, 128
        %2208 = vxpose.xlu0.b32.cont [11/16] 0.0, 128
        %2209 = vxpose.xlu0.b32.cont [12/16] 0.0, 128
        %2210 = vxpose.xlu0.b32.cont [13/16] 0.0, 128
        %2211 = vxpose.xlu0.b32.cont [14/16] 0.0, 128
        %2212 = vxpose.xlu0.b32.cont [15/16] 0.0, 128
        %2213 = vxpose.xlu0.b32.end [16/16] 0.0, 128
        %v2214 = vpop.trf.xlu0
        %v2215 = vpop.trf.xlu0
        %v2216 = vpop.trf.xlu0
        %v2217 = vpop.trf.xlu0
        %v2218 = vpop.trf.xlu0
        %v2219 = vpop.trf.xlu0
        %v2220 = vpop.trf.xlu0
        %v2221 = vpop.trf.xlu0
        %v2222 = vpop.trf.xlu0
        %v2223 = vpop.trf.xlu0
        %v2224 = vpop.trf.xlu0
        %v2225 = vpop.trf.xlu0
        %v2226 = vpop.trf.xlu0
        %v2227 = vpop.trf.xlu0
        %v2228 = vpop.trf.xlu0
        %v2229 = vpop.trf.xlu0
        %2230 = vxpose.xlu0.b32.start [1/16] %v2104, 128
        %2231 = vxpose.xlu0.b32.cont [2/16] %v2108, 128
        %2232 = vxpose.xlu0.b32.cont [3/16] %v2112, 128
        %2233 = vxpose.xlu0.b32.cont [4/16] %v2116, 128
        %2234 = vxpose.xlu0.b32.cont [5/16] 0.0, 128
        %2235 = vxpose.xlu0.b32.cont [6/16] 0.0, 128
        %2236 = vxpose.xlu0.b32.cont [7/16] 0.0, 128
        %2237 = vxpose.xlu0.b32.cont [8/16] 0.0, 128
        %2238 = vxpose.xlu0.b32.cont [9/16] 0.0, 128
        %2239 = vxpose.xlu0.b32.cont [10/16] 0.0, 128
        %2240 = vxpose.xlu0.b32.cont [11/16] 0.0, 128
        %2241 = vxpose.xlu0.b32.cont [12/16] 0.0, 128
        %2242 = vxpose.xlu0.b32.cont [13/16] 0.0, 128
        %2243 = vxpose.xlu0.b32.cont [14/16] 0.0, 128
        %2244 = vxpose.xlu0.b32.cont [15/16] 0.0, 128
        %2245 = vxpose.xlu0.b32.end [16/16] 0.0, 128
        %v2246 = vpop.trf.xlu0
        %v2247 = vpop.trf.xlu0
        %v2248 = vpop.trf.xlu0
        %v2249 = vpop.trf.xlu0
        %v2250 = vpop.trf.xlu0
        %v2251 = vpop.trf.xlu0
        %v2252 = vpop.trf.xlu0
        %v2253 = vpop.trf.xlu0
        %v2254 = vpop.trf.xlu0
        %v2255 = vpop.trf.xlu0
        %v2256 = vpop.trf.xlu0
        %v2257 = vpop.trf.xlu0
        %v2258 = vpop.trf.xlu0
        %v2259 = vpop.trf.xlu0
        %v2260 = vpop.trf.xlu0
        %v2261 = vpop.trf.xlu0
        %v2263 = vsel %vm513, %v2150, 0
        %v2266 = vsel %vm513, %v2151, 0
        %v2269 = vsel %vm513, %v2152, 0
        %v2272 = vsel %vm513, %v2153, 0
        %v2275 = vsel %vm513, %v2154, 0
        %v2278 = vsel %vm513, %v2155, 0
        %v2281 = vsel %vm513, %v2156, 0
        %v2284 = vsel %vm513, %v2157, 0
        %v2287 = vsel %vm513, %v2158, 0
        %v2290 = vsel %vm513, %v2159, 0
        %v2293 = vsel %vm513, %v2160, 0
        %v2296 = vsel %vm513, %v2161, 0
        %v2299 = vsel %vm513, %v2162, 0
        %v2302 = vsel %vm513, %v2163, 0
        %v2305 = vsel %vm513, %v2164, 0
        %v2308 = vsel %vm513, %v2165, 0
        %v2311 = vsel %vm513, %v2182, 0
        %v2314 = vsel %vm513, %v2183, 0
        %v2317 = vsel %vm513, %v2184, 0
        %v2320 = vsel %vm513, %v2185, 0
        %v2323 = vsel %vm513, %v2186, 0
        %v2326 = vsel %vm513, %v2187, 0
        %v2329 = vsel %vm513, %v2188, 0
        %v2332 = vsel %vm513, %v2189, 0
        %v2335 = vsel %vm513, %v2190, 0
        %v2338 = vsel %vm513, %v2191, 0
        %v2341 = vsel %vm513, %v2192, 0
        %v2344 = vsel %vm513, %v2193, 0
        %v2347 = vsel %vm513, %v2194, 0
        %v2350 = vsel %vm513, %v2195, 0
        %v2353 = vsel %vm513, %v2196, 0
        %v2356 = vsel %vm513, %v2197, 0
        %v2359 = vsel %vm513, %v2214, 0
        %v2362 = vsel %vm513, %v2215, 0
        %v2365 = vsel %vm513, %v2216, 0
        %v2368 = vsel %vm513, %v2217, 0
        %v2371 = vsel %vm513, %v2218, 0
        %v2374 = vsel %vm513, %v2219, 0
        %v2377 = vsel %vm513, %v2220, 0
        %v2380 = vsel %vm513, %v2221, 0
        %v2383 = vsel %vm513, %v2222, 0
        %v2386 = vsel %vm513, %v2223, 0
        %v2389 = vsel %vm513, %v2224, 0
        %v2392 = vsel %vm513, %v2225, 0
        %v2395 = vsel %vm513, %v2226, 0
        %v2398 = vsel %vm513, %v2227, 0
        %v2401 = vsel %vm513, %v2228, 0
        %v2404 = vsel %vm513, %v2229, 0
        %v2407 = vsel %vm513, %v2246, 0
        %v2410 = vsel %vm513, %v2247, 0
        %v2413 = vsel %vm513, %v2248, 0
        %v2416 = vsel %vm513, %v2249, 0
        %v2419 = vsel %vm513, %v2250, 0
        %v2422 = vsel %vm513, %v2251, 0
        %v2425 = vsel %vm513, %v2252, 0
        %v2428 = vsel %vm513, %v2253, 0
        %v2431 = vsel %vm513, %v2254, 0
        %v2434 = vsel %vm513, %v2255, 0
        %v2437 = vsel %vm513, %v2256, 0
        %v2440 = vsel %vm513, %v2257, 0
        %v2443 = vsel %vm513, %v2258, 0
        %v2446 = vsel %vm513, %v2259, 0
        %v2449 = vsel %vm513, %v2260, 0
        %v2452 = vsel %vm513, %v2261, 0
        %2454 = vmatpush.msra.mxu0 0.0
        %2455 = vmatpush.msra.mxu0 0.0
        %2456 = vmatpush.msra.mxu0 0.0
        %2457 = vmatpush.msra.mxu0 0.0
        %2458 = vmatpush.msra.mxu0 0.0
        %2459 = vmatpush.msra.mxu0 0.0
        %2460 = vmatpush.msra.mxu0 0.0
        %2461 = vmatpush.msra.mxu0 0.0
        %2462 = vmatpush.msra.mxu0 0.0
        %2463 = vmatpush.msra.mxu0 0.0
        %2464 = vmatpush.msra.mxu0 0.0
        %2465 = vmatpush.msra.mxu0 0.0
        %2466 = vmatpush.msra.mxu0 %v2098
        %2467 = vmatpush.msra.mxu0 %v2096
        %2468 = vmatpush.msra.mxu0 %v2094
        %2469 = vmatpush.msra.mxu0 %v2092
        %2470 = vmatmul.f32.gmra.mxu0 %v2263
        %v2471 = vpop.f32.mrf.mxu0
        %v2472 = vadd.f32 0.0, %v2471
        %2473 = vmatmul.f32.gmra.mxu0 %v2266
        %v2474 = vpop.f32.mrf.mxu0
        %v2475 = vadd.f32 0.0, %v2474
        %2476 = vmatmul.f32.gmra.mxu0 %v2269
        %v2477 = vpop.f32.mrf.mxu0
        %v2478 = vadd.f32 0.0, %v2477
        %2479 = vmatmul.f32.gmra.mxu0 %v2272
        %v2480 = vpop.f32.mrf.mxu0
        %v2481 = vadd.f32 0.0, %v2480
        %2482 = vmatmul.f32.gmra.mxu0 %v2275
        %v2483 = vpop.f32.mrf.mxu0
        %v2484 = vadd.f32 0.0, %v2483
        %2485 = vmatmul.f32.gmra.mxu0 %v2278
        %v2486 = vpop.f32.mrf.mxu0
        %v2487 = vadd.f32 0.0, %v2486
        %2488 = vmatmul.f32.gmra.mxu0 %v2281
        %v2489 = vpop.f32.mrf.mxu0
        %v2490 = vadd.f32 0.0, %v2489
        %2491 = vmatmul.f32.gmra.mxu0 %v2284
        %v2492 = vpop.f32.mrf.mxu0
        %v2493 = vadd.f32 0.0, %v2492
        %2494 = vmatmul.f32.gmra.mxu0 %v2287
        %v2495 = vpop.f32.mrf.mxu0
        %v2496 = vadd.f32 0.0, %v2495
        %2497 = vmatmul.f32.gmra.mxu0 %v2290
        %v2498 = vpop.f32.mrf.mxu0
        %v2499 = vadd.f32 0.0, %v2498
        %2500 = vmatmul.f32.gmra.mxu0 %v2293
        %v2501 = vpop.f32.mrf.mxu0
        %v2502 = vadd.f32 0.0, %v2501
        %2503 = vmatmul.f32.gmra.mxu0 %v2296
        %v2504 = vpop.f32.mrf.mxu0
        %v2505 = vadd.f32 0.0, %v2504
        %2506 = vmatmul.f32.gmra.mxu0 %v2299
        %v2507 = vpop.f32.mrf.mxu0
        %v2508 = vadd.f32 0.0, %v2507
        %2509 = vmatmul.f32.gmra.mxu0 %v2302
        %v2510 = vpop.f32.mrf.mxu0
        %v2511 = vadd.f32 0.0, %v2510
        %2512 = vmatmul.f32.gmra.mxu0 %v2305
        %v2513 = vpop.f32.mrf.mxu0
        %v2514 = vadd.f32 0.0, %v2513
        %2515 = vmatmul.f32.gmra.mxu0 %v2308
        %v2516 = vpop.f32.mrf.mxu0
        %v2517 = vadd.f32 0.0, %v2516
        %2518 = vmatmul.f32.gmra.mxu0 %v2311
        %v2519 = vpop.f32.mrf.mxu0
        %v2520 = vadd.f32 0.0, %v2519
        %2521 = vmatmul.f32.gmra.mxu0 %v2314
        %v2522 = vpop.f32.mrf.mxu0
        %v2523 = vadd.f32 0.0, %v2522
        %2524 = vmatmul.f32.gmra.mxu0 %v2317
        %v2525 = vpop.f32.mrf.mxu0
        %v2526 = vadd.f32 0.0, %v2525
        %2527 = vmatmul.f32.gmra.mxu0 %v2320
        %v2528 = vpop.f32.mrf.mxu0
        %v2529 = vadd.f32 0.0, %v2528
        %2530 = vmatmul.f32.gmra.mxu0 %v2323
        %v2531 = vpop.f32.mrf.mxu0
        %v2532 = vadd.f32 0.0, %v2531
        %2533 = vmatmul.f32.gmra.mxu0 %v2326
        %v2534 = vpop.f32.mrf.mxu0
        %v2535 = vadd.f32 0.0, %v2534
        %2536 = vmatmul.f32.gmra.mxu0 %v2329
        %v2537 = vpop.f32.mrf.mxu0
        %v2538 = vadd.f32 0.0, %v2537
        %2539 = vmatmul.f32.gmra.mxu0 %v2332
        %v2540 = vpop.f32.mrf.mxu0
        %v2541 = vadd.f32 0.0, %v2540
        %2542 = vmatmul.f32.gmra.mxu0 %v2335
        %v2543 = vpop.f32.mrf.mxu0
        %v2544 = vadd.f32 0.0, %v2543
        %2545 = vmatmul.f32.gmra.mxu0 %v2338
        %v2546 = vpop.f32.mrf.mxu0
        %v2547 = vadd.f32 0.0, %v2546
        %2548 = vmatmul.f32.gmra.mxu0 %v2341
        %v2549 = vpop.f32.mrf.mxu0
        %v2550 = vadd.f32 0.0, %v2549
        %2551 = vmatmul.f32.gmra.mxu0 %v2344
        %v2552 = vpop.f32.mrf.mxu0
        %v2553 = vadd.f32 0.0, %v2552
        %2554 = vmatmul.f32.gmra.mxu0 %v2347
        %v2555 = vpop.f32.mrf.mxu0
        %v2556 = vadd.f32 0.0, %v2555
        %2557 = vmatmul.f32.gmra.mxu0 %v2350
        %v2558 = vpop.f32.mrf.mxu0
        %v2559 = vadd.f32 0.0, %v2558
        %2560 = vmatmul.f32.gmra.mxu0 %v2353
        %v2561 = vpop.f32.mrf.mxu0
        %v2562 = vadd.f32 0.0, %v2561
        %2563 = vmatmul.f32.gmra.mxu0 %v2356
        %v2564 = vpop.f32.mrf.mxu0
        %v2565 = vadd.f32 0.0, %v2564
        %2566 = vmatmul.f32.gmra.mxu0 %v2359
        %v2567 = vpop.f32.mrf.mxu0
        %v2568 = vadd.f32 0.0, %v2567
        %2569 = vmatmul.f32.gmra.mxu0 %v2362
        %v2570 = vpop.f32.mrf.mxu0
        %v2571 = vadd.f32 0.0, %v2570
        %2572 = vmatmul.f32.gmra.mxu0 %v2365
        %v2573 = vpop.f32.mrf.mxu0
        %v2574 = vadd.f32 0.0, %v2573
        %2575 = vmatmul.f32.gmra.mxu0 %v2368
        %v2576 = vpop.f32.mrf.mxu0
        %v2577 = vadd.f32 0.0, %v2576
        %2578 = vmatmul.f32.gmra.mxu0 %v2371
        %v2579 = vpop.f32.mrf.mxu0
        %v2580 = vadd.f32 0.0, %v2579
        %2581 = vmatmul.f32.gmra.mxu0 %v2374
        %v2582 = vpop.f32.mrf.mxu0
        %v2583 = vadd.f32 0.0, %v2582
        %2584 = vmatmul.f32.gmra.mxu0 %v2377
        %v2585 = vpop.f32.mrf.mxu0
        %v2586 = vadd.f32 0.0, %v2585
        %2587 = vmatmul.f32.gmra.mxu0 %v2380
        %v2588 = vpop.f32.mrf.mxu0
        %v2589 = vadd.f32 0.0, %v2588
        %2590 = vmatmul.f32.gmra.mxu0 %v2383
        %v2591 = vpop.f32.mrf.mxu0
        %v2592 = vadd.f32 0.0, %v2591
        %2593 = vmatmul.f32.gmra.mxu0 %v2386
        %v2594 = vpop.f32.mrf.mxu0
        %v2595 = vadd.f32 0.0, %v2594
        %2596 = vmatmul.f32.gmra.mxu0 %v2389
        %v2597 = vpop.f32.mrf.mxu0
        %v2598 = vadd.f32 0.0, %v2597
        %2599 = vmatmul.f32.gmra.mxu0 %v2392
        %v2600 = vpop.f32.mrf.mxu0
        %v2601 = vadd.f32 0.0, %v2600
        %2602 = vmatmul.f32.gmra.mxu0 %v2395
        %v2603 = vpop.f32.mrf.mxu0
        %v2604 = vadd.f32 0.0, %v2603
        %2605 = vmatmul.f32.gmra.mxu0 %v2398
        %v2606 = vpop.f32.mrf.mxu0
        %v2607 = vadd.f32 0.0, %v2606
        %2608 = vmatmul.f32.gmra.mxu0 %v2401
        %v2609 = vpop.f32.mrf.mxu0
        %v2610 = vadd.f32 0.0, %v2609
        %2611 = vmatmul.f32.gmra.mxu0 %v2404
        %v2612 = vpop.f32.mrf.mxu0
        %v2613 = vadd.f32 0.0, %v2612
        %2614 = vmatmul.f32.gmra.mxu0 %v2407
        %v2615 = vpop.f32.mrf.mxu0
        %v2616 = vadd.f32 0.0, %v2615
        %2617 = vmatmul.f32.gmra.mxu0 %v2410
        %v2618 = vpop.f32.mrf.mxu0
        %v2619 = vadd.f32 0.0, %v2618
        %2620 = vmatmul.f32.gmra.mxu0 %v2413
        %v2621 = vpop.f32.mrf.mxu0
        %v2622 = vadd.f32 0.0, %v2621
        %2623 = vmatmul.f32.gmra.mxu0 %v2416
        %v2624 = vpop.f32.mrf.mxu0
        %v2625 = vadd.f32 0.0, %v2624
        %2626 = vmatmul.f32.gmra.mxu0 %v2419
        %v2627 = vpop.f32.mrf.mxu0
        %v2628 = vadd.f32 0.0, %v2627
        %2629 = vmatmul.f32.gmra.mxu0 %v2422
        %v2630 = vpop.f32.mrf.mxu0
        %v2631 = vadd.f32 0.0, %v2630
        %2632 = vmatmul.f32.gmra.mxu0 %v2425
        %v2633 = vpop.f32.mrf.mxu0
        %v2634 = vadd.f32 0.0, %v2633
        %2635 = vmatmul.f32.gmra.mxu0 %v2428
        %v2636 = vpop.f32.mrf.mxu0
        %v2637 = vadd.f32 0.0, %v2636
        %2638 = vmatmul.f32.gmra.mxu0 %v2431
        %v2639 = vpop.f32.mrf.mxu0
        %v2640 = vadd.f32 0.0, %v2639
        %2641 = vmatmul.f32.gmra.mxu0 %v2434
        %v2642 = vpop.f32.mrf.mxu0
        %v2643 = vadd.f32 0.0, %v2642
        %2644 = vmatmul.f32.gmra.mxu0 %v2437
        %v2645 = vpop.f32.mrf.mxu0
        %v2646 = vadd.f32 0.0, %v2645
        %2647 = vmatmul.f32.gmra.mxu0 %v2440
        %v2648 = vpop.f32.mrf.mxu0
        %v2649 = vadd.f32 0.0, %v2648
        %2650 = vmatmul.f32.gmra.mxu0 %v2443
        %v2651 = vpop.f32.mrf.mxu0
        %v2652 = vadd.f32 0.0, %v2651
        %2653 = vmatmul.f32.gmra.mxu0 %v2446
        %v2654 = vpop.f32.mrf.mxu0
        %v2655 = vadd.f32 0.0, %v2654
        %2656 = vmatmul.f32.gmra.mxu0 %v2449
        %v2657 = vpop.f32.mrf.mxu0
        %v2658 = vadd.f32 0.0, %v2657
        %2659 = vmatmul.f32.gmra.mxu0 %v2452
        %v2660 = vpop.f32.mrf.mxu0
        %v2661 = vadd.f32 0.0, %v2660
        %2662 = vdwg.mxu0
        %2663 = vmatpush.msra.mxu0 0.0
        %2664 = vmatpush.msra.mxu0 0.0
        %2665 = vmatpush.msra.mxu0 0.0
        %2666 = vmatpush.msra.mxu0 0.0
        %2667 = vmatpush.msra.mxu0 0.0
        %2668 = vmatpush.msra.mxu0 0.0
        %2669 = vmatpush.msra.mxu0 0.0
        %2670 = vmatpush.msra.mxu0 0.0
        %2671 = vmatpush.msra.mxu0 0.0
        %2672 = vmatpush.msra.mxu0 0.0
        %2673 = vmatpush.msra.mxu0 0.0
        %2674 = vmatpush.msra.mxu0 0.0
        %2675 = vmatpush.msra.mxu0 %v2099
        %2676 = vmatpush.msra.mxu0 %v2097
        %2677 = vmatpush.msra.mxu0 %v2095
        %2678 = vmatpush.msra.mxu0 %v2093
        %2679 = vmatmul.f32.gmra.mxu0 %v2263
        %v2680 = vpop.f32.mrf.mxu0
        %v2681 = vadd.f32 0.0, %v2680
        %2682 = vmatmul.f32.gmra.mxu0 %v2266
        %v2683 = vpop.f32.mrf.mxu0
        %v2684 = vadd.f32 0.0, %v2683
        %2685 = vmatmul.f32.gmra.mxu0 %v2269
        %v2686 = vpop.f32.mrf.mxu0
        %v2687 = vadd.f32 0.0, %v2686
        %2688 = vmatmul.f32.gmra.mxu0 %v2272
        %v2689 = vpop.f32.mrf.mxu0
        %v2690 = vadd.f32 0.0, %v2689
        %2691 = vmatmul.f32.gmra.mxu0 %v2275
        %v2692 = vpop.f32.mrf.mxu0
        %v2693 = vadd.f32 0.0, %v2692
        %2694 = vmatmul.f32.gmra.mxu0 %v2278
        %v2695 = vpop.f32.mrf.mxu0
        %v2696 = vadd.f32 0.0, %v2695
        %2697 = vmatmul.f32.gmra.mxu0 %v2281
        %v2698 = vpop.f32.mrf.mxu0
        %v2699 = vadd.f32 0.0, %v2698
        %2700 = vmatmul.f32.gmra.mxu0 %v2284
        %v2701 = vpop.f32.mrf.mxu0
        %v2702 = vadd.f32 0.0, %v2701
        %2703 = vmatmul.f32.gmra.mxu0 %v2287
        %v2704 = vpop.f32.mrf.mxu0
        %v2705 = vadd.f32 0.0, %v2704
        %2706 = vmatmul.f32.gmra.mxu0 %v2290
        %v2707 = vpop.f32.mrf.mxu0
        %v2708 = vadd.f32 0.0, %v2707
        %2709 = vmatmul.f32.gmra.mxu0 %v2293
        %v2710 = vpop.f32.mrf.mxu0
        %v2711 = vadd.f32 0.0, %v2710
        %2712 = vmatmul.f32.gmra.mxu0 %v2296
        %v2713 = vpop.f32.mrf.mxu0
        %v2714 = vadd.f32 0.0, %v2713
        %2715 = vmatmul.f32.gmra.mxu0 %v2299
        %v2716 = vpop.f32.mrf.mxu0
        %v2717 = vadd.f32 0.0, %v2716
        %2718 = vmatmul.f32.gmra.mxu0 %v2302
        %v2719 = vpop.f32.mrf.mxu0
        %v2720 = vadd.f32 0.0, %v2719
        %2721 = vmatmul.f32.gmra.mxu0 %v2305
        %v2722 = vpop.f32.mrf.mxu0
        %v2723 = vadd.f32 0.0, %v2722
        %2724 = vmatmul.f32.gmra.mxu0 %v2308
        %v2725 = vpop.f32.mrf.mxu0
        %v2726 = vadd.f32 0.0, %v2725
        %2727 = vmatmul.f32.gmra.mxu0 %v2311
        %v2728 = vpop.f32.mrf.mxu0
        %v2729 = vadd.f32 0.0, %v2728
        %2730 = vmatmul.f32.gmra.mxu0 %v2314
        %v2731 = vpop.f32.mrf.mxu0
        %v2732 = vadd.f32 0.0, %v2731
        %2733 = vmatmul.f32.gmra.mxu0 %v2317
        %v2734 = vpop.f32.mrf.mxu0
        %v2735 = vadd.f32 0.0, %v2734
        %2736 = vmatmul.f32.gmra.mxu0 %v2320
        %v2737 = vpop.f32.mrf.mxu0
        %v2738 = vadd.f32 0.0, %v2737
        %2739 = vmatmul.f32.gmra.mxu0 %v2323
        %v2740 = vpop.f32.mrf.mxu0
        %v2741 = vadd.f32 0.0, %v2740
        %2742 = vmatmul.f32.gmra.mxu0 %v2326
        %v2743 = vpop.f32.mrf.mxu0
        %v2744 = vadd.f32 0.0, %v2743
        %2745 = vmatmul.f32.gmra.mxu0 %v2329
        %v2746 = vpop.f32.mrf.mxu0
        %v2747 = vadd.f32 0.0, %v2746
        %2748 = vmatmul.f32.gmra.mxu0 %v2332
        %v2749 = vpop.f32.mrf.mxu0
        %v2750 = vadd.f32 0.0, %v2749
        %2751 = vmatmul.f32.gmra.mxu0 %v2335
        %v2752 = vpop.f32.mrf.mxu0
        %v2753 = vadd.f32 0.0, %v2752
        %2754 = vmatmul.f32.gmra.mxu0 %v2338
        %v2755 = vpop.f32.mrf.mxu0
        %v2756 = vadd.f32 0.0, %v2755
        %2757 = vmatmul.f32.gmra.mxu0 %v2341
        %v2758 = vpop.f32.mrf.mxu0
        %v2759 = vadd.f32 0.0, %v2758
        %2760 = vmatmul.f32.gmra.mxu0 %v2344
        %v2761 = vpop.f32.mrf.mxu0
        %v2762 = vadd.f32 0.0, %v2761
        %2763 = vmatmul.f32.gmra.mxu0 %v2347
        %v2764 = vpop.f32.mrf.mxu0
        %v2765 = vadd.f32 0.0, %v2764
        %2766 = vmatmul.f32.gmra.mxu0 %v2350
        %v2767 = vpop.f32.mrf.mxu0
        %v2768 = vadd.f32 0.0, %v2767
        %2769 = vmatmul.f32.gmra.mxu0 %v2353
        %v2770 = vpop.f32.mrf.mxu0
        %v2771 = vadd.f32 0.0, %v2770
        %2772 = vmatmul.f32.gmra.mxu0 %v2356
        %v2773 = vpop.f32.mrf.mxu0
        %v2774 = vadd.f32 0.0, %v2773
        %2775 = vmatmul.f32.gmra.mxu0 %v2359
        %v2776 = vpop.f32.mrf.mxu0
        %v2777 = vadd.f32 0.0, %v2776
        %2778 = vmatmul.f32.gmra.mxu0 %v2362
        %v2779 = vpop.f32.mrf.mxu0
        %v2780 = vadd.f32 0.0, %v2779
        %2781 = vmatmul.f32.gmra.mxu0 %v2365
        %v2782 = vpop.f32.mrf.mxu0
        %v2783 = vadd.f32 0.0, %v2782
        %2784 = vmatmul.f32.gmra.mxu0 %v2368
        %v2785 = vpop.f32.mrf.mxu0
        %v2786 = vadd.f32 0.0, %v2785
        %2787 = vmatmul.f32.gmra.mxu0 %v2371
        %v2788 = vpop.f32.mrf.mxu0
        %v2789 = vadd.f32 0.0, %v2788
        %2790 = vmatmul.f32.gmra.mxu0 %v2374
        %v2791 = vpop.f32.mrf.mxu0
        %v2792 = vadd.f32 0.0, %v2791
        %2793 = vmatmul.f32.gmra.mxu0 %v2377
        %v2794 = vpop.f32.mrf.mxu0
        %v2795 = vadd.f32 0.0, %v2794
        %2796 = vmatmul.f32.gmra.mxu0 %v2380
        %v2797 = vpop.f32.mrf.mxu0
        %v2798 = vadd.f32 0.0, %v2797
        %2799 = vmatmul.f32.gmra.mxu0 %v2383
        %v2800 = vpop.f32.mrf.mxu0
        %v2801 = vadd.f32 0.0, %v2800
        %2802 = vmatmul.f32.gmra.mxu0 %v2386
        %v2803 = vpop.f32.mrf.mxu0
        %v2804 = vadd.f32 0.0, %v2803
        %2805 = vmatmul.f32.gmra.mxu0 %v2389
        %v2806 = vpop.f32.mrf.mxu0
        %v2807 = vadd.f32 0.0, %v2806
        %2808 = vmatmul.f32.gmra.mxu0 %v2392
        %v2809 = vpop.f32.mrf.mxu0
        %v2810 = vadd.f32 0.0, %v2809
        %2811 = vmatmul.f32.gmra.mxu0 %v2395
        %v2812 = vpop.f32.mrf.mxu0
        %v2813 = vadd.f32 0.0, %v2812
        %2814 = vmatmul.f32.gmra.mxu0 %v2398
        %v2815 = vpop.f32.mrf.mxu0
        %v2816 = vadd.f32 0.0, %v2815
        %2817 = vmatmul.f32.gmra.mxu0 %v2401
        %v2818 = vpop.f32.mrf.mxu0
        %v2819 = vadd.f32 0.0, %v2818
        %2820 = vmatmul.f32.gmra.mxu0 %v2404
        %v2821 = vpop.f32.mrf.mxu0
        %v2822 = vadd.f32 0.0, %v2821
        %2823 = vmatmul.f32.gmra.mxu0 %v2407
        %v2824 = vpop.f32.mrf.mxu0
        %v2825 = vadd.f32 0.0, %v2824
        %2826 = vmatmul.f32.gmra.mxu0 %v2410
        %v2827 = vpop.f32.mrf.mxu0
        %v2828 = vadd.f32 0.0, %v2827
        %2829 = vmatmul.f32.gmra.mxu0 %v2413
        %v2830 = vpop.f32.mrf.mxu0
        %v2831 = vadd.f32 0.0, %v2830
        %2832 = vmatmul.f32.gmra.mxu0 %v2416
        %v2833 = vpop.f32.mrf.mxu0
        %v2834 = vadd.f32 0.0, %v2833
        %2835 = vmatmul.f32.gmra.mxu0 %v2419
        %v2836 = vpop.f32.mrf.mxu0
        %v2837 = vadd.f32 0.0, %v2836
        %2838 = vmatmul.f32.gmra.mxu0 %v2422
        %v2839 = vpop.f32.mrf.mxu0
        %v2840 = vadd.f32 0.0, %v2839
        %2841 = vmatmul.f32.gmra.mxu0 %v2425
        %v2842 = vpop.f32.mrf.mxu0
        %v2843 = vadd.f32 0.0, %v2842
        %2844 = vmatmul.f32.gmra.mxu0 %v2428
        %v2845 = vpop.f32.mrf.mxu0
        %v2846 = vadd.f32 0.0, %v2845
        %2847 = vmatmul.f32.gmra.mxu0 %v2431
        %v2848 = vpop.f32.mrf.mxu0
        %v2849 = vadd.f32 0.0, %v2848
        %2850 = vmatmul.f32.gmra.mxu0 %v2434
        %v2851 = vpop.f32.mrf.mxu0
        %v2852 = vadd.f32 0.0, %v2851
        %2853 = vmatmul.f32.gmra.mxu0 %v2437
        %v2854 = vpop.f32.mrf.mxu0
        %v2855 = vadd.f32 0.0, %v2854
        %2856 = vmatmul.f32.gmra.mxu0 %v2440
        %v2857 = vpop.f32.mrf.mxu0
        %v2858 = vadd.f32 0.0, %v2857
        %2859 = vmatmul.f32.gmra.mxu0 %v2443
        %v2860 = vpop.f32.mrf.mxu0
        %v2861 = vadd.f32 0.0, %v2860
        %2862 = vmatmul.f32.gmra.mxu0 %v2446
        %v2863 = vpop.f32.mrf.mxu0
        %v2864 = vadd.f32 0.0, %v2863
        %2865 = vmatmul.f32.gmra.mxu0 %v2449
        %v2866 = vpop.f32.mrf.mxu0
        %v2867 = vadd.f32 0.0, %v2866
        %2868 = vmatmul.f32.gmra.mxu0 %v2452
        %v2869 = vpop.f32.mrf.mxu0
        %v2870 = vadd.f32 0.0, %v2869
        %2871 = vdwg.mxu0
        %s2872 = scalar_lea.vmem [#allocation2], 2
        %v2873 = vld [vmem:[%s2872] sm:$0x3]
        %v2874 = vmax.f32 %v2472, %v2478
        %v2875 = vmax.f32 %v2475, %v2481
        %v2876 = vmax.f32 %v2874, %v2484
        %v2877 = vmax.f32 %v2875, %v2487
        %v2878 = vmax.f32 %v2876, %v2490
        %v2879 = vmax.f32 %v2877, %v2493
        %v2880 = vmax.f32 %v2878, %v2496
        %v2881 = vmax.f32 %v2879, %v2499
        %v2882 = vmax.f32 %v2880, %v2502
        %v2883 = vmax.f32 %v2881, %v2505
        %v2884 = vmax.f32 %v2882, %v2508
        %v2885 = vmax.f32 %v2883, %v2511
        %v2886 = vmax.f32 %v2884, %v2514
        %v2887 = vmax.f32 %v2885, %v2517
        %v2888 = vmax.f32 %v2886, %v2520
        %v2889 = vmax.f32 %v2887, %v2523
        %v2890 = vmax.f32 %v2888, %v2526
        %v2891 = vmax.f32 %v2889, %v2529
        %v2892 = vmax.f32 %v2890, %v2532
        %v2893 = vmax.f32 %v2891, %v2535
        %v2894 = vmax.f32 %v2892, %v2538
        %v2895 = vmax.f32 %v2893, %v2541
        %v2896 = vmax.f32 %v2894, %v2544
        %v2897 = vmax.f32 %v2895, %v2547
        %v2898 = vmax.f32 %v2896, %v2550
        %v2899 = vmax.f32 %v2897, %v2553
        %v2900 = vmax.f32 %v2898, %v2556
        %v2901 = vmax.f32 %v2899, %v2559
        %v2902 = vmax.f32 %v2900, %v2562
        %v2903 = vmax.f32 %v2901, %v2565
        %v2904 = vmax.f32 %v2902, %v2568
        %v2905 = vmax.f32 %v2903, %v2571
        %v2906 = vmax.f32 %v2904, %v2574
        %v2907 = vmax.f32 %v2905, %v2577
        %v2908 = vmax.f32 %v2906, %v2580
        %v2909 = vmax.f32 %v2907, %v2583
        %v2910 = vmax.f32 %v2908, %v2586
        %v2911 = vmax.f32 %v2909, %v2589
        %v2912 = vmax.f32 %v2910, %v2592
        %v2913 = vmax.f32 %v2911, %v2595
        %v2914 = vmax.f32 %v2912, %v2598
        %v2915 = vmax.f32 %v2913, %v2601
        %v2916 = vmax.f32 %v2914, %v2604
        %v2917 = vmax.f32 %v2915, %v2607
        %v2918 = vmax.f32 %v2916, %v2610
        %v2919 = vmax.f32 %v2917, %v2613
        %v2920 = vmax.f32 %v2918, %v2616
        %v2921 = vmax.f32 %v2919, %v2619
        %v2922 = vmax.f32 %v2920, %v2622
        %v2923 = vmax.f32 %v2921, %v2625
        %v2924 = vmax.f32 %v2922, %v2628
        %v2925 = vmax.f32 %v2923, %v2631
        %v2926 = vmax.f32 %v2924, %v2634
        %v2927 = vmax.f32 %v2925, %v2637
        %v2928 = vmax.f32 %v2926, %v2640
        %v2929 = vmax.f32 %v2927, %v2643
        %v2930 = vmax.f32 %v2928, %v2646
        %v2931 = vmax.f32 %v2929, %v2649
        %v2932 = vmax.f32 %v2930, %v2652
        %v2933 = vmax.f32 %v2931, %v2655
        %v2934 = vmax.f32 %v2932, %v2658
        %v2935 = vmax.f32 %v2933, %v2661
        %v2936 = vmax.f32 %v2934, %v2935
        %v2937 = vrot.slane %v2936, 4
        %v2938 = vmax.f32 %v2936, %v2937
        %v2939 = vrot.slane %v2938, 2
        %v2940 = vmax.f32 %v2938, %v2939
        %v2941 = vrot.slane %v2940, 1
        %v2942 = vmax.f32 %v2940, %v2941
        %v2943 = vmax.f32 %v2681, %v2687
        %v2944 = vmax.f32 %v2684, %v2690
        %v2945 = vmax.f32 %v2943, %v2693
        %v2946 = vmax.f32 %v2944, %v2696
        %v2947 = vmax.f32 %v2945, %v2699
        %v2948 = vmax.f32 %v2946, %v2702
        %v2949 = vmax.f32 %v2947, %v2705
        %v2950 = vmax.f32 %v2948, %v2708
        %v2951 = vmax.f32 %v2949, %v2711
        %v2952 = vmax.f32 %v2950, %v2714
        %v2953 = vmax.f32 %v2951, %v2717
        %v2954 = vmax.f32 %v2952, %v2720
        %v2955 = vmax.f32 %v2953, %v2723
        %v2956 = vmax.f32 %v2954, %v2726
        %v2957 = vmax.f32 %v2955, %v2729
        %v2958 = vmax.f32 %v2956, %v2732
        %v2959 = vmax.f32 %v2957, %v2735
        %v2960 = vmax.f32 %v2958, %v2738
        %v2961 = vmax.f32 %v2959, %v2741
        %v2962 = vmax.f32 %v2960, %v2744
        %v2963 = vmax.f32 %v2961, %v2747
        %v2964 = vmax.f32 %v2962, %v2750
        %v2965 = vmax.f32 %v2963, %v2753
        %v2966 = vmax.f32 %v2964, %v2756
        %v2967 = vmax.f32 %v2965, %v2759
        %v2968 = vmax.f32 %v2966, %v2762
        %v2969 = vmax.f32 %v2967, %v2765
        %v2970 = vmax.f32 %v2968, %v2768
        %v2971 = vmax.f32 %v2969, %v2771
        %v2972 = vmax.f32 %v2970, %v2774
        %v2973 = vmax.f32 %v2971, %v2777
        %v2974 = vmax.f32 %v2972, %v2780
        %v2975 = vmax.f32 %v2973, %v2783
        %v2976 = vmax.f32 %v2974, %v2786
        %v2977 = vmax.f32 %v2975, %v2789
        %v2978 = vmax.f32 %v2976, %v2792
        %v2979 = vmax.f32 %v2977, %v2795
        %v2980 = vmax.f32 %v2978, %v2798
        %v2981 = vmax.f32 %v2979, %v2801
        %v2982 = vmax.f32 %v2980, %v2804
        %v2983 = vmax.f32 %v2981, %v2807
        %v2984 = vmax.f32 %v2982, %v2810
        %v2985 = vmax.f32 %v2983, %v2813
        %v2986 = vmax.f32 %v2984, %v2816
        %v2987 = vmax.f32 %v2985, %v2819
        %v2988 = vmax.f32 %v2986, %v2822
        %v2989 = vmax.f32 %v2987, %v2825
        %v2990 = vmax.f32 %v2988, %v2828
        %v2991 = vmax.f32 %v2989, %v2831
        %v2992 = vmax.f32 %v2990, %v2834
        %v2993 = vmax.f32 %v2991, %v2837
        %v2994 = vmax.f32 %v2992, %v2840
        %v2995 = vmax.f32 %v2993, %v2843
        %v2996 = vmax.f32 %v2994, %v2846
        %v2997 = vmax.f32 %v2995, %v2849
        %v2998 = vmax.f32 %v2996, %v2852
        %v2999 = vmax.f32 %v2997, %v2855
        %v3000 = vmax.f32 %v2998, %v2858
        %v3001 = vmax.f32 %v2999, %v2861
        %v3002 = vmax.f32 %v3000, %v2864
        %v3003 = vmax.f32 %v3001, %v2867
        %v3004 = vmax.f32 %v3002, %v2870
        %v3005 = vmax.f32 %v3003, %v3004
        %v3006 = vrot.slane %v3005, 4
        %v3007 = vmax.f32 %v3005, %v3006
        %v3008 = vrot.slane %v3007, 2
        %v3009 = vmax.f32 %v3007, %v3008
        %v3010 = vrot.slane %v3009, 1
        %v3011 = vmax.f32 %v3009, %v3010
        %v3014 = vrot.slane %v3011, 7
        %v3015 = vsel %vm1266, %v2942, %v3014
        %v3017 = vmax.f32 %v2873, %v3015
        %v3018 = vsub.f32 %v2873, %v3017
        %v3019 = vmul.f32 %v3018, 1.442695
        %v3020 = vpow.pop %v3019
        %v3022 = vperm.slane %v3017, 0
        %v3023 = vperm.slane %v3017, 1
        %v3026 = vsub.f32 %v2472, %v3022
        %v3027 = vsub.f32 %v2681, %v3023
        %v3028 = vsub.f32 %v2475, %v3022
        %v3029 = vsub.f32 %v2684, %v3023
        %v3030 = vsub.f32 %v2478, %v3022
        %v3031 = vsub.f32 %v2687, %v3023
        %v3032 = vsub.f32 %v2481, %v3022
        %v3033 = vsub.f32 %v2690, %v3023
        %v3034 = vsub.f32 %v2484, %v3022
        %v3035 = vsub.f32 %v2693, %v3023
        %v3036 = vsub.f32 %v2487, %v3022
        %v3037 = vsub.f32 %v2696, %v3023
        %v3038 = vsub.f32 %v2490, %v3022
        %v3039 = vsub.f32 %v2699, %v3023
        %v3040 = vsub.f32 %v2493, %v3022
        %v3041 = vsub.f32 %v2702, %v3023
        %v3042 = vsub.f32 %v2496, %v3022
        %v3043 = vsub.f32 %v2705, %v3023
        %v3044 = vsub.f32 %v2499, %v3022
        %v3045 = vsub.f32 %v2708, %v3023
        %v3046 = vsub.f32 %v2502, %v3022
        %v3047 = vsub.f32 %v2711, %v3023
        %v3048 = vsub.f32 %v2505, %v3022
        %v3049 = vsub.f32 %v2714, %v3023
        %v3050 = vsub.f32 %v2508, %v3022
        %v3051 = vsub.f32 %v2717, %v3023
        %v3052 = vsub.f32 %v2511, %v3022
        %v3053 = vsub.f32 %v2720, %v3023
        %v3054 = vsub.f32 %v2514, %v3022
        %v3055 = vsub.f32 %v2723, %v3023
        %v3056 = vsub.f32 %v2517, %v3022
        %v3057 = vsub.f32 %v2726, %v3023
        %v3058 = vsub.f32 %v2520, %v3022
        %v3059 = vsub.f32 %v2729, %v3023
        %v3060 = vsub.f32 %v2523, %v3022
        %v3061 = vsub.f32 %v2732, %v3023
        %v3062 = vsub.f32 %v2526, %v3022
        %v3063 = vsub.f32 %v2735, %v3023
        %v3064 = vsub.f32 %v2529, %v3022
        %v3065 = vsub.f32 %v2738, %v3023
        %v3066 = vsub.f32 %v2532, %v3022
        %v3067 = vsub.f32 %v2741, %v3023
        %v3068 = vsub.f32 %v2535, %v3022
        %v3069 = vsub.f32 %v2744, %v3023
        %v3070 = vsub.f32 %v2538, %v3022
        %v3071 = vsub.f32 %v2747, %v3023
        %v3072 = vsub.f32 %v2541, %v3022
        %v3073 = vsub.f32 %v2750, %v3023
        %v3074 = vsub.f32 %v2544, %v3022
        %v3075 = vsub.f32 %v2753, %v3023
        %v3076 = vsub.f32 %v2547, %v3022
        %v3077 = vsub.f32 %v2756, %v3023
        %v3078 = vsub.f32 %v2550, %v3022
        %v3079 = vsub.f32 %v2759, %v3023
        %v3080 = vsub.f32 %v2553, %v3022
        %v3081 = vsub.f32 %v2762, %v3023
        %v3082 = vsub.f32 %v2556, %v3022
        %v3083 = vsub.f32 %v2765, %v3023
        %v3084 = vsub.f32 %v2559, %v3022
        %v3085 = vsub.f32 %v2768, %v3023
        %v3086 = vsub.f32 %v2562, %v3022
        %v3087 = vsub.f32 %v2771, %v3023
        %v3088 = vsub.f32 %v2565, %v3022
        %v3089 = vsub.f32 %v2774, %v3023
        %v3090 = vsub.f32 %v2568, %v3022
        %v3091 = vsub.f32 %v2777, %v3023
        %v3092 = vsub.f32 %v2571, %v3022
        %v3093 = vsub.f32 %v2780, %v3023
        %v3094 = vsub.f32 %v2574, %v3022
        %v3095 = vsub.f32 %v2783, %v3023
        %v3096 = vsub.f32 %v2577, %v3022
        %v3097 = vsub.f32 %v2786, %v3023
        %v3098 = vsub.f32 %v2580, %v3022
        %v3099 = vsub.f32 %v2789, %v3023
        %v3100 = vsub.f32 %v2583, %v3022
        %v3101 = vsub.f32 %v2792, %v3023
        %v3102 = vsub.f32 %v2586, %v3022
        %v3103 = vsub.f32 %v2795, %v3023
        %v3104 = vsub.f32 %v2589, %v3022
        %v3105 = vsub.f32 %v2798, %v3023
        %v3106 = vsub.f32 %v2592, %v3022
        %v3107 = vsub.f32 %v2801, %v3023
        %v3108 = vsub.f32 %v2595, %v3022
        %v3109 = vsub.f32 %v2804, %v3023
        %v3110 = vsub.f32 %v2598, %v3022
        %v3111 = vsub.f32 %v2807, %v3023
        %v3112 = vsub.f32 %v2601, %v3022
        %v3113 = vsub.f32 %v2810, %v3023
        %v3114 = vsub.f32 %v2604, %v3022
        %v3115 = vsub.f32 %v2813, %v3023
        %v3116 = vsub.f32 %v2607, %v3022
        %v3117 = vsub.f32 %v2816, %v3023
        %v3118 = vsub.f32 %v2610, %v3022
        %v3119 = vsub.f32 %v2819, %v3023
        %v3120 = vsub.f32 %v2613, %v3022
        %v3121 = vsub.f32 %v2822, %v3023
        %v3122 = vsub.f32 %v2616, %v3022
        %v3123 = vsub.f32 %v2825, %v3023
        %v3124 = vsub.f32 %v2619, %v3022
        %v3125 = vsub.f32 %v2828, %v3023
        %v3126 = vsub.f32 %v2622, %v3022
        %v3127 = vsub.f32 %v2831, %v3023
        %v3128 = vsub.f32 %v2625, %v3022
        %v3129 = vsub.f32 %v2834, %v3023
        %v3130 = vsub.f32 %v2628, %v3022
        %v3131 = vsub.f32 %v2837, %v3023
        %v3132 = vsub.f32 %v2631, %v3022
        %v3133 = vsub.f32 %v2840, %v3023
        %v3134 = vsub.f32 %v2634, %v3022
        %v3135 = vsub.f32 %v2843, %v3023
        %v3136 = vsub.f32 %v2637, %v3022
        %v3137 = vsub.f32 %v2846, %v3023
        %v3138 = vsub.f32 %v2640, %v3022
        %v3139 = vsub.f32 %v2849, %v3023
        %v3140 = vsub.f32 %v2643, %v3022
        %v3141 = vsub.f32 %v2852, %v3023
        %v3142 = vsub.f32 %v2646, %v3022
        %v3143 = vsub.f32 %v2855, %v3023
        %v3144 = vsub.f32 %v2649, %v3022
        %v3145 = vsub.f32 %v2858, %v3023
        %v3146 = vsub.f32 %v2652, %v3022
        %v3147 = vsub.f32 %v2861, %v3023
        %v3148 = vsub.f32 %v2655, %v3022
        %v3149 = vsub.f32 %v2864, %v3023
        %v3150 = vsub.f32 %v2658, %v3022
        %v3151 = vsub.f32 %v2867, %v3023
        %v3152 = vsub.f32 %v2661, %v3022
        %v3153 = vsub.f32 %v2870, %v3023
        %v3154 = vmul.f32 %v3026, 1.442695
        %v3155 = vpow.pop %v3154
        %v3156 = vmul.f32 %v3027, 1.442695
        %v3157 = vpow.pop %v3156
        %v3158 = vmul.f32 %v3028, 1.442695
        %v3159 = vpow.pop %v3158
        %v3160 = vmul.f32 %v3029, 1.442695
        %v3161 = vpow.pop %v3160
        %v3162 = vmul.f32 %v3030, 1.442695
        %v3163 = vpow.pop %v3162
        %v3164 = vmul.f32 %v3031, 1.442695
        %v3165 = vpow.pop %v3164
        %v3166 = vmul.f32 %v3032, 1.442695
        %v3167 = vpow.pop %v3166
        %v3168 = vmul.f32 %v3033, 1.442695
        %v3169 = vpow.pop %v3168
        %v3170 = vmul.f32 %v3034, 1.442695
        %v3171 = vpow.pop %v3170
        %v3172 = vmul.f32 %v3035, 1.442695
        %v3173 = vpow.pop %v3172
        %v3174 = vmul.f32 %v3036, 1.442695
        %v3175 = vpow.pop %v3174
        %v3176 = vmul.f32 %v3037, 1.442695
        %v3177 = vpow.pop %v3176
        %v3178 = vmul.f32 %v3038, 1.442695
        %v3179 = vpow.pop %v3178
        %v3180 = vmul.f32 %v3039, 1.442695
        %v3181 = vpow.pop %v3180
        %v3182 = vmul.f32 %v3040, 1.442695
        %v3183 = vpow.pop %v3182
        %v3184 = vmul.f32 %v3041, 1.442695
        %v3185 = vpow.pop %v3184
        %v3186 = vmul.f32 %v3042, 1.442695
        %v3187 = vpow.pop %v3186
        %v3188 = vmul.f32 %v3043, 1.442695
        %v3189 = vpow.pop %v3188
        %v3190 = vmul.f32 %v3044, 1.442695
        %v3191 = vpow.pop %v3190
        %v3192 = vmul.f32 %v3045, 1.442695
        %v3193 = vpow.pop %v3192
        %v3194 = vmul.f32 %v3046, 1.442695
        %v3195 = vpow.pop %v3194
        %v3196 = vmul.f32 %v3047, 1.442695
        %v3197 = vpow.pop %v3196
        %v3198 = vmul.f32 %v3048, 1.442695
        %v3199 = vpow.pop %v3198
        %v3200 = vmul.f32 %v3049, 1.442695
        %v3201 = vpow.pop %v3200
        %v3202 = vmul.f32 %v3050, 1.442695
        %v3203 = vpow.pop %v3202
        %v3204 = vmul.f32 %v3051, 1.442695
        %v3205 = vpow.pop %v3204
        %v3206 = vmul.f32 %v3052, 1.442695
        %v3207 = vpow.pop %v3206
        %v3208 = vmul.f32 %v3053, 1.442695
        %v3209 = vpow.pop %v3208
        %v3210 = vmul.f32 %v3054, 1.442695
        %v3211 = vpow.pop %v3210
        %v3212 = vmul.f32 %v3055, 1.442695
        %v3213 = vpow.pop %v3212
        %v3214 = vmul.f32 %v3056, 1.442695
        %v3215 = vpow.pop %v3214
        %v3216 = vmul.f32 %v3057, 1.442695
        %v3217 = vpow.pop %v3216
        %v3218 = vmul.f32 %v3058, 1.442695
        %v3219 = vpow.pop %v3218
        %v3220 = vmul.f32 %v3059, 1.442695
        %v3221 = vpow.pop %v3220
        %v3222 = vmul.f32 %v3060, 1.442695
        %v3223 = vpow.pop %v3222
        %v3224 = vmul.f32 %v3061, 1.442695
        %v3225 = vpow.pop %v3224
        %v3226 = vmul.f32 %v3062, 1.442695
        %v3227 = vpow.pop %v3226
        %v3228 = vmul.f32 %v3063, 1.442695
        %v3229 = vpow.pop %v3228
        %v3230 = vmul.f32 %v3064, 1.442695
        %v3231 = vpow.pop %v3230
        %v3232 = vmul.f32 %v3065, 1.442695
        %v3233 = vpow.pop %v3232
        %v3234 = vmul.f32 %v3066, 1.442695
        %v3235 = vpow.pop %v3234
        %v3236 = vmul.f32 %v3067, 1.442695
        %v3237 = vpow.pop %v3236
        %v3238 = vmul.f32 %v3068, 1.442695
        %v3239 = vpow.pop %v3238
        %v3240 = vmul.f32 %v3069, 1.442695
        %v3241 = vpow.pop %v3240
        %v3242 = vmul.f32 %v3070, 1.442695
        %v3243 = vpow.pop %v3242
        %v3244 = vmul.f32 %v3071, 1.442695
        %v3245 = vpow.pop %v3244
        %v3246 = vmul.f32 %v3072, 1.442695
        %v3247 = vpow.pop %v3246
        %v3248 = vmul.f32 %v3073, 1.442695
        %v3249 = vpow.pop %v3248
        %v3250 = vmul.f32 %v3074, 1.442695
        %v3251 = vpow.pop %v3250
        %v3252 = vmul.f32 %v3075, 1.442695
        %v3253 = vpow.pop %v3252
        %v3254 = vmul.f32 %v3076, 1.442695
        %v3255 = vpow.pop %v3254
        %v3256 = vmul.f32 %v3077, 1.442695
        %v3257 = vpow.pop %v3256
        %v3258 = vmul.f32 %v3078, 1.442695
        %v3259 = vpow.pop %v3258
        %v3260 = vmul.f32 %v3079, 1.442695
        %v3261 = vpow.pop %v3260
        %v3262 = vmul.f32 %v3080, 1.442695
        %v3263 = vpow.pop %v3262
        %v3264 = vmul.f32 %v3081, 1.442695
        %v3265 = vpow.pop %v3264
        %v3266 = vmul.f32 %v3082, 1.442695
        %v3267 = vpow.pop %v3266
        %v3268 = vmul.f32 %v3083, 1.442695
        %v3269 = vpow.pop %v3268
        %v3270 = vmul.f32 %v3084, 1.442695
        %v3271 = vpow.pop %v3270
        %v3272 = vmul.f32 %v3085, 1.442695
        %v3273 = vpow.pop %v3272
        %v3274 = vmul.f32 %v3086, 1.442695
        %v3275 = vpow.pop %v3274
        %v3276 = vmul.f32 %v3087, 1.442695
        %v3277 = vpow.pop %v3276
        %v3278 = vmul.f32 %v3088, 1.442695
        %v3279 = vpow.pop %v3278
        %v3280 = vmul.f32 %v3089, 1.442695
        %v3281 = vpow.pop %v3280
        %v3282 = vmul.f32 %v3090, 1.442695
        %v3283 = vpow.pop %v3282
        %v3284 = vmul.f32 %v3091, 1.442695
        %v3285 = vpow.pop %v3284
        %v3286 = vmul.f32 %v3092, 1.442695
        %v3287 = vpow.pop %v3286
        %v3288 = vmul.f32 %v3093, 1.442695
        %v3289 = vpow.pop %v3288
        %v3290 = vmul.f32 %v3094, 1.442695
        %v3291 = vpow.pop %v3290
        %v3292 = vmul.f32 %v3095, 1.442695
        %v3293 = vpow.pop %v3292
        %v3294 = vmul.f32 %v3096, 1.442695
        %v3295 = vpow.pop %v3294
        %v3296 = vmul.f32 %v3097, 1.442695
        %v3297 = vpow.pop %v3296
        %v3298 = vmul.f32 %v3098, 1.442695
        %v3299 = vpow.pop %v3298
        %v3300 = vmul.f32 %v3099, 1.442695
        %v3301 = vpow.pop %v3300
        %v3302 = vmul.f32 %v3100, 1.442695
        %v3303 = vpow.pop %v3302
        %v3304 = vmul.f32 %v3101, 1.442695
        %v3305 = vpow.pop %v3304
        %v3306 = vmul.f32 %v3102, 1.442695
        %v3307 = vpow.pop %v3306
        %v3308 = vmul.f32 %v3103, 1.442695
        %v3309 = vpow.pop %v3308
        %v3310 = vmul.f32 %v3104, 1.442695
        %v3311 = vpow.pop %v3310
        %v3312 = vmul.f32 %v3105, 1.442695
        %v3313 = vpow.pop %v3312
        %v3314 = vmul.f32 %v3106, 1.442695
        %v3315 = vpow.pop %v3314
        %v3316 = vmul.f32 %v3107, 1.442695
        %v3317 = vpow.pop %v3316
        %v3318 = vmul.f32 %v3108, 1.442695
        %v3319 = vpow.pop %v3318
        %v3320 = vmul.f32 %v3109, 1.442695
        %v3321 = vpow.pop %v3320
        %v3322 = vmul.f32 %v3110, 1.442695
        %v3323 = vpow.pop %v3322
        %v3324 = vmul.f32 %v3111, 1.442695
        %v3325 = vpow.pop %v3324
        %v3326 = vmul.f32 %v3112, 1.442695
        %v3327 = vpow.pop %v3326
        %v3328 = vmul.f32 %v3113, 1.442695
        %v3329 = vpow.pop %v3328
        %v3330 = vmul.f32 %v3114, 1.442695
        %v3331 = vpow.pop %v3330
        %v3332 = vmul.f32 %v3115, 1.442695
        %v3333 = vpow.pop %v3332
        %v3334 = vmul.f32 %v3116, 1.442695
        %v3335 = vpow.pop %v3334
        %v3336 = vmul.f32 %v3117, 1.442695
        %v3337 = vpow.pop %v3336
        %v3338 = vmul.f32 %v3118, 1.442695
        %v3339 = vpow.pop %v3338
        %v3340 = vmul.f32 %v3119, 1.442695
        %v3341 = vpow.pop %v3340
        %v3342 = vmul.f32 %v3120, 1.442695
        %v3343 = vpow.pop %v3342
        %v3344 = vmul.f32 %v3121, 1.442695
        %v3345 = vpow.pop %v3344
        %v3346 = vmul.f32 %v3122, 1.442695
        %v3347 = vpow.pop %v3346
        %v3348 = vmul.f32 %v3123, 1.442695
        %v3349 = vpow.pop %v3348
        %v3350 = vmul.f32 %v3124, 1.442695
        %v3351 = vpow.pop %v3350
        %v3352 = vmul.f32 %v3125, 1.442695
        %v3353 = vpow.pop %v3352
        %v3354 = vmul.f32 %v3126, 1.442695
        %v3355 = vpow.pop %v3354
        %v3356 = vmul.f32 %v3127, 1.442695
        %v3357 = vpow.pop %v3356
        %v3358 = vmul.f32 %v3128, 1.442695
        %v3359 = vpow.pop %v3358
        %v3360 = vmul.f32 %v3129, 1.442695
        %v3361 = vpow.pop %v3360
        %v3362 = vmul.f32 %v3130, 1.442695
        %v3363 = vpow.pop %v3362
        %v3364 = vmul.f32 %v3131, 1.442695
        %v3365 = vpow.pop %v3364
        %v3366 = vmul.f32 %v3132, 1.442695
        %v3367 = vpow.pop %v3366
        %v3368 = vmul.f32 %v3133, 1.442695
        %v3369 = vpow.pop %v3368
        %v3370 = vmul.f32 %v3134, 1.442695
        %v3371 = vpow.pop %v3370
        %v3372 = vmul.f32 %v3135, 1.442695
        %v3373 = vpow.pop %v3372
        %v3374 = vmul.f32 %v3136, 1.442695
        %v3375 = vpow.pop %v3374
        %v3376 = vmul.f32 %v3137, 1.442695
        %v3377 = vpow.pop %v3376
        %v3378 = vmul.f32 %v3138, 1.442695
        %v3379 = vpow.pop %v3378
        %v3380 = vmul.f32 %v3139, 1.442695
        %v3381 = vpow.pop %v3380
        %v3382 = vmul.f32 %v3140, 1.442695
        %v3383 = vpow.pop %v3382
        %v3384 = vmul.f32 %v3141, 1.442695
        %v3385 = vpow.pop %v3384
        %v3386 = vmul.f32 %v3142, 1.442695
        %v3387 = vpow.pop %v3386
        %v3388 = vmul.f32 %v3143, 1.442695
        %v3389 = vpow.pop %v3388
        %v3390 = vmul.f32 %v3144, 1.442695
        %v3391 = vpow.pop %v3390
        %v3392 = vmul.f32 %v3145, 1.442695
        %v3393 = vpow.pop %v3392
        %v3394 = vmul.f32 %v3146, 1.442695
        %v3395 = vpow.pop %v3394
        %v3396 = vmul.f32 %v3147, 1.442695
        %v3397 = vpow.pop %v3396
        %v3398 = vmul.f32 %v3148, 1.442695
        %v3399 = vpow.pop %v3398
        %v3400 = vmul.f32 %v3149, 1.442695
        %v3401 = vpow.pop %v3400
        %v3402 = vmul.f32 %v3150, 1.442695
        %v3403 = vpow.pop %v3402
        %v3404 = vmul.f32 %v3151, 1.442695
        %v3405 = vpow.pop %v3404
        %v3406 = vmul.f32 %v3152, 1.442695
        %v3407 = vpow.pop %v3406
        %v3408 = vmul.f32 %v3153, 1.442695
        %v3409 = vpow.pop %v3408
        %s3410 = scalar_lea.vmem [#allocation3], 2
        %v3411 = vld [vmem:[%s3410] sm:$0x3]
        %v3412 = vmul.f32 %v3020, %v3411
        %v3413 = vadd.f32 %v3155, %v3159
        %v3414 = vadd.f32 %v3413, %v3163
        %v3415 = vadd.f32 %v3414, %v3167
        %v3416 = vadd.f32 %v3415, %v3171
        %v3417 = vadd.f32 %v3416, %v3175
        %v3418 = vadd.f32 %v3417, %v3179
        %v3419 = vadd.f32 %v3418, %v3183
        %v3420 = vadd.f32 %v3419, %v3187
        %v3421 = vadd.f32 %v3420, %v3191
        %v3422 = vadd.f32 %v3421, %v3195
        %v3423 = vadd.f32 %v3422, %v3199
        %v3424 = vadd.f32 %v3423, %v3203
        %v3425 = vadd.f32 %v3424, %v3207
        %v3426 = vadd.f32 %v3425, %v3211
        %v3427 = vadd.f32 %v3426, %v3215
        %v3428 = vadd.f32 %v3427, %v3219
        %v3429 = vadd.f32 %v3428, %v3223
        %v3430 = vadd.f32 %v3429, %v3227
        %v3431 = vadd.f32 %v3430, %v3231
        %v3432 = vadd.f32 %v3431, %v3235
        %v3433 = vadd.f32 %v3432, %v3239
        %v3434 = vadd.f32 %v3433, %v3243
        %v3435 = vadd.f32 %v3434, %v3247
        %v3436 = vadd.f32 %v3435, %v3251
        %v3437 = vadd.f32 %v3436, %v3255
        %v3438 = vadd.f32 %v3437, %v3259
        %v3439 = vadd.f32 %v3438, %v3263
        %v3440 = vadd.f32 %v3439, %v3267
        %v3441 = vadd.f32 %v3440, %v3271
        %v3442 = vadd.f32 %v3441, %v3275
        %v3443 = vadd.f32 %v3442, %v3279
        %v3444 = vadd.f32 %v3443, %v3283
        %v3445 = vadd.f32 %v3444, %v3287
        %v3446 = vadd.f32 %v3445, %v3291
        %v3447 = vadd.f32 %v3446, %v3295
        %v3448 = vadd.f32 %v3447, %v3299
        %v3449 = vadd.f32 %v3448, %v3303
        %v3450 = vadd.f32 %v3449, %v3307
        %v3451 = vadd.f32 %v3450, %v3311
        %v3452 = vadd.f32 %v3451, %v3315
        %v3453 = vadd.f32 %v3452, %v3319
        %v3454 = vadd.f32 %v3453, %v3323
        %v3455 = vadd.f32 %v3454, %v3327
        %v3456 = vadd.f32 %v3455, %v3331
        %v3457 = vadd.f32 %v3456, %v3335
        %v3458 = vadd.f32 %v3457, %v3339
        %v3459 = vadd.f32 %v3458, %v3343
        %v3460 = vadd.f32 %v3459, %v3347
        %v3461 = vadd.f32 %v3460, %v3351
        %v3462 = vadd.f32 %v3461, %v3355
        %v3463 = vadd.f32 %v3462, %v3359
        %v3464 = vadd.f32 %v3463, %v3363
        %v3465 = vadd.f32 %v3464, %v3367
        %v3466 = vadd.f32 %v3465, %v3371
        %v3467 = vadd.f32 %v3466, %v3375
        %v3468 = vadd.f32 %v3467, %v3379
        %v3469 = vadd.f32 %v3468, %v3383
        %v3470 = vadd.f32 %v3469, %v3387
        %v3471 = vadd.f32 %v3470, %v3391
        %v3472 = vadd.f32 %v3471, %v3395
        %v3473 = vadd.f32 %v3472, %v3399
        %v3474 = vadd.f32 %v3473, %v3403
        %v3475 = vadd.f32 %v3474, %v3407
        %v3476 = vrot.slane %v3475, 4
        %v3477 = vadd.f32 %v3475, %v3476
        %v3478 = vrot.slane %v3477, 2
        %v3479 = vadd.f32 %v3477, %v3478
        %v3480 = vrot.slane %v3479, 1
        %v3481 = vadd.f32 %v3479, %v3480
        %v3482 = vadd.f32 %v3157, %v3161
        %v3483 = vadd.f32 %v3482, %v3165
        %v3484 = vadd.f32 %v3483, %v3169
        %v3485 = vadd.f32 %v3484, %v3173
        %v3486 = vadd.f32 %v3485, %v3177
        %v3487 = vadd.f32 %v3486, %v3181
        %v3488 = vadd.f32 %v3487, %v3185
        %v3489 = vadd.f32 %v3488, %v3189
        %v3490 = vadd.f32 %v3489, %v3193
        %v3491 = vadd.f32 %v3490, %v3197
        %v3492 = vadd.f32 %v3491, %v3201
        %v3493 = vadd.f32 %v3492, %v3205
        %v3494 = vadd.f32 %v3493, %v3209
        %v3495 = vadd.f32 %v3494, %v3213
        %v3496 = vadd.f32 %v3495, %v3217
        %v3497 = vadd.f32 %v3496, %v3221
        %v3498 = vadd.f32 %v3497, %v3225
        %v3499 = vadd.f32 %v3498, %v3229
        %v3500 = vadd.f32 %v3499, %v3233
        %v3501 = vadd.f32 %v3500, %v3237
        %v3502 = vadd.f32 %v3501, %v3241
        %v3503 = vadd.f32 %v3502, %v3245
        %v3504 = vadd.f32 %v3503, %v3249
        %v3505 = vadd.f32 %v3504, %v3253
        %v3506 = vadd.f32 %v3505, %v3257
        %v3507 = vadd.f32 %v3506, %v3261
        %v3508 = vadd.f32 %v3507, %v3265
        %v3509 = vadd.f32 %v3508, %v3269
        %v3510 = vadd.f32 %v3509, %v3273
        %v3511 = vadd.f32 %v3510, %v3277
        %v3512 = vadd.f32 %v3511, %v3281
        %v3513 = vadd.f32 %v3512, %v3285
        %v3514 = vadd.f32 %v3513, %v3289
        %v3515 = vadd.f32 %v3514, %v3293
        %v3516 = vadd.f32 %v3515, %v3297
        %v3517 = vadd.f32 %v3516, %v3301
        %v3518 = vadd.f32 %v3517, %v3305
        %v3519 = vadd.f32 %v3518, %v3309
        %v3520 = vadd.f32 %v3519, %v3313
        %v3521 = vadd.f32 %v3520, %v3317
        %v3522 = vadd.f32 %v3521, %v3321
        %v3523 = vadd.f32 %v3522, %v3325
        %v3524 = vadd.f32 %v3523, %v3329
        %v3525 = vadd.f32 %v3524, %v3333
        %v3526 = vadd.f32 %v3525, %v3337
        %v3527 = vadd.f32 %v3526, %v3341
        %v3528 = vadd.f32 %v3527, %v3345
        %v3529 = vadd.f32 %v3528, %v3349
        %v3530 = vadd.f32 %v3529, %v3353
        %v3531 = vadd.f32 %v3530, %v3357
        %v3532 = vadd.f32 %v3531, %v3361
        %v3533 = vadd.f32 %v3532, %v3365
        %v3534 = vadd.f32 %v3533, %v3369
        %v3535 = vadd.f32 %v3534, %v3373
        %v3536 = vadd.f32 %v3535, %v3377
        %v3537 = vadd.f32 %v3536, %v3381
        %v3538 = vadd.f32 %v3537, %v3385
        %v3539 = vadd.f32 %v3538, %v3389
        %v3540 = vadd.f32 %v3539, %v3393
        %v3541 = vadd.f32 %v3540, %v3397
        %v3542 = vadd.f32 %v3541, %v3401
        %v3543 = vadd.f32 %v3542, %v3405
        %v3544 = vadd.f32 %v3543, %v3409
        %v3545 = vrot.slane %v3544, 4
        %v3546 = vadd.f32 %v3544, %v3545
        %v3547 = vrot.slane %v3546, 2
        %v3548 = vadd.f32 %v3546, %v3547
        %v3549 = vrot.slane %v3548, 1
        %v3550 = vadd.f32 %v3548, %v3549
        %v3553 = vrot.slane %v3550, 7
        %v3554 = vsel %vm1266, %v3481, %v3553
        %v3556 = vadd.f32 %v3412, %v3554
        %3557 = vst.msk [vmem:[%s3410] sm:$0x3] %vm1811, %v3556
        %s3558 = scalar_lea.vmem [#allocation4], 64
        %v3559 = vld [vmem:[%s3558] sm:$0xff]
        %v3560 = vld [vmem:[%s3558 + $0x8] sm:$0xff]
        %v3561 = vld [vmem:[%s3558 + $0x10] sm:$0xff]
        %v3562 = vld [vmem:[%s3558 + $0x18] sm:$0xff]
        %v3563 = vld [vmem:[%s3558 + $0x20] sm:$0xff]
        %v3564 = vld [vmem:[%s3558 + $0x28] sm:$0xff]
        %v3565 = vld [vmem:[%s3558 + $0x30] sm:$0xff]
        %v3566 = vld [vmem:[%s3558 + $0x38] sm:$0xff]
        %v3568 = vperm.slane %v3020, 0
        %v3569 = vperm.slane %v3020, 1
        %v3572 = vmul.f32 %v3568, %v3559
        %v3573 = vmul.f32 %v3569, %v3560
        %v3574 = vmul.f32 %v3568, %v3561
        %v3575 = vmul.f32 %v3569, %v3562
        %v3576 = vmul.f32 %v3568, %v3563
        %v3577 = vmul.f32 %v3569, %v3564
        %v3578 = vmul.f32 %v3568, %v3565
        %v3579 = vmul.f32 %v3569, %v3566
        %3580 = vmatpush.msra.mxu0 %v3215
        %3581 = vmatpush.msra.mxu0 %v3211
        %3582 = vmatpush.msra.mxu0 %v3207
        %3583 = vmatpush.msra.mxu0 %v3203
        %3584 = vmatpush.msra.mxu0 %v3199
        %3585 = vmatpush.msra.mxu0 %v3195
        %3586 = vmatpush.msra.mxu0 %v3191
        %3587 = vmatpush.msra.mxu0 %v3187
        %3588 = vmatpush.msra.mxu0 %v3183
        %3589 = vmatpush.msra.mxu0 %v3179
        %3590 = vmatpush.msra.mxu0 %v3175
        %3591 = vmatpush.msra.mxu0 %v3171
        %3592 = vmatpush.msra.mxu0 %v3167
        %3593 = vmatpush.msra.mxu0 %v3163
        %3594 = vmatpush.msra.mxu0 %v3159
        %3595 = vmatpush.msra.mxu0 %v3155
        %3596 = vmatmul.f32.gmra.mxu0 %v2118
        %v3597 = vpop.f32.mrf.mxu0
        %v3598 = vadd.f32 0.0, %v3597
        %3599 = vmatmul.f32.gmra.mxu0 %v2122
        %v3600 = vpop.f32.mrf.mxu0
        %v3601 = vadd.f32 0.0, %v3600
        %3602 = vmatmul.f32.gmra.mxu0 %v2126
        %v3603 = vpop.f32.mrf.mxu0
        %v3604 = vadd.f32 0.0, %v3603
        %3605 = vmatmul.f32.gmra.mxu0 %v2130
        %v3606 = vpop.f32.mrf.mxu0
        %v3607 = vadd.f32 0.0, %v3606
        %3608 = vdwg.mxu0
        %3609 = vmatpush.msra.mxu0 %v3279
        %3610 = vmatpush.msra.mxu0 %v3275
        %3611 = vmatpush.msra.mxu0 %v3271
        %3612 = vmatpush.msra.mxu0 %v3267
        %3613 = vmatpush.msra.mxu0 %v3263
        %3614 = vmatpush.msra.mxu0 %v3259
        %3615 = vmatpush.msra.mxu0 %v3255
        %3616 = vmatpush.msra.mxu0 %v3251
        %3617 = vmatpush.msra.mxu0 %v3247
        %3618 = vmatpush.msra.mxu0 %v3243
        %3619 = vmatpush.msra.mxu0 %v3239
        %3620 = vmatpush.msra.mxu0 %v3235
        %3621 = vmatpush.msra.mxu0 %v3231
        %3622 = vmatpush.msra.mxu0 %v3227
        %3623 = vmatpush.msra.mxu0 %v3223
        %3624 = vmatpush.msra.mxu0 %v3219
        %3625 = vmatmul.f32.gmra.mxu0 %v2119
        %v3626 = vpop.f32.mrf.mxu0
        %v3627 = vadd.f32 %v3598, %v3626
        %3628 = vmatmul.f32.gmra.mxu0 %v2123
        %v3629 = vpop.f32.mrf.mxu0
        %v3630 = vadd.f32 %v3601, %v3629
        %3631 = vmatmul.f32.gmra.mxu0 %v2127
        %v3632 = vpop.f32.mrf.mxu0
        %v3633 = vadd.f32 %v3604, %v3632
        %3634 = vmatmul.f32.gmra.mxu0 %v2131
        %v3635 = vpop.f32.mrf.mxu0
        %v3636 = vadd.f32 %v3607, %v3635
        %3637 = vdwg.mxu0
        %3638 = vmatpush.msra.mxu0 %v3343
        %3639 = vmatpush.msra.mxu0 %v3339
        %3640 = vmatpush.msra.mxu0 %v3335
        %3641 = vmatpush.msra.mxu0 %v3331
        %3642 = vmatpush.msra.mxu0 %v3327
        %3643 = vmatpush.msra.mxu0 %v3323
        %3644 = vmatpush.msra.mxu0 %v3319
        %3645 = vmatpush.msra.mxu0 %v3315
        %3646 = vmatpush.msra.mxu0 %v3311
        %3647 = vmatpush.msra.mxu0 %v3307
        %3648 = vmatpush.msra.mxu0 %v3303
        %3649 = vmatpush.msra.mxu0 %v3299
        %3650 = vmatpush.msra.mxu0 %v3295
        %3651 = vmatpush.msra.mxu0 %v3291
        %3652 = vmatpush.msra.mxu0 %v3287
        %3653 = vmatpush.msra.mxu0 %v3283
        %3654 = vmatmul.f32.gmra.mxu0 %v2120
        %v3655 = vpop.f32.mrf.mxu0
        %v3656 = vadd.f32 %v3627, %v3655
        %3657 = vmatmul.f32.gmra.mxu0 %v2124
        %v3658 = vpop.f32.mrf.mxu0
        %v3659 = vadd.f32 %v3630, %v3658
        %3660 = vmatmul.f32.gmra.mxu0 %v2128
        %v3661 = vpop.f32.mrf.mxu0
        %v3662 = vadd.f32 %v3633, %v3661
        %3663 = vmatmul.f32.gmra.mxu0 %v2132
        %v3664 = vpop.f32.mrf.mxu0
        %v3665 = vadd.f32 %v3636, %v3664
        %3666 = vdwg.mxu0
        %3667 = vmatpush.msra.mxu0 %v3407
        %3668 = vmatpush.msra.mxu0 %v3403
        %3669 = vmatpush.msra.mxu0 %v3399
        %3670 = vmatpush.msra.mxu0 %v3395
        %3671 = vmatpush.msra.mxu0 %v3391
        %3672 = vmatpush.msra.mxu0 %v3387
        %3673 = vmatpush.msra.mxu0 %v3383
        %3674 = vmatpush.msra.mxu0 %v3379
        %3675 = vmatpush.msra.mxu0 %v3375
        %3676 = vmatpush.msra.mxu0 %v3371
        %3677 = vmatpush.msra.mxu0 %v3367
        %3678 = vmatpush.msra.mxu0 %v3363
        %3679 = vmatpush.msra.mxu0 %v3359
        %3680 = vmatpush.msra.mxu0 %v3355
        %3681 = vmatpush.msra.mxu0 %v3351
        %3682 = vmatpush.msra.mxu0 %v3347
        %3683 = vmatmul.f32.gmra.mxu0 %v2121
        %v3684 = vpop.f32.mrf.mxu0
        %v3685 = vadd.f32 %v3656, %v3684
        %3686 = vmatmul.f32.gmra.mxu0 %v2125
        %v3687 = vpop.f32.mrf.mxu0
        %v3688 = vadd.f32 %v3659, %v3687
        %3689 = vmatmul.f32.gmra.mxu0 %v2129
        %v3690 = vpop.f32.mrf.mxu0
        %v3691 = vadd.f32 %v3662, %v3690
        %3692 = vmatmul.f32.gmra.mxu0 %v2133
        %v3693 = vpop.f32.mrf.mxu0
        %v3694 = vadd.f32 %v3665, %v3693
        %3695 = vdwg.mxu0
        %3696 = vmatpush.msra.mxu0 %v3217
        %3697 = vmatpush.msra.mxu0 %v3213
        %3698 = vmatpush.msra.mxu0 %v3209
        %3699 = vmatpush.msra.mxu0 %v3205
        %3700 = vmatpush.msra.mxu0 %v3201
        %3701 = vmatpush.msra.mxu0 %v3197
        %3702 = vmatpush.msra.mxu0 %v3193
        %3703 = vmatpush.msra.mxu0 %v3189
        %3704 = vmatpush.msra.mxu0 %v3185
        %3705 = vmatpush.msra.mxu0 %v3181
        %3706 = vmatpush.msra.mxu0 %v3177
        %3707 = vmatpush.msra.mxu0 %v3173
        %3708 = vmatpush.msra.mxu0 %v3169
        %3709 = vmatpush.msra.mxu0 %v3165
        %3710 = vmatpush.msra.mxu0 %v3161
        %3711 = vmatpush.msra.mxu0 %v3157
        %3712 = vmatmul.f32.gmra.mxu0 %v2118
        %v3713 = vpop.f32.mrf.mxu0
        %v3714 = vadd.f32 0.0, %v3713
        %3715 = vmatmul.f32.gmra.mxu0 %v2122
        %v3716 = vpop.f32.mrf.mxu0
        %v3717 = vadd.f32 0.0, %v3716
        %3718 = vmatmul.f32.gmra.mxu0 %v2126
        %v3719 = vpop.f32.mrf.mxu0
        %v3720 = vadd.f32 0.0, %v3719
        %3721 = vmatmul.f32.gmra.mxu0 %v2130
        %v3722 = vpop.f32.mrf.mxu0
        %v3723 = vadd.f32 0.0, %v3722
        %3724 = vdwg.mxu0
        %3725 = vmatpush.msra.mxu0 %v3281
        %3726 = vmatpush.msra.mxu0 %v3277
        %3727 = vmatpush.msra.mxu0 %v3273
        %3728 = vmatpush.msra.mxu0 %v3269
        %3729 = vmatpush.msra.mxu0 %v3265
        %3730 = vmatpush.msra.mxu0 %v3261
        %3731 = vmatpush.msra.mxu0 %v3257
        %3732 = vmatpush.msra.mxu0 %v3253
        %3733 = vmatpush.msra.mxu0 %v3249
        %3734 = vmatpush.msra.mxu0 %v3245
        %3735 = vmatpush.msra.mxu0 %v3241
        %3736 = vmatpush.msra.mxu0 %v3237
        %3737 = vmatpush.msra.mxu0 %v3233
        %3738 = vmatpush.msra.mxu0 %v3229
        %3739 = vmatpush.msra.mxu0 %v3225
        %3740 = vmatpush.msra.mxu0 %v3221
        %3741 = vmatmul.f32.gmra.mxu0 %v2119
        %v3742 = vpop.f32.mrf.mxu0
        %v3743 = vadd.f32 %v3714, %v3742
        %3744 = vmatmul.f32.gmra.mxu0 %v2123
        %v3745 = vpop.f32.mrf.mxu0
        %v3746 = vadd.f32 %v3717, %v3745
        %3747 = vmatmul.f32.gmra.mxu0 %v2127
        %v3748 = vpop.f32.mrf.mxu0
        %v3749 = vadd.f32 %v3720, %v3748
        %3750 = vmatmul.f32.gmra.mxu0 %v2131
        %v3751 = vpop.f32.mrf.mxu0
        %v3752 = vadd.f32 %v3723, %v3751
        %3753 = vdwg.mxu0
        %3754 = vmatpush.msra.mxu0 %v3345
        %3755 = vmatpush.msra.mxu0 %v3341
        %3756 = vmatpush.msra.mxu0 %v3337
        %3757 = vmatpush.msra.mxu0 %v3333
        %3758 = vmatpush.msra.mxu0 %v3329
        %3759 = vmatpush.msra.mxu0 %v3325
        %3760 = vmatpush.msra.mxu0 %v3321
        %3761 = vmatpush.msra.mxu0 %v3317
        %3762 = vmatpush.msra.mxu0 %v3313
        %3763 = vmatpush.msra.mxu0 %v3309
        %3764 = vmatpush.msra.mxu0 %v3305
        %3765 = vmatpush.msra.mxu0 %v3301
        %3766 = vmatpush.msra.mxu0 %v3297
        %3767 = vmatpush.msra.mxu0 %v3293
        %3768 = vmatpush.msra.mxu0 %v3289
        %3769 = vmatpush.msra.mxu0 %v3285
        %3770 = vmatmul.f32.gmra.mxu0 %v2120
        %v3771 = vpop.f32.mrf.mxu0
        %v3772 = vadd.f32 %v3743, %v3771
        %3773 = vmatmul.f32.gmra.mxu0 %v2124
        %v3774 = vpop.f32.mrf.mxu0
        %v3775 = vadd.f32 %v3746, %v3774
        %3776 = vmatmul.f32.gmra.mxu0 %v2128
        %v3777 = vpop.f32.mrf.mxu0
        %v3778 = vadd.f32 %v3749, %v3777
        %3779 = vmatmul.f32.gmra.mxu0 %v2132
        %v3780 = vpop.f32.mrf.mxu0
        %v3781 = vadd.f32 %v3752, %v3780
        %3782 = vdwg.mxu0
        %3783 = vmatpush.msra.mxu0 %v3409
        %3784 = vmatpush.msra.mxu0 %v3405
        %3785 = vmatpush.msra.mxu0 %v3401
        %3786 = vmatpush.msra.mxu0 %v3397
        %3787 = vmatpush.msra.mxu0 %v3393
        %3788 = vmatpush.msra.mxu0 %v3389
        %3789 = vmatpush.msra.mxu0 %v3385
        %3790 = vmatpush.msra.mxu0 %v3381
        %3791 = vmatpush.msra.mxu0 %v3377
        %3792 = vmatpush.msra.mxu0 %v3373
        %3793 = vmatpush.msra.mxu0 %v3369
        %3794 = vmatpush.msra.mxu0 %v3365
        %3795 = vmatpush.msra.mxu0 %v3361
        %3796 = vmatpush.msra.mxu0 %v3357
        %3797 = vmatpush.msra.mxu0 %v3353
        %3798 = vmatpush.msra.mxu0 %v3349
        %3799 = vmatmul.f32.gmra.mxu0 %v2121
        %v3800 = vpop.f32.mrf.mxu0
        %v3801 = vadd.f32 %v3772, %v3800
        %3802 = vmatmul.f32.gmra.mxu0 %v2125
        %v3803 = vpop.f32.mrf.mxu0
        %v3804 = vadd.f32 %v3775, %v3803
        %3805 = vmatmul.f32.gmra.mxu0 %v2129
        %v3806 = vpop.f32.mrf.mxu0
        %v3807 = vadd.f32 %v3778, %v3806
        %3808 = vmatmul.f32.gmra.mxu0 %v2133
        %v3809 = vpop.f32.mrf.mxu0
        %v3810 = vadd.f32 %v3781, %v3809
        %3811 = vdwg.mxu0
        %v3812 = vadd.f32 %v3572, %v3685
        %v3813 = vadd.f32 %v3573, %v3801
        %v3814 = vadd.f32 %v3574, %v3688
        %v3815 = vadd.f32 %v3575, %v3804
        %v3816 = vadd.f32 %v3576, %v3691
        %v3817 = vadd.f32 %v3577, %v3807
        %v3818 = vadd.f32 %v3578, %v3694
        %v3819 = vadd.f32 %v3579, %v3810
        %3820 = vst [vmem:[%s3558] sm:$0xff] %v3812
        %3821 = vst [vmem:[%s3558 + $0x8] sm:$0xff] %v3813
        %3822 = vst [vmem:[%s3558 + $0x10] sm:$0xff] %v3814
        %3823 = vst [vmem:[%s3558 + $0x18] sm:$0xff] %v3815
        %3824 = vst [vmem:[%s3558 + $0x20] sm:$0xff] %v3816
        %3825 = vst [vmem:[%s3558 + $0x28] sm:$0xff] %v3817
        %3826 = vst [vmem:[%s3558 + $0x30] sm:$0xff] %v3818
        %3827 = vst [vmem:[%s3558 + $0x38] sm:$0xff] %v3819
        %3828 = vst.msk [vmem:[%s2872] sm:$0x3] %vm1811, %v3017
        %p3829 = scmp.eq.s32.totalorder %s30, 1
        // Predicated region
        $region49: #{tpu_custom_call.1} parent=31 // pred_check
          %p3830 = pneg %p3829
        $region50: #{tpu_custom_call.1} parent=31 // pred_check_branch
          %3832 = sbr.rel (%p3830) target = $region52
        $region51: #{tpu_custom_call.1} parent=31 // pred_region
          %v3833 = vld [vmem:[#allocation3] sm:$0x3]
          %v3834 = vld [vmem:[#allocation3 + $0x2] sm:$0x3]
          %v3835 = vrcp.pop %v3833
          %v3836 = vrcp.pop %v3834
          %v3837 = vld [vmem:[#allocation4] sm:$0xff]
          %v3838 = vld [vmem:[#allocation4 + $0x8] sm:$0xff]
          %v3839 = vld [vmem:[#allocation4 + $0x10] sm:$0xff]
          %v3840 = vld [vmem:[#allocation4 + $0x18] sm:$0xff]
          %v3841 = vld [vmem:[#allocation4 + $0x20] sm:$0xff]
          %v3842 = vld [vmem:[#allocation4 + $0x28] sm:$0xff]
          %v3843 = vld [vmem:[#allocation4 + $0x30] sm:$0xff]
          %v3844 = vld [vmem:[#allocation4 + $0x38] sm:$0xff]
          %v3845 = vld [vmem:[#allocation4 + $0x40] sm:$0xff]
          %v3846 = vld [vmem:[#allocation4 + $0x48] sm:$0xff]
          %v3847 = vld [vmem:[#allocation4 + $0x50] sm:$0xff]
          %v3848 = vld [vmem:[#allocation4 + $0x58] sm:$0xff]
          %v3849 = vld [vmem:[#allocation4 + $0x60] sm:$0xff]
          %v3850 = vld [vmem:[#allocation4 + $0x68] sm:$0xff]
          %v3851 = vld [vmem:[#allocation4 + $0x70] sm:$0xff]
          %v3852 = vld [vmem:[#allocation4 + $0x78] sm:$0xff]
          %v3855 = vperm.slane %v3835, 0
          %v3856 = vperm.slane %v3835, 1
          %v3857 = vperm.slane %v3836, 0
          %v3858 = vperm.slane %v3836, 1
          %v3863 = vmul.f32 %v3837, %v3855
          %v3864 = vmul.f32 %v3838, %v3856
          %v3865 = vmul.f32 %v3839, %v3855
          %v3866 = vmul.f32 %v3840, %v3856
          %v3867 = vmul.f32 %v3841, %v3855
          %v3868 = vmul.f32 %v3842, %v3856
          %v3869 = vmul.f32 %v3843, %v3855
          %v3870 = vmul.f32 %v3844, %v3856
          %v3871 = vmul.f32 %v3845, %v3857
          %v3872 = vmul.f32 %v3846, %v3858
          %v3873 = vmul.f32 %v3847, %v3857
          %v3874 = vmul.f32 %v3848, %v3858
          %v3875 = vmul.f32 %v3849, %v3857
          %v3876 = vmul.f32 %v3850, %v3858
          %v3877 = vmul.f32 %v3851, %v3857
          %v3878 = vmul.f32 %v3852, %v3858
          %3879 = vst [vmem:[%s304] sm:$0xff] %v3863
          %3880 = vst [vmem:[%s304 + $0x8] sm:$0xff] %v3864
          %3881 = vst [vmem:[%s304 + $0x10] sm:$0xff] %v3865
          %3882 = vst [vmem:[%s304 + $0x18] sm:$0xff] %v3866
          %3883 = vst [vmem:[%s304 + $0x20] sm:$0xff] %v3867
          %3884 = vst [vmem:[%s304 + $0x28] sm:$0xff] %v3868
          %3885 = vst [vmem:[%s304 + $0x30] sm:$0xff] %v3869
          %3886 = vst [vmem:[%s304 + $0x38] sm:$0xff] %v3870
          %3887 = vst [vmem:[%s304 + $0x40] sm:$0xff] %v3871
          %3888 = vst [vmem:[%s304 + $0x48] sm:$0xff] %v3872
          %3889 = vst [vmem:[%s304 + $0x50] sm:$0xff] %v3873
          %3890 = vst [vmem:[%s304 + $0x58] sm:$0xff] %v3874
          %3891 = vst [vmem:[%s304 + $0x60] sm:$0xff] %v3875
          %3892 = vst [vmem:[%s304 + $0x68] sm:$0xff] %v3876
          %3893 = vst [vmem:[%s304 + $0x70] sm:$0xff] %v3877
          %3894 = vst [vmem:[%s304 + $0x78] sm:$0xff] %v3878
        $region52: #{tpu_custom_call.1} parent=31 // pred_fallthru
          _
        %s3895 = sand.u32 %s136, 1
        %s3896 = scalar_lea.sflag [#allocation7], %s3895
        %s3897 = sand.u32 %s136, 1
        %s3898 = smul.addr %s3897, 128
        %s3899 = scalar_lea.vmem [#allocation11], %s3898
        // Predicated region
        $region53: #{tpu_custom_call.1} parent=31 // pred_check
          %p3900 = pneg %p146
        $region54: #{tpu_custom_call.1} parent=31 // pred_check_branch
          %3902 = sbr.rel (%p3900) target = $region56
        $region55: #{tpu_custom_call.1} parent=31 // pred_region
          %s3903 = smul.u32 2, %s29
          %3905 = vsyncadd %s3896, 0
          %s3906 = smul.addr %s28, 64
          %s3907 = sadd.s32 %s3903, %s3906
          %s3908 = smul.addr %s3907, 8
          %s3909 = scalar_lea.hbm %s3, %s3908
          %s3910 = sshll.u32 %s3899, 4
          %s3911 = int_to_ptr.vmem [resolvable:$true] %s3910
          %s3912 = sshll.u32 %s3909, 4
          %s3913 = int_to_ptr.hbm [resolvable:$true] %s3912
          %3918 = dma.vmem_to_hbm [thread:$0]  %s3911, 2048, %s3913, %s3896, 256, 1024, 16
        $region56: #{tpu_custom_call.1} parent=31 // pred_fallthru
          _
      $region32: #{tpu_custom_call.1} parent=5 // pred_fallthru
        _
      %p3919 = scmp.le.s32.totalorder 2, %s18
      // Predicated region
      $region57: #{tpu_custom_call.1} parent=5 // pred_check
        %p3920 = pneg %p3919
      $region58: #{tpu_custom_call.1} parent=5 // pred_check_branch
        %3922 = sbr.rel (%p3920) target = $region60
      $region59: #{tpu_custom_call.1} parent=5 // pred_region
        %s3923 = ssub.s32 %s18, 2
        // Predicated region
        $region61: #{tpu_custom_call.1} parent=59 // pred_check
          %p3924 = pneg %p152
        $region62: #{tpu_custom_call.1} parent=59 // pred_check_branch
          %3926 = sbr.rel (%p3924) target = $region64
        $region63: #{tpu_custom_call.1} parent=59 // pred_region
          %s3927 = sand.u32 %s137, 1
          %s3928 = scalar_lea.sflag [#allocation7], %s3927
          %s3929 = sand.u32 %s137, 1
          %s3930 = smul.addr %s3929, 128
          %s3931 = scalar_lea.vmem [#allocation11], %s3930
          %3933 = dma.done %s3928, 2048
        $region64: #{tpu_custom_call.1} parent=59 // pred_fallthru
          _
      $region60: #{tpu_custom_call.1} parent=5 // pred_fallthru
        _
    $region6: #{tpu_custom_call.1} parent=1 // loop_footer
      %s22 = sadd.s32 1, %s18
    $region7: #{tpu_custom_call.1} parent=1 // loop_footer_branch
      %17 = sbr.rel target = $region3
    $region8: #{tpu_custom_call.1} parent=1 // loop_exit
      _
    %3934 = vsyncpa [#allocation6], 1
    %s3935 = scalar_lea.sflag [#allocation6], 1
    %3936 = vsyncpa %s3935, 1
    %3937 = vsyncpa [#allocation9], 1
    %s3938 = scalar_lea.sflag [#allocation9], 1
    %3939 = vsyncpa %s3938, 1
    %3940 = vsyncpa [#allocation7], 1
    %s3941 = scalar_lea.sflag [#allocation7], 1
    %3942 = vsyncpa %s3941, 1

</llo_original>
